<compile_context>
chip_gen: v7x
topology: tpu7x:2x2x1
jax: 0.10.0
libtpu: 0.0.40
codegen_flags: <defaults>
</compile_context>

<pallas_src>
import functools

import jax
import jax.numpy as jnp
from jax.experimental import pallas as pl
from jax.experimental.pallas import tpu as pltpu


def _round_up(x: int, m: int) -> int:
    return ((x + m - 1) // m) * m


def _kelso_mlp_kernel(x_ref, gu_ref, dw_ref, o_ref, acc_ref, *, block_k):
    """One (block_m, h) output tile; grid axis 1 walks the intermediate dim."""

    @pl.when(pl.program_id(1) == 0)
    def _init():
        acc_ref[...] = jnp.zeros_like(acc_ref)

    # Fused gate/up matmul: (bm, h) @ (h, 2*bk) -> (bm, 2*bk), f32 accumulation.
    gu = jnp.dot(x_ref[...], gu_ref[...], preferred_element_type=jnp.float32)
    g = gu[:, :block_k]                       # gate_proj slice of this K-tile
    u = gu[:, block_k:]                       # up_proj   slice of this K-tile
    act = (g * jax.nn.sigmoid(g)) * u         # silu(g) * u, computed in f32

    # Partial down_proj for this K-tile, accumulated in f32 scratch.
    acc_ref[...] += jnp.dot(act.astype(dw_ref.dtype), dw_ref[...],
                            preferred_element_type=jnp.float32)

    @pl.when(pl.program_id(1) == pl.num_programs(1) - 1)
    def _finalize():
        o_ref[...] = acc_ref[...].astype(o_ref.dtype)


def kelso_mlp(x, gate_w, up_w, down_w, *, block_m=256, block_k=512,
              compute_dtype=jnp.float32, out_dtype=None):
    """x: (..., h); gate_w/up_w: (h, inter); down_w: (inter, h)."""
    orig_shape = x.shape
    h = orig_shape[-1]
    inter = gate_w.shape[1]
    assert gate_w.shape == (h, inter) and up_w.shape == (h, inter)
    assert down_w.shape == (inter, h)
    out_dtype = out_dtype or x.dtype

    x2 = x.reshape(-1, h)
    m = x2.shape[0]

    # Tile-aligned / lane-dense padded sizes.
    h_pad = _round_up(h, 128)
    tk = min(block_k, _round_up(inter, 128))
    inter_pad = _round_up(inter, tk)
    tm = min(block_m, _round_up(m, 8))
    m_pad = _round_up(m, tm)
    nk = inter_pad // tk

    x_p = jnp.pad(x2, ((0, m_pad - m), (0, h_pad - h)))
    gate_p = jnp.pad(gate_w, ((0, h_pad - h), (0, inter_pad - inter)))
    up_p = jnp.pad(up_w, ((0, h_pad - h), (0, inter_pad - inter)))
    down_p = jnp.pad(down_w, ((0, inter_pad - inter), (0, h_pad - h)))

    # Fuse gate/up into one weight, interleaved per K-tile so each (h, 2*tk)
    # block holds [gate_tile | up_tile] for the same slice of the inter dim.
    gu_p = jnp.stack([gate_p.reshape(h_pad, nk, tk),
                      up_p.reshape(h_pad, nk, tk)], axis=2)
    gu_p = gu_p.reshape(h_pad, nk * 2 * tk)

    x_p = x_p.astype(compute_dtype)
    gu_p = gu_p.astype(compute_dtype)
    down_p = down_p.astype(compute_dtype)

    # Explicit scoped-VMEM budget (v5e default is only 16 MiB); keep it well
    # under the smallest physical VMEM (64 MiB on v7x).
    in_isz = jnp.dtype(compute_dtype).itemsize
    out_isz = jnp.dtype(out_dtype).itemsize
    vmem_est = (2 * (tm * h_pad + h_pad * 2 * tk + tk * h_pad) * in_isz  # dbl-buffered inputs
                + 2 * tm * h_pad * out_isz                               # dbl-buffered output
                + tm * h_pad * 4)                                        # f32 accumulator
    vmem_limit = int(min(max(2 * vmem_est, 32 * 1024 * 1024), 48 * 1024 * 1024))

    grid = (m_pad // tm, nk)
    out = pl.pallas_call(
        functools.partial(_kelso_mlp_kernel, block_k=tk),
        out_shape=jax.ShapeDtypeStruct((m_pad, h_pad), out_dtype),
        grid_spec=pltpu.PrefetchScalarGridSpec(
            num_scalar_prefetch=0,
            grid=grid,
            in_specs=[
                pl.BlockSpec((tm, h_pad), lambda i, j: (i, 0)),       # activations
                pl.BlockSpec((h_pad, 2 * tk), lambda i, j: (0, j)),   # fused gate|up
                pl.BlockSpec((tk, h_pad), lambda i, j: (j, 0)),       # down_proj
            ],
            out_specs=pl.BlockSpec((tm, h_pad), lambda i, j: (i, 0)),
            scratch_shapes=[pltpu.VMEM((tm, h_pad), jnp.float32)],
        ),
        compiler_params=pltpu.CompilerParams(
            dimension_semantics=("parallel", "arbitrary"),
            vmem_limit_bytes=vmem_limit,
        ),
    )(x_p, gu_p, down_p)

    return out[:m, :h].reshape(orig_shape)


def _reference(x, gate_w, up_w, down_w):
    """Pure-JAX reference mirroring the PyTorch forward (f32, high precision)."""
    hi = jax.lax.Precision.HIGHEST
    g = jnp.dot(x, gate_w, precision=hi)
    u = jnp.dot(x, up_w, precision=hi)
    return jnp.dot(jax.nn.silu(g) * u, down_w, precision=hi)


if __name__ == "__main__":
    # Small but lane-dense shapes (h, inter multiples of 128).
    bsz, seq, h, inter = 2, 128, 128, 512

    key = jax.random.PRNGKey(0)
    kx, kg, ku, kd = jax.random.split(key, 4)
    x = jax.random.normal(kx, (bsz, seq, h), dtype=jnp.float32)
    gate_w = jax.random.normal(kg, (h, inter), dtype=jnp.float32) / (h ** 0.5)
    up_w = jax.random.normal(ku, (h, inter), dtype=jnp.float32) / (h ** 0.5)
    down_w = jax.random.normal(kd, (inter, h), dtype=jnp.float32) / (inter ** 0.5)

    ref = _reference(x, gate_w, up_w, down_w)

    # f32 path (matches the PyTorch module's default dtype).
    out = jax.block_until_ready(
        kelso_mlp(x, gate_w, up_w, down_w, compute_dtype=jnp.float32))
    assert out.shape == (bsz, seq, h), out.shape
    err_f32 = float(jnp.max(jnp.abs(out - ref)))
    assert jnp.allclose(out, ref, rtol=1e-4, atol=1e-4), err_f32

    # bf16-operand path (v6e/v7x MXU-native, f32 accumulation) -- looser check.
    out_bf16 = jax.block_until_ready(
        kelso_mlp(x, gate_w, up_w, down_w, compute_dtype=jnp.bfloat16))
    err_bf16 = float(jnp.max(jnp.abs(out_bf16.astype(jnp.float32) - ref)))
    assert jnp.allclose(out_bf16.astype(jnp.float32), ref,
                        rtol=5e-2, atol=5e-2), err_bf16

    print("KERNEL_OK")
</pallas_src>

<mosaic_0001>
module attributes {stable_mosaic.version = 11 : i64} {
  func.func @_kelso_mlp_kernel(%arg0: i32, %arg1: i32, %arg2: memref<256x128xf32, #tpu.memory_space<vmem>>, %arg3: memref<128x1024xf32, #tpu.memory_space<vmem>>, %arg4: memref<512x128xf32, #tpu.memory_space<vmem>>, %arg5: memref<256x128xf32, #tpu.memory_space<vmem>>, %arg6: memref<256x128xf32, #tpu.memory_space<vmem>>) attributes {dimension_semantics = [#tpu.dimension_semantics<parallel>, #tpu.dimension_semantics<arbitrary>], iteration_bounds = array<i64: 1, 1>, scalar_prefetch = 0 : i64, scratch_operands = 1 : i64, tpu.core_type = #tpu.core_type<tc>, window_params = [{transform_indices = @transform_0, window_bounds = array<i64: 256, 128>}, {transform_indices = @transform_1, window_bounds = array<i64: 128, 1024>}, {transform_indices = @transform_2, window_bounds = array<i64: 512, 128>}, {transform_indices = @transform_3, window_bounds = array<i64: 256, 128>}]} {
    %c0_i32 = arith.constant 0 : i32
    %0 = arith.cmpi eq, %arg1, %c0_i32 : i32
    %1 = arith.extui %0 : i1 to i32
    %c0_i32_0 = arith.constant 0 : i32
    %2 = arith.cmpi ne, %1, %c0_i32_0 : i32
    scf.if %2 {
      %cst_14 = arith.constant 0.000000e+00 : f32
      %23 = vector.broadcast %cst_14 : f32 to vector<256x128xf32>
      %c0_15 = arith.constant 0 : index
      %c0_16 = arith.constant 0 : index
      %24 = vector.load %arg6[%c0_15, %c0_16] : memref<256x128xf32, #tpu.memory_space<vmem>>, vector<256x128xf32>
      tpu.vector_store %arg6[%c0_15, %c0_16], %23 {strides = array<i32>} : memref<256x128xf32, #tpu.memory_space<vmem>>, vector<256x128xf32>,
    } else {
    }
    %c0 = arith.constant 0 : index
    %c0_1 = arith.constant 0 : index
    %3 = vector.load %arg2[%c0, %c0_1] : memref<256x128xf32, #tpu.memory_space<vmem>>, vector<256x128xf32>
    %c0_2 = arith.constant 0 : index
    %c0_3 = arith.constant 0 : index
    %4 = vector.load %arg3[%c0_2, %c0_3] : memref<128x1024xf32, #tpu.memory_space<vmem>>, vector<128x1024xf32>
    %cst = arith.constant dense<0.000000e+00> : vector<256x1024xf32>
    %5 = tpu.matmul %3, %4, %cst {dimension_numbers = #tpu.dot_dimension_numbers<[1], [0], [0], [1], [0, 0, 1, 1], [], []>} : vector<256x128xf32>, vector<128x1024xf32>, vector<256x1024xf32> -> vector<256x1024xf32>
    %6 = vector.extract_strided_slice %5 {offsets = [0, 0], sizes = [256, 512], strides = [1, 1]} : vector<256x1024xf32> to vector<256x512xf32>
    %7 = vector.extract_strided_slice %5 {offsets = [0, 512], sizes = [256, 512], strides = [1, 1]} : vector<256x1024xf32> to vector<256x512xf32>
    %8 = arith.negf %6 : vector<256x512xf32>
    %9 = math.exp %8 : vector<256x512xf32>
    %cst_4 = arith.constant 1.000000e+00 : f32
    %10 = vector.broadcast %cst_4 : f32 to vector<256x512xf32>
    %11 = arith.addf %10, %9 : vector<256x512xf32>
    %12 = arith.divf %10, %11 : vector<256x512xf32>
    %13 = arith.mulf %6, %12 : vector<256x512xf32>
    %14 = arith.mulf %13, %7 : vector<256x512xf32>
    %c0_5 = arith.constant 0 : index
    %c0_6 = arith.constant 0 : index
    %15 = vector.load %arg6[%c0_5, %c0_6] : memref<256x128xf32, #tpu.memory_space<vmem>>, vector<256x128xf32>
    %c0_7 = arith.constant 0 : index
    %c0_8 = arith.constant 0 : index
    %16 = vector.load %arg4[%c0_7, %c0_8] : memref<512x128xf32, #tpu.memory_space<vmem>>, vector<512x128xf32>
    %cst_9 = arith.constant dense<0.000000e+00> : vector<256x128xf32>
    %17 = tpu.matmul %14, %16, %cst_9 {dimension_numbers = #tpu.dot_dimension_numbers<[1], [0], [0], [1], [0, 0, 1, 1], [], []>} : vector<256x512xf32>, vector<512x128xf32>, vector<256x128xf32> -> vector<256x128xf32>
    %18 = arith.addf %15, %17 : vector<256x128xf32>
    %c0_10 = arith.constant 0 : index
    %c0_11 = arith.constant 0 : index
    %19 = vector.load %arg6[%c0_10, %c0_11] : memref<256x128xf32, #tpu.memory_space<vmem>>, vector<256x128xf32>
    tpu.vector_store %arg6[%c0_10, %c0_11], %18 {strides = array<i32>} : memref<256x128xf32, #tpu.memory_space<vmem>>, vector<256x128xf32>,
    %c0_i32_12 = arith.constant 0 : i32
    %20 = arith.cmpi eq, %arg1, %c0_i32_12 : i32
    %21 = arith.extui %20 : i1 to i32
    %c0_i32_13 = arith.constant 0 : i32
    %22 = arith.cmpi ne, %21, %c0_i32_13 : i32
    scf.if %22 {
      %c0_14 = arith.constant 0 : index
      %c0_15 = arith.constant 0 : index
      %23 = vector.load %arg6[%c0_14, %c0_15] : memref<256x128xf32, #tpu.memory_space<vmem>>, vector<256x128xf32>
      %c0_16 = arith.constant 0 : index
      %c0_17 = arith.constant 0 : index
      %24 = vector.load %arg5[%c0_16, %c0_17] : memref<256x128xf32, #tpu.memory_space<vmem>>, vector<256x128xf32>
      tpu.vector_store %arg5[%c0_16, %c0_17], %23 {strides = array<i32>} : memref<256x128xf32, #tpu.memory_space<vmem>>, vector<256x128xf32>,
    } else {
    }
    return
  }
  func.func @transform_0(%arg0: i32, %arg1: i32) -> (i32, i32) {
    %c0_i32 = arith.constant 0 : i32
    %c0_i32_0 = arith.constant 0 : i32
    return %arg0, %c0_i32 : i32, i32
  }
  func.func @transform_1(%arg0: i32, %arg1: i32) -> (i32, i32) {
    %c0_i32 = arith.constant 0 : i32
    %c0_i32_0 = arith.constant 0 : i32
    return %c0_i32, %arg1 : i32, i32
  }
  func.func @transform_2(%arg0: i32, %arg1: i32) -> (i32, i32) {
    %c0_i32 = arith.constant 0 : i32
    %c0_i32_0 = arith.constant 0 : i32
    return %arg1, %c0_i32 : i32, i32
  }
  func.func @transform_3(%arg0: i32, %arg1: i32) -> (i32, i32) {
    %c0_i32 = arith.constant 0 : i32
    %c0_i32_0 = arith.constant 0 : i32
    return %arg0, %c0_i32 : i32, i32
  }
}

</mosaic_0001>

<llo_original>
// kernel: tpu_custom_call.1
$region0: #{tpu_custom_call.1}
  #allocation0 [shape = 'u32[]', space=smem, size = 0x4, offset = 0x4, fixed_abs, tag = 'smem constant byte address 0x4 - core index']
  #allocation1 [shape = 'u32[144,128]{1,0:T(1,128)}', space=vmem, size = 0x12000, scoped, tag = 'internal scratch']
  #allocation2 [shape = 'f32[256,128]{1,0:T(8,128)}', space=vmem, size = 0x20000, scoped, tag = 'scratch operand']
  %s0 = inlined_call_operand.hbm [shape: f32[256,128], index: 0, kind: input, shape index: {}]
  %s1 = inlined_call_operand.hbm [shape: f32[128,1024], index: 1, kind: input, shape index: {}]
  %s2 = inlined_call_operand.hbm [shape: f32[512,128], index: 2, kind: input, shape index: {}]
  %s3 = inlined_call_operand.hbm [shape: f32[256,128], index: 3, kind: output, shape index: {}]
  %s4 = sld [smem:[#allocation0]]
  $region42: #{tpu_custom_call.1} parent=0
    _
  %s6 = ssub.s32 1, %s4
  %s7 = scalar_select 0, %s6, %s4
  $region1: #{tpu_custom_call.1} parent=0
    #allocation3 [shape = 'u8[131072]{0}', space=vmem, size = 0x20000, scoped, tag = 'input window, operand 0, single buffered']
    #allocation4 [shape = 's32[1]{0}', space=sflag, size = 0x4, scoped, tag = 'scoped memory for tpu_custom_call.1']
    #allocation5 [shape = 's32[1]{0}', space=sflag, size = 0x4, scoped, tag = 'scoped memory for tpu_custom_call.1']
    #allocation6 [shape = 'u8[524288]{0}', space=vmem, size = 0x80000, scoped, tag = 'input window, operand 1, single buffered']
    #allocation7 [shape = 's32[1]{0}', space=sflag, size = 0x4, scoped, tag = 'scoped memory for tpu_custom_call.1']
    #allocation8 [shape = 'u8[262144]{0}', space=vmem, size = 0x40000, scoped, tag = 'input window, operand 2, single buffered']
    #allocation9 [shape = 'u8[131072]{0}', space=vmem, size = 0x20000, scoped, tag = 'output window, operand 0, single buffered']
    %8 = vsyncpa [#allocation4], 0
    %9 = vsyncpa [#allocation7], 0
    %10 = vsyncpa [#allocation5], 0
    // Predicated region
    $region2: #{tpu_custom_call.1} parent=1 // pred_check
      _
    $region3: #{tpu_custom_call.1} parent=1 // pred_check_branch
      %12 = sbr.rel (0) target = $region5
    $region4: #{tpu_custom_call.1} parent=1 // pred_region
      %s14 = ssub.s32 4096, 4096
      %15 = vsyncadd [#allocation4], %s14
      %s16 = sshll.u32 [#allocation3], 4
      %s17 = int_to_ptr.vmem [resolvable:$true] %s16
      %22 = dma.hbm_to_vmem [thread:$0]  %s0, 4096, %s17, [#allocation4], 128, 128, 8
    $region5: #{tpu_custom_call.1} parent=1 // pred_fallthru
      _
    // Predicated region
    $region6: #{tpu_custom_call.1} parent=1 // pred_check
      _
    $region7: #{tpu_custom_call.1} parent=1 // pred_check_branch
      %24 = sbr.rel (0) target = $region9
    $region8: #{tpu_custom_call.1} parent=1 // pred_region
      %s26 = ssub.s32 16384, 16384
      %27 = vsyncadd [#allocation7], %s26
      %s28 = sshll.u32 [#allocation6], 4
      %s29 = int_to_ptr.vmem [resolvable:$true] %s28
      %34 = dma.hbm_to_vmem [thread:$0]  %s1, 16384, %s29, [#allocation7], 1024, 1024, 64
    $region9: #{tpu_custom_call.1} parent=1 // pred_fallthru
      _
    // Predicated region
    $region10: #{tpu_custom_call.1} parent=1 // pred_check
      _
    $region11: #{tpu_custom_call.1} parent=1 // pred_check_branch
      %36 = sbr.rel (0) target = $region13
    $region12: #{tpu_custom_call.1} parent=1 // pred_region
      %s38 = ssub.s32 8192, 8192
      %39 = vsyncadd [#allocation7], %s38
      %s40 = sshll.u32 [#allocation8], 4
      %s41 = int_to_ptr.vmem [resolvable:$true] %s40
      %46 = dma.hbm_to_vmem [thread:$0]  %s2, 8192, %s41, [#allocation7], 128, 128, 8
    $region13: #{tpu_custom_call.1} parent=1 // pred_fallthru
      _
    // Predicated region
    $region14: #{tpu_custom_call.1} parent=1 // pred_check
      _
    $region15: #{tpu_custom_call.1} parent=1 // pred_check_branch
      %48 = sbr.rel (0) target = $region17
    $region16: #{tpu_custom_call.1} parent=1 // pred_region
      %49 = dma.done [#allocation4], 4096
    $region17: #{tpu_custom_call.1} parent=1 // pred_fallthru
      _
    // Predicated region
    $region18: #{tpu_custom_call.1} parent=1 // pred_check
      _
    $region19: #{tpu_custom_call.1} parent=1 // pred_check_branch
      %51 = sbr.rel (0) target = $region21
    $region20: #{tpu_custom_call.1} parent=1 // pred_region
      %52 = dma.done [#allocation7], 16384
    $region21: #{tpu_custom_call.1} parent=1 // pred_fallthru
      _
    // Predicated region
    $region22: #{tpu_custom_call.1} parent=1 // pred_check
      _
    $region23: #{tpu_custom_call.1} parent=1 // pred_check_branch
      %54 = sbr.rel (0) target = $region25
    $region24: #{tpu_custom_call.1} parent=1 // pred_region
      %55 = dma.done [#allocation7], 8192
    $region25: #{tpu_custom_call.1} parent=1 // pred_fallthru
      _
    %p56 = scmp.eq.s32.totalorder 0, 0
    // Predicated region
    $region26: #{tpu_custom_call.1} parent=1 // pred_check
      %p57 = pneg %p56
    $region27: #{tpu_custom_call.1} parent=1 // pred_check_branch
      %59 = sbr.rel (%p57) target = $region29
    $region28: #{tpu_custom_call.1} parent=1 // pred_region
      %60 = vst [vmem:[#allocation2] sm:$0xff] 0.0
      %61 = vst [vmem:[#allocation2 + $0x8] sm:$0xff] 0.0
      %62 = vst [vmem:[#allocation2 + $0x10] sm:$0xff] 0.0
      %63 = vst [vmem:[#allocation2 + $0x18] sm:$0xff] 0.0
      %64 = vst [vmem:[#allocation2 + $0x20] sm:$0xff] 0.0
      %65 = vst [vmem:[#allocation2 + $0x28] sm:$0xff] 0.0
      %66 = vst [vmem:[#allocation2 + $0x30] sm:$0xff] 0.0
      %67 = vst [vmem:[#allocation2 + $0x38] sm:$0xff] 0.0
      %68 = vst [vmem:[#allocation2 + $0x40] sm:$0xff] 0.0
      %69 = vst [vmem:[#allocation2 + $0x48] sm:$0xff] 0.0
      %70 = vst [vmem:[#allocation2 + $0x50] sm:$0xff] 0.0
      %71 = vst [vmem:[#allocation2 + $0x58] sm:$0xff] 0.0
      %72 = vst [vmem:[#allocation2 + $0x60] sm:$0xff] 0.0
      %73 = vst [vmem:[#allocation2 + $0x68] sm:$0xff] 0.0
      %74 = vst [vmem:[#allocation2 + $0x70] sm:$0xff] 0.0
      %75 = vst [vmem:[#allocation2 + $0x78] sm:$0xff] 0.0
      %76 = vst [vmem:[#allocation2 + $0x80] sm:$0xff] 0.0
      %77 = vst [vmem:[#allocation2 + $0x88] sm:$0xff] 0.0
      %78 = vst [vmem:[#allocation2 + $0x90] sm:$0xff] 0.0
      %79 = vst [vmem:[#allocation2 + $0x98] sm:$0xff] 0.0
      %80 = vst [vmem:[#allocation2 + $0xa0] sm:$0xff] 0.0
      %81 = vst [vmem:[#allocation2 + $0xa8] sm:$0xff] 0.0
      %82 = vst [vmem:[#allocation2 + $0xb0] sm:$0xff] 0.0
      %83 = vst [vmem:[#allocation2 + $0xb8] sm:$0xff] 0.0
      %84 = vst [vmem:[#allocation2 + $0xc0] sm:$0xff] 0.0
      %85 = vst [vmem:[#allocation2 + $0xc8] sm:$0xff] 0.0
      %86 = vst [vmem:[#allocation2 + $0xd0] sm:$0xff] 0.0
      %87 = vst [vmem:[#allocation2 + $0xd8] sm:$0xff] 0.0
      %88 = vst [vmem:[#allocation2 + $0xe0] sm:$0xff] 0.0
      %89 = vst [vmem:[#allocation2 + $0xe8] sm:$0xff] 0.0
      %90 = vst [vmem:[#allocation2 + $0xf0] sm:$0xff] 0.0
      %91 = vst [vmem:[#allocation2 + $0xf8] sm:$0xff] 0.0
    $region29: #{tpu_custom_call.1} parent=1 // pred_fallthru
      _
    %v92 = vld [vmem:[#allocation3] sm:$0xff]
    %v93 = vld [vmem:[#allocation3 + $0x8] sm:$0xff]
    %v94 = vld [vmem:[#allocation3 + $0x10] sm:$0xff]
    %v95 = vld [vmem:[#allocation3 + $0x18] sm:$0xff]
    %v96 = vld [vmem:[#allocation3 + $0x20] sm:$0xff]
    %v97 = vld [vmem:[#allocation3 + $0x28] sm:$0xff]
    %v98 = vld [vmem:[#allocation3 + $0x30] sm:$0xff]
    %v99 = vld [vmem:[#allocation3 + $0x38] sm:$0xff]
    %v100 = vld [vmem:[#allocation3 + $0x40] sm:$0xff]
    %v101 = vld [vmem:[#allocation3 + $0x48] sm:$0xff]
    %v102 = vld [vmem:[#allocation3 + $0x50] sm:$0xff]
    %v103 = vld [vmem:[#allocation3 + $0x58] sm:$0xff]
    %v104 = vld [vmem:[#allocation3 + $0x60] sm:$0xff]
    %v105 = vld [vmem:[#allocation3 + $0x68] sm:$0xff]
    %v106 = vld [vmem:[#allocation3 + $0x70] sm:$0xff]
    %v107 = vld [vmem:[#allocation3 + $0x78] sm:$0xff]
    %v108 = vld [vmem:[#allocation3 + $0x80] sm:$0xff]
    %v109 = vld [vmem:[#allocation3 + $0x88] sm:$0xff]
    %v110 = vld [vmem:[#allocation3 + $0x90] sm:$0xff]
    %v111 = vld [vmem:[#allocation3 + $0x98] sm:$0xff]
    %v112 = vld [vmem:[#allocation3 + $0xa0] sm:$0xff]
    %v113 = vld [vmem:[#allocation3 + $0xa8] sm:$0xff]
    %v114 = vld [vmem:[#allocation3 + $0xb0] sm:$0xff]
    %v115 = vld [vmem:[#allocation3 + $0xb8] sm:$0xff]
    %v116 = vld [vmem:[#allocation3 + $0xc0] sm:$0xff]
    %v117 = vld [vmem:[#allocation3 + $0xc8] sm:$0xff]
    %v118 = vld [vmem:[#allocation3 + $0xd0] sm:$0xff]
    %v119 = vld [vmem:[#allocation3 + $0xd8] sm:$0xff]
    %v120 = vld [vmem:[#allocation3 + $0xe0] sm:$0xff]
    %v121 = vld [vmem:[#allocation3 + $0xe8] sm:$0xff]
    %v122 = vld [vmem:[#allocation3 + $0xf0] sm:$0xff]
    %v123 = vld [vmem:[#allocation3 + $0xf8] sm:$0xff]
    %v124 = vld [vmem:[#allocation6] sm:$0xff]
    %v125 = vld [vmem:[#allocation6 + $0x8] sm:$0xff]
    %v126 = vld [vmem:[#allocation6 + $0x10] sm:$0xff]
    %v127 = vld [vmem:[#allocation6 + $0x18] sm:$0xff]
    %v128 = vld [vmem:[#allocation6 + $0x20] sm:$0xff]
    %v129 = vld [vmem:[#allocation6 + $0x28] sm:$0xff]
    %v130 = vld [vmem:[#allocation6 + $0x30] sm:$0xff]
    %v131 = vld [vmem:[#allocation6 + $0x38] sm:$0xff]
    %v132 = vld [vmem:[#allocation6 + $0x40] sm:$0xff]
    %v133 = vld [vmem:[#allocation6 + $0x48] sm:$0xff]
    %v134 = vld [vmem:[#allocation6 + $0x50] sm:$0xff]
    %v135 = vld [vmem:[#allocation6 + $0x58] sm:$0xff]
    %v136 = vld [vmem:[#allocation6 + $0x60] sm:$0xff]
    %v137 = vld [vmem:[#allocation6 + $0x68] sm:$0xff]
    %v138 = vld [vmem:[#allocation6 + $0x70] sm:$0xff]
    %v139 = vld [vmem:[#allocation6 + $0x78] sm:$0xff]
    %v140 = vld [vmem:[#allocation6 + $0x80] sm:$0xff]
    %v141 = vld [vmem:[#allocation6 + $0x88] sm:$0xff]
    %v142 = vld [vmem:[#allocation6 + $0x90] sm:$0xff]
    %v143 = vld [vmem:[#allocation6 + $0x98] sm:$0xff]
    %v144 = vld [vmem:[#allocation6 + $0xa0] sm:$0xff]
    %v145 = vld [vmem:[#allocation6 + $0xa8] sm:$0xff]
    %v146 = vld [vmem:[#allocation6 + $0xb0] sm:$0xff]
    %v147 = vld [vmem:[#allocation6 + $0xb8] sm:$0xff]
    %v148 = vld [vmem:[#allocation6 + $0xc0] sm:$0xff]
    %v149 = vld [vmem:[#allocation6 + $0xc8] sm:$0xff]
    %v150 = vld [vmem:[#allocation6 + $0xd0] sm:$0xff]
    %v151 = vld [vmem:[#allocation6 + $0xd8] sm:$0xff]
    %v152 = vld [vmem:[#allocation6 + $0xe0] sm:$0xff]
    %v153 = vld [vmem:[#allocation6 + $0xe8] sm:$0xff]
    %v154 = vld [vmem:[#allocation6 + $0xf0] sm:$0xff]
    %v155 = vld [vmem:[#allocation6 + $0xf8] sm:$0xff]
    %v156 = vld [vmem:[#allocation6 + $0x100] sm:$0xff]
    %v157 = vld [vmem:[#allocation6 + $0x108] sm:$0xff]
    %v158 = vld [vmem:[#allocation6 + $0x110] sm:$0xff]
    %v159 = vld [vmem:[#allocation6 + $0x118] sm:$0xff]
    %v160 = vld [vmem:[#allocation6 + $0x120] sm:$0xff]
    %v161 = vld [vmem:[#allocation6 + $0x128] sm:$0xff]
    %v162 = vld [vmem:[#allocation6 + $0x130] sm:$0xff]
    %v163 = vld [vmem:[#allocation6 + $0x138] sm:$0xff]
    %v164 = vld [vmem:[#allocation6 + $0x140] sm:$0xff]
    %v165 = vld [vmem:[#allocation6 + $0x148] sm:$0xff]
    %v166 = vld [vmem:[#allocation6 + $0x150] sm:$0xff]
    %v167 = vld [vmem:[#allocation6 + $0x158] sm:$0xff]
    %v168 = vld [vmem:[#allocation6 + $0x160] sm:$0xff]
    %v169 = vld [vmem:[#allocation6 + $0x168] sm:$0xff]
    %v170 = vld [vmem:[#allocation6 + $0x170] sm:$0xff]
    %v171 = vld [vmem:[#allocation6 + $0x178] sm:$0xff]
    %v172 = vld [vmem:[#allocation6 + $0x180] sm:$0xff]
    %v173 = vld [vmem:[#allocation6 + $0x188] sm:$0xff]
    %v174 = vld [vmem:[#allocation6 + $0x190] sm:$0xff]
    %v175 = vld [vmem:[#allocation6 + $0x198] sm:$0xff]
    %v176 = vld [vmem:[#allocation6 + $0x1a0] sm:$0xff]
    %v177 = vld [vmem:[#allocation6 + $0x1a8] sm:$0xff]
    %v178 = vld [vmem:[#allocation6 + $0x1b0] sm:$0xff]
    %v179 = vld [vmem:[#allocation6 + $0x1b8] sm:$0xff]
    %v180 = vld [vmem:[#allocation6 + $0x1c0] sm:$0xff]
    %v181 = vld [vmem:[#allocation6 + $0x1c8] sm:$0xff]
    %v182 = vld [vmem:[#allocation6 + $0x1d0] sm:$0xff]
    %v183 = vld [vmem:[#allocation6 + $0x1d8] sm:$0xff]
    %v184 = vld [vmem:[#allocation6 + $0x1e0] sm:$0xff]
    %v185 = vld [vmem:[#allocation6 + $0x1e8] sm:$0xff]
    %v186 = vld [vmem:[#allocation6 + $0x1f0] sm:$0xff]
    %v187 = vld [vmem:[#allocation6 + $0x1f8] sm:$0xff]
    %v188 = vld [vmem:[#allocation6 + $0x200] sm:$0xff]
    %v189 = vld [vmem:[#allocation6 + $0x208] sm:$0xff]
    %v190 = vld [vmem:[#allocation6 + $0x210] sm:$0xff]
    %v191 = vld [vmem:[#allocation6 + $0x218] sm:$0xff]
    %v192 = vld [vmem:[#allocation6 + $0x220] sm:$0xff]
    %v193 = vld [vmem:[#allocation6 + $0x228] sm:$0xff]
    %v194 = vld [vmem:[#allocation6 + $0x230] sm:$0xff]
    %v195 = vld [vmem:[#allocation6 + $0x238] sm:$0xff]
    %v196 = vld [vmem:[#allocation6 + $0x240] sm:$0xff]
    %v197 = vld [vmem:[#allocation6 + $0x248] sm:$0xff]
    %v198 = vld [vmem:[#allocation6 + $0x250] sm:$0xff]
    %v199 = vld [vmem:[#allocation6 + $0x258] sm:$0xff]
    %v200 = vld [vmem:[#allocation6 + $0x260] sm:$0xff]
    %v201 = vld [vmem:[#allocation6 + $0x268] sm:$0xff]
    %v202 = vld [vmem:[#allocation6 + $0x270] sm:$0xff]
    %v203 = vld [vmem:[#allocation6 + $0x278] sm:$0xff]
    %v204 = vld [vmem:[#allocation6 + $0x280] sm:$0xff]
    %v205 = vld [vmem:[#allocation6 + $0x288] sm:$0xff]
    %v206 = vld [vmem:[#allocation6 + $0x290] sm:$0xff]
    %v207 = vld [vmem:[#allocation6 + $0x298] sm:$0xff]
    %v208 = vld [vmem:[#allocation6 + $0x2a0] sm:$0xff]
    %v209 = vld [vmem:[#allocation6 + $0x2a8] sm:$0xff]
    %v210 = vld [vmem:[#allocation6 + $0x2b0] sm:$0xff]
    %v211 = vld [vmem:[#allocation6 + $0x2b8] sm:$0xff]
    %v212 = vld [vmem:[#allocation6 + $0x2c0] sm:$0xff]
    %v213 = vld [vmem:[#allocation6 + $0x2c8] sm:$0xff]
    %v214 = vld [vmem:[#allocation6 + $0x2d0] sm:$0xff]
    %v215 = vld [vmem:[#allocation6 + $0x2d8] sm:$0xff]
    %v216 = vld [vmem:[#allocation6 + $0x2e0] sm:$0xff]
    %v217 = vld [vmem:[#allocation6 + $0x2e8] sm:$0xff]
    %v218 = vld [vmem:[#allocation6 + $0x2f0] sm:$0xff]
    %v219 = vld [vmem:[#allocation6 + $0x2f8] sm:$0xff]
    %v220 = vld [vmem:[#allocation6 + $0x300] sm:$0xff]
    %v221 = vld [vmem:[#allocation6 + $0x308] sm:$0xff]
    %v222 = vld [vmem:[#allocation6 + $0x310] sm:$0xff]
    %v223 = vld [vmem:[#allocation6 + $0x318] sm:$0xff]
    %v224 = vld [vmem:[#allocation6 + $0x320] sm:$0xff]
    %v225 = vld [vmem:[#allocation6 + $0x328] sm:$0xff]
    %v226 = vld [vmem:[#allocation6 + $0x330] sm:$0xff]
    %v227 = vld [vmem:[#allocation6 + $0x338] sm:$0xff]
    %v228 = vld [vmem:[#allocation6 + $0x340] sm:$0xff]
    %v229 = vld [vmem:[#allocation6 + $0x348] sm:$0xff]
    %v230 = vld [vmem:[#allocation6 + $0x350] sm:$0xff]
    %v231 = vld [vmem:[#allocation6 + $0x358] sm:$0xff]
    %v232 = vld [vmem:[#allocation6 + $0x360] sm:$0xff]
    %v233 = vld [vmem:[#allocation6 + $0x368] sm:$0xff]
    %v234 = vld [vmem:[#allocation6 + $0x370] sm:$0xff]
    %v235 = vld [vmem:[#allocation6 + $0x378] sm:$0xff]
    %v236 = vld [vmem:[#allocation6 + $0x380] sm:$0xff]
    %v237 = vld [vmem:[#allocation6 + $0x388] sm:$0xff]
    %v238 = vld [vmem:[#allocation6 + $0x390] sm:$0xff]
    %v239 = vld [vmem:[#allocation6 + $0x398] sm:$0xff]
    %v240 = vld [vmem:[#allocation6 + $0x3a0] sm:$0xff]
    %v241 = vld [vmem:[#allocation6 + $0x3a8] sm:$0xff]
    %v242 = vld [vmem:[#allocation6 + $0x3b0] sm:$0xff]
    %v243 = vld [vmem:[#allocation6 + $0x3b8] sm:$0xff]
    %v244 = vld [vmem:[#allocation6 + $0x3c0] sm:$0xff]
    %v245 = vld [vmem:[#allocation6 + $0x3c8] sm:$0xff]
    %v246 = vld [vmem:[#allocation6 + $0x3d0] sm:$0xff]
    %v247 = vld [vmem:[#allocation6 + $0x3d8] sm:$0xff]
    %v248 = vld [vmem:[#allocation6 + $0x3e0] sm:$0xff]
    %v249 = vld [vmem:[#allocation6 + $0x3e8] sm:$0xff]
    %v250 = vld [vmem:[#allocation6 + $0x3f0] sm:$0xff]
    %v251 = vld [vmem:[#allocation6 + $0x3f8] sm:$0xff]
    %252 = vmatprep.subr.mxu0 %v125
    %253 = vmatpush1.msra.mxu0 %v124
    %254 = vmatprep.subr.mxu0 %v133
    %255 = vmatpush1.msra.mxu0 %v132
    %256 = vmatprep.subr.mxu0 %v141
    %257 = vmatpush1.msra.mxu0 %v140
    %258 = vmatprep.subr.mxu0 %v149
    %259 = vmatpush1.msra.mxu0 %v148
    %260 = vmatprep.subr.mxu0 %v157
    %261 = vmatpush1.msra.mxu0 %v156
    %262 = vmatprep.subr.mxu0 %v165
    %263 = vmatpush1.msra.mxu0 %v164
    %264 = vmatprep.subr.mxu0 %v173
    %265 = vmatpush1.msra.mxu0 %v172
    %266 = vmatprep.subr.mxu0 %v181
    %267 = vmatpush1.msra.mxu0 %v180
    %268 = vmatprep.subr.mxu0 %v189
    %269 = vmatpush1.msra.mxu0 %v188
    %270 = vmatprep.subr.mxu0 %v197
    %271 = vmatpush1.msra.mxu0 %v196
    %272 = vmatprep.subr.mxu0 %v205
    %273 = vmatpush1.msra.mxu0 %v204
    %274 = vmatprep.subr.mxu0 %v213
    %275 = vmatpush1.msra.mxu0 %v212
    %276 = vmatprep.subr.mxu0 %v221
    %277 = vmatpush1.msra.mxu0 %v220
    %278 = vmatprep.subr.mxu0 %v229
    %279 = vmatpush1.msra.mxu0 %v228
    %280 = vmatprep.subr.mxu0 %v237
    %281 = vmatpush1.msra.mxu0 %v236
    %282 = vmatprep.subr.mxu0 %v245
    %283 = vmatpush1.msra.mxu0 %v244
    %284 = vmatprep.subr.mxu0 0.0
    %285 = vmatpush1.msra.mxu0 0.0
    %286 = vmatprep.subr.mxu0 0.0
    %287 = vmatpush1.msra.mxu0 0.0
    %288 = vmatprep.subr.mxu0 0.0
    %289 = vmatpush1.msra.mxu0 0.0
    %290 = vmatprep.subr.mxu0 0.0
    %291 = vmatpush1.msra.mxu0 0.0
    %292 = vmatprep.subr.mxu0 0.0
    %293 = vmatpush1.msra.mxu0 0.0
    %294 = vmatprep.subr.mxu0 0.0
    %295 = vmatpush1.msra.mxu0 0.0
    %296 = vmatprep.subr.mxu0 0.0
    %297 = vmatpush1.msra.mxu0 0.0
    %298 = vmatprep.subr.mxu0 0.0
    %299 = vmatpush1.msra.mxu0 0.0
    %300 = vmatprep.subr.mxu0 0.0
    %301 = vmatpush1.msra.mxu0 0.0
    %302 = vmatprep.subr.mxu0 0.0
    %303 = vmatpush1.msra.mxu0 0.0
    %304 = vmatprep.subr.mxu0 0.0
    %305 = vmatpush1.msra.mxu0 0.0
    %306 = vmatprep.subr.mxu0 0.0
    %307 = vmatpush1.msra.mxu0 0.0
    %308 = vmatprep.subr.mxu0 0.0
    %309 = vmatpush1.msra.mxu0 0.0
    %310 = vmatprep.subr.mxu0 0.0
    %311 = vmatpush1.msra.mxu0 0.0
    %312 = vmatprep.subr.mxu0 0.0
    %313 = vmatpush1.msra.mxu0 0.0
    %314 = vmatprep.subr.mxu0 0.0
    %315 = vmatpush1.msra.mxu0 0.0
    %316 = vmatprep.mubr.f32.mxu0 0.0
    %317 = vmatmul.mubr.f32.gmra.mrb[0].mxu0 %v92
    %v318 = vpop.f32.mrb[0].mxu0
    %v319 = vadd.f32 0.0, %v318
    %v320 = vpop.f32.mrb[0].mxu0
    %v321 = vadd.f32 0.0, %v320
    %322 = vmatprep.mubr.f32.mxu0 0.0
    %323 = vmatmul.mubr.f32.gmra.mrb[0].mxu0 %v93
    %v324 = vpop.f32.mrb[0].mxu0
    %v325 = vadd.f32 0.0, %v324
    %v326 = vpop.f32.mrb[0].mxu0
    %v327 = vadd.f32 0.0, %v326
    %328 = vmatprep.mubr.f32.mxu0 0.0
    %329 = vmatmul.mubr.f32.gmra.mrb[0].mxu0 %v94
    %v330 = vpop.f32.mrb[0].mxu0
    %v331 = vadd.f32 0.0, %v330
    %v332 = vpop.f32.mrb[0].mxu0
    %v333 = vadd.f32 0.0, %v332
    %334 = vmatprep.mubr.f32.mxu0 0.0
    %335 = vmatmul.mubr.f32.gmra.mrb[0].mxu0 %v95
    %v336 = vpop.f32.mrb[0].mxu0
    %v337 = vadd.f32 0.0, %v336
    %v338 = vpop.f32.mrb[0].mxu0
    %v339 = vadd.f32 0.0, %v338
    %340 = vmatprep.mubr.f32.mxu0 0.0
    %341 = vmatmul.mubr.f32.gmra.mrb[0].mxu0 %v96
    %v342 = vpop.f32.mrb[0].mxu0
    %v343 = vadd.f32 0.0, %v342
    %v344 = vpop.f32.mrb[0].mxu0
    %v345 = vadd.f32 0.0, %v344
    %346 = vmatprep.mubr.f32.mxu0 0.0
    %347 = vmatmul.mubr.f32.gmra.mrb[0].mxu0 %v97
    %v348 = vpop.f32.mrb[0].mxu0
    %v349 = vadd.f32 0.0, %v348
    %v350 = vpop.f32.mrb[0].mxu0
    %v351 = vadd.f32 0.0, %v350
    %352 = vmatprep.mubr.f32.mxu0 0.0
    %353 = vmatmul.mubr.f32.gmra.mrb[0].mxu0 %v98
    %v354 = vpop.f32.mrb[0].mxu0
    %v355 = vadd.f32 0.0, %v354
    %v356 = vpop.f32.mrb[0].mxu0
    %v357 = vadd.f32 0.0, %v356
    %358 = vmatprep.mubr.f32.mxu0 0.0
    %359 = vmatmul.mubr.f32.gmra.mrb[0].mxu0 %v99
    %v360 = vpop.f32.mrb[0].mxu0
    %v361 = vadd.f32 0.0, %v360
    %v362 = vpop.f32.mrb[0].mxu0
    %v363 = vadd.f32 0.0, %v362
    %364 = vmatprep.mubr.f32.mxu0 0.0
    %365 = vmatmul.mubr.f32.gmra.mrb[0].mxu0 %v100
    %v366 = vpop.f32.mrb[0].mxu0
    %v367 = vadd.f32 0.0, %v366
    %v368 = vpop.f32.mrb[0].mxu0
    %v369 = vadd.f32 0.0, %v368
    %370 = vmatprep.mubr.f32.mxu0 0.0
    %371 = vmatmul.mubr.f32.gmra.mrb[0].mxu0 %v101
    %v372 = vpop.f32.mrb[0].mxu0
    %v373 = vadd.f32 0.0, %v372
    %v374 = vpop.f32.mrb[0].mxu0
    %v375 = vadd.f32 0.0, %v374
    %376 = vmatprep.mubr.f32.mxu0 0.0
    %377 = vmatmul.mubr.f32.gmra.mrb[0].mxu0 %v102
    %v378 = vpop.f32.mrb[0].mxu0
    %v379 = vadd.f32 0.0, %v378
    %v380 = vpop.f32.mrb[0].mxu0
    %v381 = vadd.f32 0.0, %v380
    %382 = vmatprep.mubr.f32.mxu0 0.0
    %383 = vmatmul.mubr.f32.gmra.mrb[0].mxu0 %v103
    %v384 = vpop.f32.mrb[0].mxu0
    %v385 = vadd.f32 0.0, %v384
    %v386 = vpop.f32.mrb[0].mxu0
    %v387 = vadd.f32 0.0, %v386
    %388 = vmatprep.mubr.f32.mxu0 0.0
    %389 = vmatmul.mubr.f32.gmra.mrb[0].mxu0 %v104
    %v390 = vpop.f32.mrb[0].mxu0
    %v391 = vadd.f32 0.0, %v390
    %v392 = vpop.f32.mrb[0].mxu0
    %v393 = vadd.f32 0.0, %v392
    %394 = vmatprep.mubr.f32.mxu0 0.0
    %395 = vmatmul.mubr.f32.gmra.mrb[0].mxu0 %v105
    %v396 = vpop.f32.mrb[0].mxu0
    %v397 = vadd.f32 0.0, %v396
    %v398 = vpop.f32.mrb[0].mxu0
    %v399 = vadd.f32 0.0, %v398
    %400 = vmatprep.mubr.f32.mxu0 0.0
    %401 = vmatmul.mubr.f32.gmra.mrb[0].mxu0 %v106
    %v402 = vpop.f32.mrb[0].mxu0
    %v403 = vadd.f32 0.0, %v402
    %v404 = vpop.f32.mrb[0].mxu0
    %v405 = vadd.f32 0.0, %v404
    %406 = vmatprep.mubr.f32.mxu0 0.0
    %407 = vmatmul.mubr.f32.gmra.mrb[0].mxu0 %v107
    %v408 = vpop.f32.mrb[0].mxu0
    %v409 = vadd.f32 0.0, %v408
    %v410 = vpop.f32.mrb[0].mxu0
    %v411 = vadd.f32 0.0, %v410
    %412 = vmatprep.mubr.f32.mxu0 0.0
    %413 = vmatmul.mubr.f32.gmra.mrb[0].mxu0 %v108
    %v414 = vpop.f32.mrb[0].mxu0
    %v415 = vadd.f32 0.0, %v414
    %v416 = vpop.f32.mrb[0].mxu0
    %v417 = vadd.f32 0.0, %v416
    %418 = vmatprep.mubr.f32.mxu0 0.0
    %419 = vmatmul.mubr.f32.gmra.mrb[0].mxu0 %v109
    %v420 = vpop.f32.mrb[0].mxu0
    %v421 = vadd.f32 0.0, %v420
    %v422 = vpop.f32.mrb[0].mxu0
    %v423 = vadd.f32 0.0, %v422
    %424 = vmatprep.mubr.f32.mxu0 0.0
    %425 = vmatmul.mubr.f32.gmra.mrb[0].mxu0 %v110
    %v426 = vpop.f32.mrb[0].mxu0
    %v427 = vadd.f32 0.0, %v426
    %v428 = vpop.f32.mrb[0].mxu0
    %v429 = vadd.f32 0.0, %v428
    %430 = vmatprep.mubr.f32.mxu0 0.0
    %431 = vmatmul.mubr.f32.gmra.mrb[0].mxu0 %v111
    %v432 = vpop.f32.mrb[0].mxu0
    %v433 = vadd.f32 0.0, %v432
    %v434 = vpop.f32.mrb[0].mxu0
    %v435 = vadd.f32 0.0, %v434
    %436 = vmatprep.mubr.f32.mxu0 0.0
    %437 = vmatmul.mubr.f32.gmra.mrb[0].mxu0 %v112
    %v438 = vpop.f32.mrb[0].mxu0
    %v439 = vadd.f32 0.0, %v438
    %v440 = vpop.f32.mrb[0].mxu0
    %v441 = vadd.f32 0.0, %v440
    %442 = vmatprep.mubr.f32.mxu0 0.0
    %443 = vmatmul.mubr.f32.gmra.mrb[0].mxu0 %v113
    %v444 = vpop.f32.mrb[0].mxu0
    %v445 = vadd.f32 0.0, %v444
    %v446 = vpop.f32.mrb[0].mxu0
    %v447 = vadd.f32 0.0, %v446
    %448 = vmatprep.mubr.f32.mxu0 0.0
    %449 = vmatmul.mubr.f32.gmra.mrb[0].mxu0 %v114
    %v450 = vpop.f32.mrb[0].mxu0
    %v451 = vadd.f32 0.0, %v450
    %v452 = vpop.f32.mrb[0].mxu0
    %v453 = vadd.f32 0.0, %v452
    %454 = vmatprep.mubr.f32.mxu0 0.0
    %455 = vmatmul.mubr.f32.gmra.mrb[0].mxu0 %v115
    %v456 = vpop.f32.mrb[0].mxu0
    %v457 = vadd.f32 0.0, %v456
    %v458 = vpop.f32.mrb[0].mxu0
    %v459 = vadd.f32 0.0, %v458
    %460 = vmatprep.mubr.f32.mxu0 0.0
    %461 = vmatmul.mubr.f32.gmra.mrb[0].mxu0 %v116
    %v462 = vpop.f32.mrb[0].mxu0
    %v463 = vadd.f32 0.0, %v462
    %v464 = vpop.f32.mrb[0].mxu0
    %v465 = vadd.f32 0.0, %v464
    %466 = vmatprep.mubr.f32.mxu0 0.0
    %467 = vmatmul.mubr.f32.gmra.mrb[0].mxu0 %v117
    %v468 = vpop.f32.mrb[0].mxu0
    %v469 = vadd.f32 0.0, %v468
    %v470 = vpop.f32.mrb[0].mxu0
    %v471 = vadd.f32 0.0, %v470
    %472 = vmatprep.mubr.f32.mxu0 0.0
    %473 = vmatmul.mubr.f32.gmra.mrb[0].mxu0 %v118
    %v474 = vpop.f32.mrb[0].mxu0
    %v475 = vadd.f32 0.0, %v474
    %v476 = vpop.f32.mrb[0].mxu0
    %v477 = vadd.f32 0.0, %v476
    %478 = vmatprep.mubr.f32.mxu0 0.0
    %479 = vmatmul.mubr.f32.gmra.mrb[0].mxu0 %v119
    %v480 = vpop.f32.mrb[0].mxu0
    %v481 = vadd.f32 0.0, %v480
    %v482 = vpop.f32.mrb[0].mxu0
    %v483 = vadd.f32 0.0, %v482
    %484 = vmatprep.mubr.f32.mxu0 0.0
    %485 = vmatmul.mubr.f32.gmra.mrb[0].mxu0 %v120
    %v486 = vpop.f32.mrb[0].mxu0
    %v487 = vadd.f32 0.0, %v486
    %v488 = vpop.f32.mrb[0].mxu0
    %v489 = vadd.f32 0.0, %v488
    %490 = vmatprep.mubr.f32.mxu0 0.0
    %491 = vmatmul.mubr.f32.gmra.mrb[0].mxu0 %v121
    %v492 = vpop.f32.mrb[0].mxu0
    %v493 = vadd.f32 0.0, %v492
    %v494 = vpop.f32.mrb[0].mxu0
    %v495 = vadd.f32 0.0, %v494
    %496 = vmatprep.mubr.f32.mxu0 0.0
    %497 = vmatmul.mubr.f32.gmra.mrb[0].mxu0 %v122
    %v498 = vpop.f32.mrb[0].mxu0
    %v499 = vadd.f32 0.0, %v498
    %v500 = vpop.f32.mrb[0].mxu0
    %v501 = vadd.f32 0.0, %v500
    %502 = vmatprep.mubr.f32.mxu0 0.0
    %503 = vmatmul.mubr.f32.gmra.mrb[0].mxu0 %v123
    %v504 = vpop.f32.mrb[0].mxu0
    %v505 = vadd.f32 0.0, %v504
    %v506 = vpop.f32.mrb[0].mxu0
    %v507 = vadd.f32 0.0, %v506
    %508 = vdwg.mxu0
    %509 = vmatprep.subr.mxu0 %v127
    %510 = vmatpush1.msra.mxu0 %v126
    %511 = vmatprep.subr.mxu0 %v135
    %512 = vmatpush1.msra.mxu0 %v134
    %513 = vmatprep.subr.mxu0 %v143
    %514 = vmatpush1.msra.mxu0 %v142
    %515 = vmatprep.subr.mxu0 %v151
    %516 = vmatpush1.msra.mxu0 %v150
    %517 = vmatprep.subr.mxu0 %v159
    %518 = vmatpush1.msra.mxu0 %v158
    %519 = vmatprep.subr.mxu0 %v167
    %520 = vmatpush1.msra.mxu0 %v166
    %521 = vmatprep.subr.mxu0 %v175
    %522 = vmatpush1.msra.mxu0 %v174
    %523 = vmatprep.subr.mxu0 %v183
    %524 = vmatpush1.msra.mxu0 %v182
    %525 = vmatprep.subr.mxu0 %v191
    %526 = vmatpush1.msra.mxu0 %v190
    %527 = vmatprep.subr.mxu0 %v199
    %528 = vmatpush1.msra.mxu0 %v198
    %529 = vmatprep.subr.mxu0 %v207
    %530 = vmatpush1.msra.mxu0 %v206
    %531 = vmatprep.subr.mxu0 %v215
    %532 = vmatpush1.msra.mxu0 %v214
    %533 = vmatprep.subr.mxu0 %v223
    %534 = vmatpush1.msra.mxu0 %v222
    %535 = vmatprep.subr.mxu0 %v231
    %536 = vmatpush1.msra.mxu0 %v230
    %537 = vmatprep.subr.mxu0 %v239
    %538 = vmatpush1.msra.mxu0 %v238
    %539 = vmatprep.subr.mxu0 %v247
    %540 = vmatpush1.msra.mxu0 %v246
    %541 = vmatprep.subr.mxu0 0.0
    %542 = vmatpush1.msra.mxu0 0.0
    %543 = vmatprep.subr.mxu0 0.0
    %544 = vmatpush1.msra.mxu0 0.0
    %545 = vmatprep.subr.mxu0 0.0
    %546 = vmatpush1.msra.mxu0 0.0
    %547 = vmatprep.subr.mxu0 0.0
    %548 = vmatpush1.msra.mxu0 0.0
    %549 = vmatprep.subr.mxu0 0.0
    %550 = vmatpush1.msra.mxu0 0.0
    %551 = vmatprep.subr.mxu0 0.0
    %552 = vmatpush1.msra.mxu0 0.0
    %553 = vmatprep.subr.mxu0 0.0
    %554 = vmatpush1.msra.mxu0 0.0
    %555 = vmatprep.subr.mxu0 0.0
    %556 = vmatpush1.msra.mxu0 0.0
    %557 = vmatprep.subr.mxu0 0.0
    %558 = vmatpush1.msra.mxu0 0.0
    %559 = vmatprep.subr.mxu0 0.0
    %560 = vmatpush1.msra.mxu0 0.0
    %561 = vmatprep.subr.mxu0 0.0
    %562 = vmatpush1.msra.mxu0 0.0
    %563 = vmatprep.subr.mxu0 0.0
    %564 = vmatpush1.msra.mxu0 0.0
    %565 = vmatprep.subr.mxu0 0.0
    %566 = vmatpush1.msra.mxu0 0.0
    %567 = vmatprep.subr.mxu0 0.0
    %568 = vmatpush1.msra.mxu0 0.0
    %569 = vmatprep.subr.mxu0 0.0
    %570 = vmatpush1.msra.mxu0 0.0
    %571 = vmatprep.subr.mxu0 0.0
    %572 = vmatpush1.msra.mxu0 0.0
    %573 = vmatprep.mubr.f32.mxu0 0.0
    %574 = vmatmul.mubr.f32.gmra.mrb[0].mxu0 %v92
    %v575 = vpop.f32.mrb[0].mxu0
    %v576 = vadd.f32 0.0, %v575
    %v577 = vpop.f32.mrb[0].mxu0
    %v578 = vadd.f32 0.0, %v577
    %579 = vmatprep.mubr.f32.mxu0 0.0
    %580 = vmatmul.mubr.f32.gmra.mrb[0].mxu0 %v93
    %v581 = vpop.f32.mrb[0].mxu0
    %v582 = vadd.f32 0.0, %v581
    %v583 = vpop.f32.mrb[0].mxu0
    %v584 = vadd.f32 0.0, %v583
    %585 = vmatprep.mubr.f32.mxu0 0.0
    %586 = vmatmul.mubr.f32.gmra.mrb[0].mxu0 %v94
    %v587 = vpop.f32.mrb[0].mxu0
    %v588 = vadd.f32 0.0, %v587
    %v589 = vpop.f32.mrb[0].mxu0
    %v590 = vadd.f32 0.0, %v589
    %591 = vmatprep.mubr.f32.mxu0 0.0
    %592 = vmatmul.mubr.f32.gmra.mrb[0].mxu0 %v95
    %v593 = vpop.f32.mrb[0].mxu0
    %v594 = vadd.f32 0.0, %v593
    %v595 = vpop.f32.mrb[0].mxu0
    %v596 = vadd.f32 0.0, %v595
    %597 = vmatprep.mubr.f32.mxu0 0.0
    %598 = vmatmul.mubr.f32.gmra.mrb[0].mxu0 %v96
    %v599 = vpop.f32.mrb[0].mxu0
    %v600 = vadd.f32 0.0, %v599
    %v601 = vpop.f32.mrb[0].mxu0
    %v602 = vadd.f32 0.0, %v601
    %603 = vmatprep.mubr.f32.mxu0 0.0
    %604 = vmatmul.mubr.f32.gmra.mrb[0].mxu0 %v97
    %v605 = vpop.f32.mrb[0].mxu0
    %v606 = vadd.f32 0.0, %v605
    %v607 = vpop.f32.mrb[0].mxu0
    %v608 = vadd.f32 0.0, %v607
    %609 = vmatprep.mubr.f32.mxu0 0.0
    %610 = vmatmul.mubr.f32.gmra.mrb[0].mxu0 %v98
    %v611 = vpop.f32.mrb[0].mxu0
    %v612 = vadd.f32 0.0, %v611
    %v613 = vpop.f32.mrb[0].mxu0
    %v614 = vadd.f32 0.0, %v613
    %615 = vmatprep.mubr.f32.mxu0 0.0
    %616 = vmatmul.mubr.f32.gmra.mrb[0].mxu0 %v99
    %v617 = vpop.f32.mrb[0].mxu0
    %v618 = vadd.f32 0.0, %v617
    %v619 = vpop.f32.mrb[0].mxu0
    %v620 = vadd.f32 0.0, %v619
    %621 = vmatprep.mubr.f32.mxu0 0.0
    %622 = vmatmul.mubr.f32.gmra.mrb[0].mxu0 %v100
    %v623 = vpop.f32.mrb[0].mxu0
    %v624 = vadd.f32 0.0, %v623
    %v625 = vpop.f32.mrb[0].mxu0
    %v626 = vadd.f32 0.0, %v625
    %627 = vmatprep.mubr.f32.mxu0 0.0
    %628 = vmatmul.mubr.f32.gmra.mrb[0].mxu0 %v101
    %v629 = vpop.f32.mrb[0].mxu0
    %v630 = vadd.f32 0.0, %v629
    %v631 = vpop.f32.mrb[0].mxu0
    %v632 = vadd.f32 0.0, %v631
    %633 = vmatprep.mubr.f32.mxu0 0.0
    %634 = vmatmul.mubr.f32.gmra.mrb[0].mxu0 %v102
    %v635 = vpop.f32.mrb[0].mxu0
    %v636 = vadd.f32 0.0, %v635
    %v637 = vpop.f32.mrb[0].mxu0
    %v638 = vadd.f32 0.0, %v637
    %639 = vmatprep.mubr.f32.mxu0 0.0
    %640 = vmatmul.mubr.f32.gmra.mrb[0].mxu0 %v103
    %v641 = vpop.f32.mrb[0].mxu0
    %v642 = vadd.f32 0.0, %v641
    %v643 = vpop.f32.mrb[0].mxu0
    %v644 = vadd.f32 0.0, %v643
    %645 = vmatprep.mubr.f32.mxu0 0.0
    %646 = vmatmul.mubr.f32.gmra.mrb[0].mxu0 %v104
    %v647 = vpop.f32.mrb[0].mxu0
    %v648 = vadd.f32 0.0, %v647
    %v649 = vpop.f32.mrb[0].mxu0
    %v650 = vadd.f32 0.0, %v649
    %651 = vmatprep.mubr.f32.mxu0 0.0
    %652 = vmatmul.mubr.f32.gmra.mrb[0].mxu0 %v105
    %v653 = vpop.f32.mrb[0].mxu0
    %v654 = vadd.f32 0.0, %v653
    %v655 = vpop.f32.mrb[0].mxu0
    %v656 = vadd.f32 0.0, %v655
    %657 = vmatprep.mubr.f32.mxu0 0.0
    %658 = vmatmul.mubr.f32.gmra.mrb[0].mxu0 %v106
    %v659 = vpop.f32.mrb[0].mxu0
    %v660 = vadd.f32 0.0, %v659
    %v661 = vpop.f32.mrb[0].mxu0
    %v662 = vadd.f32 0.0, %v661
    %663 = vmatprep.mubr.f32.mxu0 0.0
    %664 = vmatmul.mubr.f32.gmra.mrb[0].mxu0 %v107
    %v665 = vpop.f32.mrb[0].mxu0
    %v666 = vadd.f32 0.0, %v665
    %v667 = vpop.f32.mrb[0].mxu0
    %v668 = vadd.f32 0.0, %v667
    %669 = vmatprep.mubr.f32.mxu0 0.0
    %670 = vmatmul.mubr.f32.gmra.mrb[0].mxu0 %v108
    %v671 = vpop.f32.mrb[0].mxu0
    %v672 = vadd.f32 0.0, %v671
    %v673 = vpop.f32.mrb[0].mxu0
    %v674 = vadd.f32 0.0, %v673
    %675 = vmatprep.mubr.f32.mxu0 0.0
    %676 = vmatmul.mubr.f32.gmra.mrb[0].mxu0 %v109
    %v677 = vpop.f32.mrb[0].mxu0
    %v678 = vadd.f32 0.0, %v677
    %v679 = vpop.f32.mrb[0].mxu0
    %v680 = vadd.f32 0.0, %v679
    %681 = vmatprep.mubr.f32.mxu0 0.0
    %682 = vmatmul.mubr.f32.gmra.mrb[0].mxu0 %v110
    %v683 = vpop.f32.mrb[0].mxu0
    %v684 = vadd.f32 0.0, %v683
    %v685 = vpop.f32.mrb[0].mxu0
    %v686 = vadd.f32 0.0, %v685
    %687 = vmatprep.mubr.f32.mxu0 0.0
    %688 = vmatmul.mubr.f32.gmra.mrb[0].mxu0 %v111
    %v689 = vpop.f32.mrb[0].mxu0
    %v690 = vadd.f32 0.0, %v689
    %v691 = vpop.f32.mrb[0].mxu0
    %v692 = vadd.f32 0.0, %v691
    %693 = vmatprep.mubr.f32.mxu0 0.0
    %694 = vmatmul.mubr.f32.gmra.mrb[0].mxu0 %v112
    %v695 = vpop.f32.mrb[0].mxu0
    %v696 = vadd.f32 0.0, %v695
    %v697 = vpop.f32.mrb[0].mxu0
    %v698 = vadd.f32 0.0, %v697
    %699 = vmatprep.mubr.f32.mxu0 0.0
    %700 = vmatmul.mubr.f32.gmra.mrb[0].mxu0 %v113
    %v701 = vpop.f32.mrb[0].mxu0
    %v702 = vadd.f32 0.0, %v701
    %v703 = vpop.f32.mrb[0].mxu0
    %v704 = vadd.f32 0.0, %v703
    %705 = vmatprep.mubr.f32.mxu0 0.0
    %706 = vmatmul.mubr.f32.gmra.mrb[0].mxu0 %v114
    %v707 = vpop.f32.mrb[0].mxu0
    %v708 = vadd.f32 0.0, %v707
    %v709 = vpop.f32.mrb[0].mxu0
    %v710 = vadd.f32 0.0, %v709
    %711 = vmatprep.mubr.f32.mxu0 0.0
    %712 = vmatmul.mubr.f32.gmra.mrb[0].mxu0 %v115
    %v713 = vpop.f32.mrb[0].mxu0
    %v714 = vadd.f32 0.0, %v713
    %v715 = vpop.f32.mrb[0].mxu0
    %v716 = vadd.f32 0.0, %v715
    %717 = vmatprep.mubr.f32.mxu0 0.0
    %718 = vmatmul.mubr.f32.gmra.mrb[0].mxu0 %v116
    %v719 = vpop.f32.mrb[0].mxu0
    %v720 = vadd.f32 0.0, %v719
    %v721 = vpop.f32.mrb[0].mxu0
    %v722 = vadd.f32 0.0, %v721
    %723 = vmatprep.mubr.f32.mxu0 0.0
    %724 = vmatmul.mubr.f32.gmra.mrb[0].mxu0 %v117
    %v725 = vpop.f32.mrb[0].mxu0
    %v726 = vadd.f32 0.0, %v725
    %v727 = vpop.f32.mrb[0].mxu0
    %v728 = vadd.f32 0.0, %v727
    %729 = vmatprep.mubr.f32.mxu0 0.0
    %730 = vmatmul.mubr.f32.gmra.mrb[0].mxu0 %v118
    %v731 = vpop.f32.mrb[0].mxu0
    %v732 = vadd.f32 0.0, %v731
    %v733 = vpop.f32.mrb[0].mxu0
    %v734 = vadd.f32 0.0, %v733
    %735 = vmatprep.mubr.f32.mxu0 0.0
    %736 = vmatmul.mubr.f32.gmra.mrb[0].mxu0 %v119
    %v737 = vpop.f32.mrb[0].mxu0
    %v738 = vadd.f32 0.0, %v737
    %v739 = vpop.f32.mrb[0].mxu0
    %v740 = vadd.f32 0.0, %v739
    %741 = vmatprep.mubr.f32.mxu0 0.0
    %742 = vmatmul.mubr.f32.gmra.mrb[0].mxu0 %v120
    %v743 = vpop.f32.mrb[0].mxu0
    %v744 = vadd.f32 0.0, %v743
    %v745 = vpop.f32.mrb[0].mxu0
    %v746 = vadd.f32 0.0, %v745
    %747 = vmatprep.mubr.f32.mxu0 0.0
    %748 = vmatmul.mubr.f32.gmra.mrb[0].mxu0 %v121
    %v749 = vpop.f32.mrb[0].mxu0
    %v750 = vadd.f32 0.0, %v749
    %v751 = vpop.f32.mrb[0].mxu0
    %v752 = vadd.f32 0.0, %v751
    %753 = vmatprep.mubr.f32.mxu0 0.0
    %754 = vmatmul.mubr.f32.gmra.mrb[0].mxu0 %v122
    %v755 = vpop.f32.mrb[0].mxu0
    %v756 = vadd.f32 0.0, %v755
    %v757 = vpop.f32.mrb[0].mxu0
    %v758 = vadd.f32 0.0, %v757
    %759 = vmatprep.mubr.f32.mxu0 0.0
    %760 = vmatmul.mubr.f32.gmra.mrb[0].mxu0 %v123
    %v761 = vpop.f32.mrb[0].mxu0
    %v762 = vadd.f32 0.0, %v761
    %v763 = vpop.f32.mrb[0].mxu0
    %v764 = vadd.f32 0.0, %v763
    %765 = vdwg.mxu0
    %766 = vmatprep.subr.mxu0 %v129
    %767 = vmatpush1.msra.mxu0 %v128
    %768 = vmatprep.subr.mxu0 %v137
    %769 = vmatpush1.msra.mxu0 %v136
    %770 = vmatprep.subr.mxu0 %v145
    %771 = vmatpush1.msra.mxu0 %v144
    %772 = vmatprep.subr.mxu0 %v153
    %773 = vmatpush1.msra.mxu0 %v152
    %774 = vmatprep.subr.mxu0 %v161
    %775 = vmatpush1.msra.mxu0 %v160
    %776 = vmatprep.subr.mxu0 %v169
    %777 = vmatpush1.msra.mxu0 %v168
    %778 = vmatprep.subr.mxu0 %v177
    %779 = vmatpush1.msra.mxu0 %v176
    %780 = vmatprep.subr.mxu0 %v185
    %781 = vmatpush1.msra.mxu0 %v184
    %782 = vmatprep.subr.mxu0 %v193
    %783 = vmatpush1.msra.mxu0 %v192
    %784 = vmatprep.subr.mxu0 %v201
    %785 = vmatpush1.msra.mxu0 %v200
    %786 = vmatprep.subr.mxu0 %v209
    %787 = vmatpush1.msra.mxu0 %v208
    %788 = vmatprep.subr.mxu0 %v217
    %789 = vmatpush1.msra.mxu0 %v216
    %790 = vmatprep.subr.mxu0 %v225
    %791 = vmatpush1.msra.mxu0 %v224
    %792 = vmatprep.subr.mxu0 %v233
    %793 = vmatpush1.msra.mxu0 %v232
    %794 = vmatprep.subr.mxu0 %v241
    %795 = vmatpush1.msra.mxu0 %v240
    %796 = vmatprep.subr.mxu0 %v249
    %797 = vmatpush1.msra.mxu0 %v248
    %798 = vmatprep.subr.mxu0 0.0
    %799 = vmatpush1.msra.mxu0 0.0
    %800 = vmatprep.subr.mxu0 0.0
    %801 = vmatpush1.msra.mxu0 0.0
    %802 = vmatprep.subr.mxu0 0.0
    %803 = vmatpush1.msra.mxu0 0.0
    %804 = vmatprep.subr.mxu0 0.0
    %805 = vmatpush1.msra.mxu0 0.0
    %806 = vmatprep.subr.mxu0 0.0
    %807 = vmatpush1.msra.mxu0 0.0
    %808 = vmatprep.subr.mxu0 0.0
    %809 = vmatpush1.msra.mxu0 0.0
    %810 = vmatprep.subr.mxu0 0.0
    %811 = vmatpush1.msra.mxu0 0.0
    %812 = vmatprep.subr.mxu0 0.0
    %813 = vmatpush1.msra.mxu0 0.0
    %814 = vmatprep.subr.mxu0 0.0
    %815 = vmatpush1.msra.mxu0 0.0
    %816 = vmatprep.subr.mxu0 0.0
    %817 = vmatpush1.msra.mxu0 0.0
    %818 = vmatprep.subr.mxu0 0.0
    %819 = vmatpush1.msra.mxu0 0.0
    %820 = vmatprep.subr.mxu0 0.0
    %821 = vmatpush1.msra.mxu0 0.0
    %822 = vmatprep.subr.mxu0 0.0
    %823 = vmatpush1.msra.mxu0 0.0
    %824 = vmatprep.subr.mxu0 0.0
    %825 = vmatpush1.msra.mxu0 0.0
    %826 = vmatprep.subr.mxu0 0.0
    %827 = vmatpush1.msra.mxu0 0.0
    %828 = vmatprep.subr.mxu0 0.0
    %829 = vmatpush1.msra.mxu0 0.0
    %830 = vmatprep.mubr.f32.mxu0 0.0
    %831 = vmatmul.mubr.f32.gmra.mrb[0].mxu0 %v92
    %v832 = vpop.f32.mrb[0].mxu0
    %v833 = vadd.f32 0.0, %v832
    %v834 = vpop.f32.mrb[0].mxu0
    %v835 = vadd.f32 0.0, %v834
    %836 = vmatprep.mubr.f32.mxu0 0.0
    %837 = vmatmul.mubr.f32.gmra.mrb[0].mxu0 %v93
    %v838 = vpop.f32.mrb[0].mxu0
    %v839 = vadd.f32 0.0, %v838
    %v840 = vpop.f32.mrb[0].mxu0
    %v841 = vadd.f32 0.0, %v840
    %842 = vmatprep.mubr.f32.mxu0 0.0
    %843 = vmatmul.mubr.f32.gmra.mrb[0].mxu0 %v94
    %v844 = vpop.f32.mrb[0].mxu0
    %v845 = vadd.f32 0.0, %v844
    %v846 = vpop.f32.mrb[0].mxu0
    %v847 = vadd.f32 0.0, %v846
    %848 = vmatprep.mubr.f32.mxu0 0.0
    %849 = vmatmul.mubr.f32.gmra.mrb[0].mxu0 %v95
    %v850 = vpop.f32.mrb[0].mxu0
    %v851 = vadd.f32 0.0, %v850
    %v852 = vpop.f32.mrb[0].mxu0
    %v853 = vadd.f32 0.0, %v852
    %854 = vmatprep.mubr.f32.mxu0 0.0
    %855 = vmatmul.mubr.f32.gmra.mrb[0].mxu0 %v96
    %v856 = vpop.f32.mrb[0].mxu0
    %v857 = vadd.f32 0.0, %v856
    %v858 = vpop.f32.mrb[0].mxu0
    %v859 = vadd.f32 0.0, %v858
    %860 = vmatprep.mubr.f32.mxu0 0.0
    %861 = vmatmul.mubr.f32.gmra.mrb[0].mxu0 %v97
    %v862 = vpop.f32.mrb[0].mxu0
    %v863 = vadd.f32 0.0, %v862
    %v864 = vpop.f32.mrb[0].mxu0
    %v865 = vadd.f32 0.0, %v864
    %866 = vmatprep.mubr.f32.mxu0 0.0
    %867 = vmatmul.mubr.f32.gmra.mrb[0].mxu0 %v98
    %v868 = vpop.f32.mrb[0].mxu0
    %v869 = vadd.f32 0.0, %v868
    %v870 = vpop.f32.mrb[0].mxu0
    %v871 = vadd.f32 0.0, %v870
    %872 = vmatprep.mubr.f32.mxu0 0.0
    %873 = vmatmul.mubr.f32.gmra.mrb[0].mxu0 %v99
    %v874 = vpop.f32.mrb[0].mxu0
    %v875 = vadd.f32 0.0, %v874
    %v876 = vpop.f32.mrb[0].mxu0
    %v877 = vadd.f32 0.0, %v876
    %878 = vmatprep.mubr.f32.mxu0 0.0
    %879 = vmatmul.mubr.f32.gmra.mrb[0].mxu0 %v100
    %v880 = vpop.f32.mrb[0].mxu0
    %v881 = vadd.f32 0.0, %v880
    %v882 = vpop.f32.mrb[0].mxu0
    %v883 = vadd.f32 0.0, %v882
    %884 = vmatprep.mubr.f32.mxu0 0.0
    %885 = vmatmul.mubr.f32.gmra.mrb[0].mxu0 %v101
    %v886 = vpop.f32.mrb[0].mxu0
    %v887 = vadd.f32 0.0, %v886
    %v888 = vpop.f32.mrb[0].mxu0
    %v889 = vadd.f32 0.0, %v888
    %890 = vmatprep.mubr.f32.mxu0 0.0
    %891 = vmatmul.mubr.f32.gmra.mrb[0].mxu0 %v102
    %v892 = vpop.f32.mrb[0].mxu0
    %v893 = vadd.f32 0.0, %v892
    %v894 = vpop.f32.mrb[0].mxu0
    %v895 = vadd.f32 0.0, %v894
    %896 = vmatprep.mubr.f32.mxu0 0.0
    %897 = vmatmul.mubr.f32.gmra.mrb[0].mxu0 %v103
    %v898 = vpop.f32.mrb[0].mxu0
    %v899 = vadd.f32 0.0, %v898
    %v900 = vpop.f32.mrb[0].mxu0
    %v901 = vadd.f32 0.0, %v900
    %902 = vmatprep.mubr.f32.mxu0 0.0
    %903 = vmatmul.mubr.f32.gmra.mrb[0].mxu0 %v104
    %v904 = vpop.f32.mrb[0].mxu0
    %v905 = vadd.f32 0.0, %v904
    %v906 = vpop.f32.mrb[0].mxu0
    %v907 = vadd.f32 0.0, %v906
    %908 = vmatprep.mubr.f32.mxu0 0.0
    %909 = vmatmul.mubr.f32.gmra.mrb[0].mxu0 %v105
    %v910 = vpop.f32.mrb[0].mxu0
    %v911 = vadd.f32 0.0, %v910
    %v912 = vpop.f32.mrb[0].mxu0
    %v913 = vadd.f32 0.0, %v912
    %914 = vmatprep.mubr.f32.mxu0 0.0
    %915 = vmatmul.mubr.f32.gmra.mrb[0].mxu0 %v106
    %v916 = vpop.f32.mrb[0].mxu0
    %v917 = vadd.f32 0.0, %v916
    %v918 = vpop.f32.mrb[0].mxu0
    %v919 = vadd.f32 0.0, %v918
    %920 = vmatprep.mubr.f32.mxu0 0.0
    %921 = vmatmul.mubr.f32.gmra.mrb[0].mxu0 %v107
    %v922 = vpop.f32.mrb[0].mxu0
    %v923 = vadd.f32 0.0, %v922
    %v924 = vpop.f32.mrb[0].mxu0
    %v925 = vadd.f32 0.0, %v924
    %926 = vmatprep.mubr.f32.mxu0 0.0
    %927 = vmatmul.mubr.f32.gmra.mrb[0].mxu0 %v108
    %v928 = vpop.f32.mrb[0].mxu0
    %v929 = vadd.f32 0.0, %v928
    %v930 = vpop.f32.mrb[0].mxu0
    %v931 = vadd.f32 0.0, %v930
    %932 = vmatprep.mubr.f32.mxu0 0.0
    %933 = vmatmul.mubr.f32.gmra.mrb[0].mxu0 %v109
    %v934 = vpop.f32.mrb[0].mxu0
    %v935 = vadd.f32 0.0, %v934
    %v936 = vpop.f32.mrb[0].mxu0
    %v937 = vadd.f32 0.0, %v936
    %938 = vmatprep.mubr.f32.mxu0 0.0
    %939 = vmatmul.mubr.f32.gmra.mrb[0].mxu0 %v110
    %v940 = vpop.f32.mrb[0].mxu0
    %v941 = vadd.f32 0.0, %v940
    %v942 = vpop.f32.mrb[0].mxu0
    %v943 = vadd.f32 0.0, %v942
    %944 = vmatprep.mubr.f32.mxu0 0.0
    %945 = vmatmul.mubr.f32.gmra.mrb[0].mxu0 %v111
    %v946 = vpop.f32.mrb[0].mxu0
    %v947 = vadd.f32 0.0, %v946
    %v948 = vpop.f32.mrb[0].mxu0
    %v949 = vadd.f32 0.0, %v948
    %950 = vmatprep.mubr.f32.mxu0 0.0
    %951 = vmatmul.mubr.f32.gmra.mrb[0].mxu0 %v112
    %v952 = vpop.f32.mrb[0].mxu0
    %v953 = vadd.f32 0.0, %v952
    %v954 = vpop.f32.mrb[0].mxu0
    %v955 = vadd.f32 0.0, %v954
    %956 = vmatprep.mubr.f32.mxu0 0.0
    %957 = vmatmul.mubr.f32.gmra.mrb[0].mxu0 %v113
    %v958 = vpop.f32.mrb[0].mxu0
    %v959 = vadd.f32 0.0, %v958
    %v960 = vpop.f32.mrb[0].mxu0
    %v961 = vadd.f32 0.0, %v960
    %962 = vmatprep.mubr.f32.mxu0 0.0
    %963 = vmatmul.mubr.f32.gmra.mrb[0].mxu0 %v114
    %v964 = vpop.f32.mrb[0].mxu0
    %v965 = vadd.f32 0.0, %v964
    %v966 = vpop.f32.mrb[0].mxu0
    %v967 = vadd.f32 0.0, %v966
    %968 = vmatprep.mubr.f32.mxu0 0.0
    %969 = vmatmul.mubr.f32.gmra.mrb[0].mxu0 %v115
    %v970 = vpop.f32.mrb[0].mxu0
    %v971 = vadd.f32 0.0, %v970
    %v972 = vpop.f32.mrb[0].mxu0
    %v973 = vadd.f32 0.0, %v972
    %974 = vmatprep.mubr.f32.mxu0 0.0
    %975 = vmatmul.mubr.f32.gmra.mrb[0].mxu0 %v116
    %v976 = vpop.f32.mrb[0].mxu0
    %v977 = vadd.f32 0.0, %v976
    %v978 = vpop.f32.mrb[0].mxu0
    %v979 = vadd.f32 0.0, %v978
    %980 = vmatprep.mubr.f32.mxu0 0.0
    %981 = vmatmul.mubr.f32.gmra.mrb[0].mxu0 %v117
    %v982 = vpop.f32.mrb[0].mxu0
    %v983 = vadd.f32 0.0, %v982
    %v984 = vpop.f32.mrb[0].mxu0
    %v985 = vadd.f32 0.0, %v984
    %986 = vmatprep.mubr.f32.mxu0 0.0
    %987 = vmatmul.mubr.f32.gmra.mrb[0].mxu0 %v118
    %v988 = vpop.f32.mrb[0].mxu0
    %v989 = vadd.f32 0.0, %v988
    %v990 = vpop.f32.mrb[0].mxu0
    %v991 = vadd.f32 0.0, %v990
    %992 = vmatprep.mubr.f32.mxu0 0.0
    %993 = vmatmul.mubr.f32.gmra.mrb[0].mxu0 %v119
    %v994 = vpop.f32.mrb[0].mxu0
    %v995 = vadd.f32 0.0, %v994
    %v996 = vpop.f32.mrb[0].mxu0
    %v997 = vadd.f32 0.0, %v996
    %998 = vmatprep.mubr.f32.mxu0 0.0
    %999 = vmatmul.mubr.f32.gmra.mrb[0].mxu0 %v120
    %v1000 = vpop.f32.mrb[0].mxu0
    %v1001 = vadd.f32 0.0, %v1000
    %v1002 = vpop.f32.mrb[0].mxu0
    %v1003 = vadd.f32 0.0, %v1002
    %1004 = vmatprep.mubr.f32.mxu0 0.0
    %1005 = vmatmul.mubr.f32.gmra.mrb[0].mxu0 %v121
    %v1006 = vpop.f32.mrb[0].mxu0
    %v1007 = vadd.f32 0.0, %v1006
    %v1008 = vpop.f32.mrb[0].mxu0
    %v1009 = vadd.f32 0.0, %v1008
    %1010 = vmatprep.mubr.f32.mxu0 0.0
    %1011 = vmatmul.mubr.f32.gmra.mrb[0].mxu0 %v122
    %v1012 = vpop.f32.mrb[0].mxu0
    %v1013 = vadd.f32 0.0, %v1012
    %v1014 = vpop.f32.mrb[0].mxu0
    %v1015 = vadd.f32 0.0, %v1014
    %1016 = vmatprep.mubr.f32.mxu0 0.0
    %1017 = vmatmul.mubr.f32.gmra.mrb[0].mxu0 %v123
    %v1018 = vpop.f32.mrb[0].mxu0
    %v1019 = vadd.f32 0.0, %v1018
    %v1020 = vpop.f32.mrb[0].mxu0
    %v1021 = vadd.f32 0.0, %v1020
    %1022 = vdwg.mxu0
    %1023 = vmatprep.subr.mxu0 %v131
    %1024 = vmatpush1.msra.mxu0 %v130
    %1025 = vmatprep.subr.mxu0 %v139
    %1026 = vmatpush1.msra.mxu0 %v138
    %1027 = vmatprep.subr.mxu0 %v147
    %1028 = vmatpush1.msra.mxu0 %v146
    %1029 = vmatprep.subr.mxu0 %v155
    %1030 = vmatpush1.msra.mxu0 %v154
    %1031 = vmatprep.subr.mxu0 %v163
    %1032 = vmatpush1.msra.mxu0 %v162
    %1033 = vmatprep.subr.mxu0 %v171
    %1034 = vmatpush1.msra.mxu0 %v170
    %1035 = vmatprep.subr.mxu0 %v179
    %1036 = vmatpush1.msra.mxu0 %v178
    %1037 = vmatprep.subr.mxu0 %v187
    %1038 = vmatpush1.msra.mxu0 %v186
    %1039 = vmatprep.subr.mxu0 %v195
    %1040 = vmatpush1.msra.mxu0 %v194
    %1041 = vmatprep.subr.mxu0 %v203
    %1042 = vmatpush1.msra.mxu0 %v202
    %1043 = vmatprep.subr.mxu0 %v211
    %1044 = vmatpush1.msra.mxu0 %v210
    %1045 = vmatprep.subr.mxu0 %v219
    %1046 = vmatpush1.msra.mxu0 %v218
    %1047 = vmatprep.subr.mxu0 %v227
    %1048 = vmatpush1.msra.mxu0 %v226
    %1049 = vmatprep.subr.mxu0 %v235
    %1050 = vmatpush1.msra.mxu0 %v234
    %1051 = vmatprep.subr.mxu0 %v243
    %1052 = vmatpush1.msra.mxu0 %v242
    %1053 = vmatprep.subr.mxu0 %v251
    %1054 = vmatpush1.msra.mxu0 %v250
    %1055 = vmatprep.subr.mxu0 0.0
    %1056 = vmatpush1.msra.mxu0 0.0
    %1057 = vmatprep.subr.mxu0 0.0
    %1058 = vmatpush1.msra.mxu0 0.0
    %1059 = vmatprep.subr.mxu0 0.0
    %1060 = vmatpush1.msra.mxu0 0.0
    %1061 = vmatprep.subr.mxu0 0.0
    %1062 = vmatpush1.msra.mxu0 0.0
    %1063 = vmatprep.subr.mxu0 0.0
    %1064 = vmatpush1.msra.mxu0 0.0
    %1065 = vmatprep.subr.mxu0 0.0
    %1066 = vmatpush1.msra.mxu0 0.0
    %1067 = vmatprep.subr.mxu0 0.0
    %1068 = vmatpush1.msra.mxu0 0.0
    %1069 = vmatprep.subr.mxu0 0.0
    %1070 = vmatpush1.msra.mxu0 0.0
    %1071 = vmatprep.subr.mxu0 0.0
    %1072 = vmatpush1.msra.mxu0 0.0
    %1073 = vmatprep.subr.mxu0 0.0
    %1074 = vmatpush1.msra.mxu0 0.0
    %1075 = vmatprep.subr.mxu0 0.0
    %1076 = vmatpush1.msra.mxu0 0.0
    %1077 = vmatprep.subr.mxu0 0.0
    %1078 = vmatpush1.msra.mxu0 0.0
    %1079 = vmatprep.subr.mxu0 0.0
    %1080 = vmatpush1.msra.mxu0 0.0
    %1081 = vmatprep.subr.mxu0 0.0
    %1082 = vmatpush1.msra.mxu0 0.0
    %1083 = vmatprep.subr.mxu0 0.0
    %1084 = vmatpush1.msra.mxu0 0.0
    %1085 = vmatprep.subr.mxu0 0.0
    %1086 = vmatpush1.msra.mxu0 0.0
    %1087 = vmatprep.mubr.f32.mxu0 0.0
    %1088 = vmatmul.mubr.f32.gmra.mrb[0].mxu0 %v92
    %v1089 = vpop.f32.mrb[0].mxu0
    %v1090 = vadd.f32 0.0, %v1089
    %v1091 = vpop.f32.mrb[0].mxu0
    %v1092 = vadd.f32 0.0, %v1091
    %1093 = vmatprep.mubr.f32.mxu0 0.0
    %1094 = vmatmul.mubr.f32.gmra.mrb[0].mxu0 %v93
    %v1095 = vpop.f32.mrb[0].mxu0
    %v1096 = vadd.f32 0.0, %v1095
    %v1097 = vpop.f32.mrb[0].mxu0
    %v1098 = vadd.f32 0.0, %v1097
    %1099 = vmatprep.mubr.f32.mxu0 0.0
    %1100 = vmatmul.mubr.f32.gmra.mrb[0].mxu0 %v94
    %v1101 = vpop.f32.mrb[0].mxu0
    %v1102 = vadd.f32 0.0, %v1101
    %v1103 = vpop.f32.mrb[0].mxu0
    %v1104 = vadd.f32 0.0, %v1103
    %1105 = vmatprep.mubr.f32.mxu0 0.0
    %1106 = vmatmul.mubr.f32.gmra.mrb[0].mxu0 %v95
    %v1107 = vpop.f32.mrb[0].mxu0
    %v1108 = vadd.f32 0.0, %v1107
    %v1109 = vpop.f32.mrb[0].mxu0
    %v1110 = vadd.f32 0.0, %v1109
    %1111 = vmatprep.mubr.f32.mxu0 0.0
    %1112 = vmatmul.mubr.f32.gmra.mrb[0].mxu0 %v96
    %v1113 = vpop.f32.mrb[0].mxu0
    %v1114 = vadd.f32 0.0, %v1113
    %v1115 = vpop.f32.mrb[0].mxu0
    %v1116 = vadd.f32 0.0, %v1115
    %1117 = vmatprep.mubr.f32.mxu0 0.0
    %1118 = vmatmul.mubr.f32.gmra.mrb[0].mxu0 %v97
    %v1119 = vpop.f32.mrb[0].mxu0
    %v1120 = vadd.f32 0.0, %v1119
    %v1121 = vpop.f32.mrb[0].mxu0
    %v1122 = vadd.f32 0.0, %v1121
    %1123 = vmatprep.mubr.f32.mxu0 0.0
    %1124 = vmatmul.mubr.f32.gmra.mrb[0].mxu0 %v98
    %v1125 = vpop.f32.mrb[0].mxu0
    %v1126 = vadd.f32 0.0, %v1125
    %v1127 = vpop.f32.mrb[0].mxu0
    %v1128 = vadd.f32 0.0, %v1127
    %1129 = vmatprep.mubr.f32.mxu0 0.0
    %1130 = vmatmul.mubr.f32.gmra.mrb[0].mxu0 %v99
    %v1131 = vpop.f32.mrb[0].mxu0
    %v1132 = vadd.f32 0.0, %v1131
    %v1133 = vpop.f32.mrb[0].mxu0
    %v1134 = vadd.f32 0.0, %v1133
    %1135 = vmatprep.mubr.f32.mxu0 0.0
    %1136 = vmatmul.mubr.f32.gmra.mrb[0].mxu0 %v100
    %v1137 = vpop.f32.mrb[0].mxu0
    %v1138 = vadd.f32 0.0, %v1137
    %v1139 = vpop.f32.mrb[0].mxu0
    %v1140 = vadd.f32 0.0, %v1139
    %1141 = vmatprep.mubr.f32.mxu0 0.0
    %1142 = vmatmul.mubr.f32.gmra.mrb[0].mxu0 %v101
    %v1143 = vpop.f32.mrb[0].mxu0
    %v1144 = vadd.f32 0.0, %v1143
    %v1145 = vpop.f32.mrb[0].mxu0
    %v1146 = vadd.f32 0.0, %v1145
    %1147 = vmatprep.mubr.f32.mxu0 0.0
    %1148 = vmatmul.mubr.f32.gmra.mrb[0].mxu0 %v102
    %v1149 = vpop.f32.mrb[0].mxu0
    %v1150 = vadd.f32 0.0, %v1149
    %v1151 = vpop.f32.mrb[0].mxu0
    %v1152 = vadd.f32 0.0, %v1151
    %1153 = vmatprep.mubr.f32.mxu0 0.0
    %1154 = vmatmul.mubr.f32.gmra.mrb[0].mxu0 %v103
    %v1155 = vpop.f32.mrb[0].mxu0
    %v1156 = vadd.f32 0.0, %v1155
    %v1157 = vpop.f32.mrb[0].mxu0
    %v1158 = vadd.f32 0.0, %v1157
    %1159 = vmatprep.mubr.f32.mxu0 0.0
    %1160 = vmatmul.mubr.f32.gmra.mrb[0].mxu0 %v104
    %v1161 = vpop.f32.mrb[0].mxu0
    %v1162 = vadd.f32 0.0, %v1161
    %v1163 = vpop.f32.mrb[0].mxu0
    %v1164 = vadd.f32 0.0, %v1163
    %1165 = vmatprep.mubr.f32.mxu0 0.0
    %1166 = vmatmul.mubr.f32.gmra.mrb[0].mxu0 %v105
    %v1167 = vpop.f32.mrb[0].mxu0
    %v1168 = vadd.f32 0.0, %v1167
    %v1169 = vpop.f32.mrb[0].mxu0
    %v1170 = vadd.f32 0.0, %v1169
    %1171 = vmatprep.mubr.f32.mxu0 0.0
    %1172 = vmatmul.mubr.f32.gmra.mrb[0].mxu0 %v106
    %v1173 = vpop.f32.mrb[0].mxu0
    %v1174 = vadd.f32 0.0, %v1173
    %v1175 = vpop.f32.mrb[0].mxu0
    %v1176 = vadd.f32 0.0, %v1175
    %1177 = vmatprep.mubr.f32.mxu0 0.0
    %1178 = vmatmul.mubr.f32.gmra.mrb[0].mxu0 %v107
    %v1179 = vpop.f32.mrb[0].mxu0
    %v1180 = vadd.f32 0.0, %v1179
    %v1181 = vpop.f32.mrb[0].mxu0
    %v1182 = vadd.f32 0.0, %v1181
    %1183 = vmatprep.mubr.f32.mxu0 0.0
    %1184 = vmatmul.mubr.f32.gmra.mrb[0].mxu0 %v108
    %v1185 = vpop.f32.mrb[0].mxu0
    %v1186 = vadd.f32 0.0, %v1185
    %v1187 = vpop.f32.mrb[0].mxu0
    %v1188 = vadd.f32 0.0, %v1187
    %1189 = vmatprep.mubr.f32.mxu0 0.0
    %1190 = vmatmul.mubr.f32.gmra.mrb[0].mxu0 %v109
    %v1191 = vpop.f32.mrb[0].mxu0
    %v1192 = vadd.f32 0.0, %v1191
    %v1193 = vpop.f32.mrb[0].mxu0
    %v1194 = vadd.f32 0.0, %v1193
    %1195 = vmatprep.mubr.f32.mxu0 0.0
    %1196 = vmatmul.mubr.f32.gmra.mrb[0].mxu0 %v110
    %v1197 = vpop.f32.mrb[0].mxu0
    %v1198 = vadd.f32 0.0, %v1197
    %v1199 = vpop.f32.mrb[0].mxu0
    %v1200 = vadd.f32 0.0, %v1199
    %1201 = vmatprep.mubr.f32.mxu0 0.0
    %1202 = vmatmul.mubr.f32.gmra.mrb[0].mxu0 %v111
    %v1203 = vpop.f32.mrb[0].mxu0
    %v1204 = vadd.f32 0.0, %v1203
    %v1205 = vpop.f32.mrb[0].mxu0
    %v1206 = vadd.f32 0.0, %v1205
    %1207 = vmatprep.mubr.f32.mxu0 0.0
    %1208 = vmatmul.mubr.f32.gmra.mrb[0].mxu0 %v112
    %v1209 = vpop.f32.mrb[0].mxu0
    %v1210 = vadd.f32 0.0, %v1209
    %v1211 = vpop.f32.mrb[0].mxu0
    %v1212 = vadd.f32 0.0, %v1211
    %1213 = vmatprep.mubr.f32.mxu0 0.0
    %1214 = vmatmul.mubr.f32.gmra.mrb[0].mxu0 %v113
    %v1215 = vpop.f32.mrb[0].mxu0
    %v1216 = vadd.f32 0.0, %v1215
    %v1217 = vpop.f32.mrb[0].mxu0
    %v1218 = vadd.f32 0.0, %v1217
    %1219 = vmatprep.mubr.f32.mxu0 0.0
    %1220 = vmatmul.mubr.f32.gmra.mrb[0].mxu0 %v114
    %v1221 = vpop.f32.mrb[0].mxu0
    %v1222 = vadd.f32 0.0, %v1221
    %v1223 = vpop.f32.mrb[0].mxu0
    %v1224 = vadd.f32 0.0, %v1223
    %1225 = vmatprep.mubr.f32.mxu0 0.0
    %1226 = vmatmul.mubr.f32.gmra.mrb[0].mxu0 %v115
    %v1227 = vpop.f32.mrb[0].mxu0
    %v1228 = vadd.f32 0.0, %v1227
    %v1229 = vpop.f32.mrb[0].mxu0
    %v1230 = vadd.f32 0.0, %v1229
    %1231 = vmatprep.mubr.f32.mxu0 0.0
    %1232 = vmatmul.mubr.f32.gmra.mrb[0].mxu0 %v116
    %v1233 = vpop.f32.mrb[0].mxu0
    %v1234 = vadd.f32 0.0, %v1233
    %v1235 = vpop.f32.mrb[0].mxu0
    %v1236 = vadd.f32 0.0, %v1235
    %1237 = vmatprep.mubr.f32.mxu0 0.0
    %1238 = vmatmul.mubr.f32.gmra.mrb[0].mxu0 %v117
    %v1239 = vpop.f32.mrb[0].mxu0
    %v1240 = vadd.f32 0.0, %v1239
    %v1241 = vpop.f32.mrb[0].mxu0
    %v1242 = vadd.f32 0.0, %v1241
    %1243 = vmatprep.mubr.f32.mxu0 0.0
    %1244 = vmatmul.mubr.f32.gmra.mrb[0].mxu0 %v118
    %v1245 = vpop.f32.mrb[0].mxu0
    %v1246 = vadd.f32 0.0, %v1245
    %v1247 = vpop.f32.mrb[0].mxu0
    %v1248 = vadd.f32 0.0, %v1247
    %1249 = vmatprep.mubr.f32.mxu0 0.0
    %1250 = vmatmul.mubr.f32.gmra.mrb[0].mxu0 %v119
    %v1251 = vpop.f32.mrb[0].mxu0
    %v1252 = vadd.f32 0.0, %v1251
    %v1253 = vpop.f32.mrb[0].mxu0
    %v1254 = vadd.f32 0.0, %v1253
    %1255 = vmatprep.mubr.f32.mxu0 0.0
    %1256 = vmatmul.mubr.f32.gmra.mrb[0].mxu0 %v120
    %v1257 = vpop.f32.mrb[0].mxu0
    %v1258 = vadd.f32 0.0, %v1257
    %v1259 = vpop.f32.mrb[0].mxu0
    %v1260 = vadd.f32 0.0, %v1259
    %1261 = vmatprep.mubr.f32.mxu0 0.0
    %1262 = vmatmul.mubr.f32.gmra.mrb[0].mxu0 %v121
    %v1263 = vpop.f32.mrb[0].mxu0
    %v1264 = vadd.f32 0.0, %v1263
    %v1265 = vpop.f32.mrb[0].mxu0
    %v1266 = vadd.f32 0.0, %v1265
    %1267 = vmatprep.mubr.f32.mxu0 0.0
    %1268 = vmatmul.mubr.f32.gmra.mrb[0].mxu0 %v122
    %v1269 = vpop.f32.mrb[0].mxu0
    %v1270 = vadd.f32 0.0, %v1269
    %v1271 = vpop.f32.mrb[0].mxu0
    %v1272 = vadd.f32 0.0, %v1271
    %1273 = vmatprep.mubr.f32.mxu0 0.0
    %1274 = vmatmul.mubr.f32.gmra.mrb[0].mxu0 %v123
    %v1275 = vpop.f32.mrb[0].mxu0
    %v1276 = vadd.f32 0.0, %v1275
    %v1277 = vpop.f32.mrb[0].mxu0
    %v1278 = vadd.f32 0.0, %v1277
    %1279 = vdwg.mxu0
    %v1280 = vxor.u32 %v319, 2147483648
    %v1281 = vxor.u32 %v321, 2147483648
    %v1282 = vxor.u32 %v576, 2147483648
    %v1283 = vxor.u32 %v578, 2147483648
    %v1284 = vxor.u32 %v325, 2147483648
    %v1285 = vxor.u32 %v327, 2147483648
    %v1286 = vxor.u32 %v582, 2147483648
    %v1287 = vxor.u32 %v584, 2147483648
    %v1288 = vxor.u32 %v331, 2147483648
    %v1289 = vxor.u32 %v333, 2147483648
    %v1290 = vxor.u32 %v588, 2147483648
    %v1291 = vxor.u32 %v590, 2147483648
    %v1292 = vxor.u32 %v337, 2147483648
    %v1293 = vxor.u32 %v339, 2147483648
    %v1294 = vxor.u32 %v594, 2147483648
    %v1295 = vxor.u32 %v596, 2147483648
    %v1296 = vxor.u32 %v343, 2147483648
    %v1297 = vxor.u32 %v345, 2147483648
    %v1298 = vxor.u32 %v600, 2147483648
    %v1299 = vxor.u32 %v602, 2147483648
    %v1300 = vxor.u32 %v349, 2147483648
    %v1301 = vxor.u32 %v351, 2147483648
    %v1302 = vxor.u32 %v606, 2147483648
    %v1303 = vxor.u32 %v608, 2147483648
    %v1304 = vxor.u32 %v355, 2147483648
    %v1305 = vxor.u32 %v357, 2147483648
    %v1306 = vxor.u32 %v612, 2147483648
    %v1307 = vxor.u32 %v614, 2147483648
    %v1308 = vxor.u32 %v361, 2147483648
    %v1309 = vxor.u32 %v363, 2147483648
    %v1310 = vxor.u32 %v618, 2147483648
    %v1311 = vxor.u32 %v620, 2147483648
    %v1312 = vxor.u32 %v367, 2147483648
    %v1313 = vxor.u32 %v369, 2147483648
    %v1314 = vxor.u32 %v624, 2147483648
    %v1315 = vxor.u32 %v626, 2147483648
    %v1316 = vxor.u32 %v373, 2147483648
    %v1317 = vxor.u32 %v375, 2147483648
    %v1318 = vxor.u32 %v630, 2147483648
    %v1319 = vxor.u32 %v632, 2147483648
    %v1320 = vxor.u32 %v379, 2147483648
    %v1321 = vxor.u32 %v381, 2147483648
    %v1322 = vxor.u32 %v636, 2147483648
    %v1323 = vxor.u32 %v638, 2147483648
    %v1324 = vxor.u32 %v385, 2147483648
    %v1325 = vxor.u32 %v387, 2147483648
    %v1326 = vxor.u32 %v642, 2147483648
    %v1327 = vxor.u32 %v644, 2147483648
    %v1328 = vxor.u32 %v391, 2147483648
    %v1329 = vxor.u32 %v393, 2147483648
    %v1330 = vxor.u32 %v648, 2147483648
    %v1331 = vxor.u32 %v650, 2147483648
    %v1332 = vxor.u32 %v397, 2147483648
    %v1333 = vxor.u32 %v399, 2147483648
    %v1334 = vxor.u32 %v654, 2147483648
    %v1335 = vxor.u32 %v656, 2147483648
    %v1336 = vxor.u32 %v403, 2147483648
    %v1337 = vxor.u32 %v405, 2147483648
    %v1338 = vxor.u32 %v660, 2147483648
    %v1339 = vxor.u32 %v662, 2147483648
    %v1340 = vxor.u32 %v409, 2147483648
    %v1341 = vxor.u32 %v411, 2147483648
    %v1342 = vxor.u32 %v666, 2147483648
    %v1343 = vxor.u32 %v668, 2147483648
    %v1344 = vxor.u32 %v415, 2147483648
    %v1345 = vxor.u32 %v417, 2147483648
    %v1346 = vxor.u32 %v672, 2147483648
    %v1347 = vxor.u32 %v674, 2147483648
    %v1348 = vxor.u32 %v421, 2147483648
    %v1349 = vxor.u32 %v423, 2147483648
    %v1350 = vxor.u32 %v678, 2147483648
    %v1351 = vxor.u32 %v680, 2147483648
    %v1352 = vxor.u32 %v427, 2147483648
    %v1353 = vxor.u32 %v429, 2147483648
    %v1354 = vxor.u32 %v684, 2147483648
    %v1355 = vxor.u32 %v686, 2147483648
    %v1356 = vxor.u32 %v433, 2147483648
    %v1357 = vxor.u32 %v435, 2147483648
    %v1358 = vxor.u32 %v690, 2147483648
    %v1359 = vxor.u32 %v692, 2147483648
    %v1360 = vxor.u32 %v439, 2147483648
    %v1361 = vxor.u32 %v441, 2147483648
    %v1362 = vxor.u32 %v696, 2147483648
    %v1363 = vxor.u32 %v698, 2147483648
    %v1364 = vxor.u32 %v445, 2147483648
    %v1365 = vxor.u32 %v447, 2147483648
    %v1366 = vxor.u32 %v702, 2147483648
    %v1367 = vxor.u32 %v704, 2147483648
    %v1368 = vxor.u32 %v451, 2147483648
    %v1369 = vxor.u32 %v453, 2147483648
    %v1370 = vxor.u32 %v708, 2147483648
    %v1371 = vxor.u32 %v710, 2147483648
    %v1372 = vxor.u32 %v457, 2147483648
    %v1373 = vxor.u32 %v459, 2147483648
    %v1374 = vxor.u32 %v714, 2147483648
    %v1375 = vxor.u32 %v716, 2147483648
    %v1376 = vxor.u32 %v463, 2147483648
    %v1377 = vxor.u32 %v465, 2147483648
    %v1378 = vxor.u32 %v720, 2147483648
    %v1379 = vxor.u32 %v722, 2147483648
    %v1380 = vxor.u32 %v469, 2147483648
    %v1381 = vxor.u32 %v471, 2147483648
    %v1382 = vxor.u32 %v726, 2147483648
    %v1383 = vxor.u32 %v728, 2147483648
    %v1384 = vxor.u32 %v475, 2147483648
    %v1385 = vxor.u32 %v477, 2147483648
    %v1386 = vxor.u32 %v732, 2147483648
    %v1387 = vxor.u32 %v734, 2147483648
    %v1388 = vxor.u32 %v481, 2147483648
    %v1389 = vxor.u32 %v483, 2147483648
    %v1390 = vxor.u32 %v738, 2147483648
    %v1391 = vxor.u32 %v740, 2147483648
    %v1392 = vxor.u32 %v487, 2147483648
    %v1393 = vxor.u32 %v489, 2147483648
    %v1394 = vxor.u32 %v744, 2147483648
    %v1395 = vxor.u32 %v746, 2147483648
    %v1396 = vxor.u32 %v493, 2147483648
    %v1397 = vxor.u32 %v495, 2147483648
    %v1398 = vxor.u32 %v750, 2147483648
    %v1399 = vxor.u32 %v752, 2147483648
    %v1400 = vxor.u32 %v499, 2147483648
    %v1401 = vxor.u32 %v501, 2147483648
    %v1402 = vxor.u32 %v756, 2147483648
    %v1403 = vxor.u32 %v758, 2147483648
    %v1404 = vxor.u32 %v505, 2147483648
    %v1405 = vxor.u32 %v507, 2147483648
    %v1406 = vxor.u32 %v762, 2147483648
    %v1407 = vxor.u32 %v764, 2147483648
    %v1408 = vmul.f32 %v1280, 1.442695
    %v1409 = vpow.pop %v1408
    %v1410 = vmul.f32 %v1281, 1.442695
    %v1411 = vpow.pop %v1410
    %v1412 = vmul.f32 %v1282, 1.442695
    %v1413 = vpow.pop %v1412
    %v1414 = vmul.f32 %v1283, 1.442695
    %v1415 = vpow.pop %v1414
    %v1416 = vmul.f32 %v1284, 1.442695
    %v1417 = vpow.pop %v1416
    %v1418 = vmul.f32 %v1285, 1.442695
    %v1419 = vpow.pop %v1418
    %v1420 = vmul.f32 %v1286, 1.442695
    %v1421 = vpow.pop %v1420
    %v1422 = vmul.f32 %v1287, 1.442695
    %v1423 = vpow.pop %v1422
    %v1424 = vmul.f32 %v1288, 1.442695
    %v1425 = vpow.pop %v1424
    %v1426 = vmul.f32 %v1289, 1.442695
    %v1427 = vpow.pop %v1426
    %v1428 = vmul.f32 %v1290, 1.442695
    %v1429 = vpow.pop %v1428
    %v1430 = vmul.f32 %v1291, 1.442695
    %v1431 = vpow.pop %v1430
    %v1432 = vmul.f32 %v1292, 1.442695
    %v1433 = vpow.pop %v1432
    %v1434 = vmul.f32 %v1293, 1.442695
    %v1435 = vpow.pop %v1434
    %v1436 = vmul.f32 %v1294, 1.442695
    %v1437 = vpow.pop %v1436
    %v1438 = vmul.f32 %v1295, 1.442695
    %v1439 = vpow.pop %v1438
    %v1440 = vmul.f32 %v1296, 1.442695
    %v1441 = vpow.pop %v1440
    %v1442 = vmul.f32 %v1297, 1.442695
    %v1443 = vpow.pop %v1442
    %v1444 = vmul.f32 %v1298, 1.442695
    %v1445 = vpow.pop %v1444
    %v1446 = vmul.f32 %v1299, 1.442695
    %v1447 = vpow.pop %v1446
    %v1448 = vmul.f32 %v1300, 1.442695
    %v1449 = vpow.pop %v1448
    %v1450 = vmul.f32 %v1301, 1.442695
    %v1451 = vpow.pop %v1450
    %v1452 = vmul.f32 %v1302, 1.442695
    %v1453 = vpow.pop %v1452
    %v1454 = vmul.f32 %v1303, 1.442695
    %v1455 = vpow.pop %v1454
    %v1456 = vmul.f32 %v1304, 1.442695
    %v1457 = vpow.pop %v1456
    %v1458 = vmul.f32 %v1305, 1.442695
    %v1459 = vpow.pop %v1458
    %v1460 = vmul.f32 %v1306, 1.442695
    %v1461 = vpow.pop %v1460
    %v1462 = vmul.f32 %v1307, 1.442695
    %v1463 = vpow.pop %v1462
    %v1464 = vmul.f32 %v1308, 1.442695
    %v1465 = vpow.pop %v1464
    %v1466 = vmul.f32 %v1309, 1.442695
    %v1467 = vpow.pop %v1466
    %v1468 = vmul.f32 %v1310, 1.442695
    %v1469 = vpow.pop %v1468
    %v1470 = vmul.f32 %v1311, 1.442695
    %v1471 = vpow.pop %v1470
    %v1472 = vmul.f32 %v1312, 1.442695
    %v1473 = vpow.pop %v1472
    %v1474 = vmul.f32 %v1313, 1.442695
    %v1475 = vpow.pop %v1474
    %v1476 = vmul.f32 %v1314, 1.442695
    %v1477 = vpow.pop %v1476
    %v1478 = vmul.f32 %v1315, 1.442695
    %v1479 = vpow.pop %v1478
    %v1480 = vmul.f32 %v1316, 1.442695
    %v1481 = vpow.pop %v1480
    %v1482 = vmul.f32 %v1317, 1.442695
    %v1483 = vpow.pop %v1482
    %v1484 = vmul.f32 %v1318, 1.442695
    %v1485 = vpow.pop %v1484
    %v1486 = vmul.f32 %v1319, 1.442695
    %v1487 = vpow.pop %v1486
    %v1488 = vmul.f32 %v1320, 1.442695
    %v1489 = vpow.pop %v1488
    %v1490 = vmul.f32 %v1321, 1.442695
    %v1491 = vpow.pop %v1490
    %v1492 = vmul.f32 %v1322, 1.442695
    %v1493 = vpow.pop %v1492
    %v1494 = vmul.f32 %v1323, 1.442695
    %v1495 = vpow.pop %v1494
    %v1496 = vmul.f32 %v1324, 1.442695
    %v1497 = vpow.pop %v1496
    %v1498 = vmul.f32 %v1325, 1.442695
    %v1499 = vpow.pop %v1498
    %v1500 = vmul.f32 %v1326, 1.442695
    %v1501 = vpow.pop %v1500
    %v1502 = vmul.f32 %v1327, 1.442695
    %v1503 = vpow.pop %v1502
    %v1504 = vmul.f32 %v1328, 1.442695
    %v1505 = vpow.pop %v1504
    %v1506 = vmul.f32 %v1329, 1.442695
    %v1507 = vpow.pop %v1506
    %v1508 = vmul.f32 %v1330, 1.442695
    %v1509 = vpow.pop %v1508
    %v1510 = vmul.f32 %v1331, 1.442695
    %v1511 = vpow.pop %v1510
    %v1512 = vmul.f32 %v1332, 1.442695
    %v1513 = vpow.pop %v1512
    %v1514 = vmul.f32 %v1333, 1.442695
    %v1515 = vpow.pop %v1514
    %v1516 = vmul.f32 %v1334, 1.442695
    %v1517 = vpow.pop %v1516
    %v1518 = vmul.f32 %v1335, 1.442695
    %v1519 = vpow.pop %v1518
    %v1520 = vmul.f32 %v1336, 1.442695
    %v1521 = vpow.pop %v1520
    %v1522 = vmul.f32 %v1337, 1.442695
    %v1523 = vpow.pop %v1522
    %v1524 = vmul.f32 %v1338, 1.442695
    %v1525 = vpow.pop %v1524
    %v1526 = vmul.f32 %v1339, 1.442695
    %v1527 = vpow.pop %v1526
    %v1528 = vmul.f32 %v1340, 1.442695
    %v1529 = vpow.pop %v1528
    %v1530 = vmul.f32 %v1341, 1.442695
    %v1531 = vpow.pop %v1530
    %v1532 = vmul.f32 %v1342, 1.442695
    %v1533 = vpow.pop %v1532
    %v1534 = vmul.f32 %v1343, 1.442695
    %v1535 = vpow.pop %v1534
    %v1536 = vmul.f32 %v1344, 1.442695
    %v1537 = vpow.pop %v1536
    %v1538 = vmul.f32 %v1345, 1.442695
    %v1539 = vpow.pop %v1538
    %v1540 = vmul.f32 %v1346, 1.442695
    %v1541 = vpow.pop %v1540
    %v1542 = vmul.f32 %v1347, 1.442695
    %v1543 = vpow.pop %v1542
    %v1544 = vmul.f32 %v1348, 1.442695
    %v1545 = vpow.pop %v1544
    %v1546 = vmul.f32 %v1349, 1.442695
    %v1547 = vpow.pop %v1546
    %v1548 = vmul.f32 %v1350, 1.442695
    %v1549 = vpow.pop %v1548
    %v1550 = vmul.f32 %v1351, 1.442695
    %v1551 = vpow.pop %v1550
    %v1552 = vmul.f32 %v1352, 1.442695
    %v1553 = vpow.pop %v1552
    %v1554 = vmul.f32 %v1353, 1.442695
    %v1555 = vpow.pop %v1554
    %v1556 = vmul.f32 %v1354, 1.442695
    %v1557 = vpow.pop %v1556
    %v1558 = vmul.f32 %v1355, 1.442695
    %v1559 = vpow.pop %v1558
    %v1560 = vmul.f32 %v1356, 1.442695
    %v1561 = vpow.pop %v1560
    %v1562 = vmul.f32 %v1357, 1.442695
    %v1563 = vpow.pop %v1562
    %v1564 = vmul.f32 %v1358, 1.442695
    %v1565 = vpow.pop %v1564
    %v1566 = vmul.f32 %v1359, 1.442695
    %v1567 = vpow.pop %v1566
    %v1568 = vmul.f32 %v1360, 1.442695
    %v1569 = vpow.pop %v1568
    %v1570 = vmul.f32 %v1361, 1.442695
    %v1571 = vpow.pop %v1570
    %v1572 = vmul.f32 %v1362, 1.442695
    %v1573 = vpow.pop %v1572
    %v1574 = vmul.f32 %v1363, 1.442695
    %v1575 = vpow.pop %v1574
    %v1576 = vmul.f32 %v1364, 1.442695
    %v1577 = vpow.pop %v1576
    %v1578 = vmul.f32 %v1365, 1.442695
    %v1579 = vpow.pop %v1578
    %v1580 = vmul.f32 %v1366, 1.442695
    %v1581 = vpow.pop %v1580
    %v1582 = vmul.f32 %v1367, 1.442695
    %v1583 = vpow.pop %v1582
    %v1584 = vmul.f32 %v1368, 1.442695
    %v1585 = vpow.pop %v1584
    %v1586 = vmul.f32 %v1369, 1.442695
    %v1587 = vpow.pop %v1586
    %v1588 = vmul.f32 %v1370, 1.442695
    %v1589 = vpow.pop %v1588
    %v1590 = vmul.f32 %v1371, 1.442695
    %v1591 = vpow.pop %v1590
    %v1592 = vmul.f32 %v1372, 1.442695
    %v1593 = vpow.pop %v1592
    %v1594 = vmul.f32 %v1373, 1.442695
    %v1595 = vpow.pop %v1594
    %v1596 = vmul.f32 %v1374, 1.442695
    %v1597 = vpow.pop %v1596
    %v1598 = vmul.f32 %v1375, 1.442695
    %v1599 = vpow.pop %v1598
    %v1600 = vmul.f32 %v1376, 1.442695
    %v1601 = vpow.pop %v1600
    %v1602 = vmul.f32 %v1377, 1.442695
    %v1603 = vpow.pop %v1602
    %v1604 = vmul.f32 %v1378, 1.442695
    %v1605 = vpow.pop %v1604
    %v1606 = vmul.f32 %v1379, 1.442695
    %v1607 = vpow.pop %v1606
    %v1608 = vmul.f32 %v1380, 1.442695
    %v1609 = vpow.pop %v1608
    %v1610 = vmul.f32 %v1381, 1.442695
    %v1611 = vpow.pop %v1610
    %v1612 = vmul.f32 %v1382, 1.442695
    %v1613 = vpow.pop %v1612
    %v1614 = vmul.f32 %v1383, 1.442695
    %v1615 = vpow.pop %v1614
    %v1616 = vmul.f32 %v1384, 1.442695
    %v1617 = vpow.pop %v1616
    %v1618 = vmul.f32 %v1385, 1.442695
    %v1619 = vpow.pop %v1618
    %v1620 = vmul.f32 %v1386, 1.442695
    %v1621 = vpow.pop %v1620
    %v1622 = vmul.f32 %v1387, 1.442695
    %v1623 = vpow.pop %v1622
    %v1624 = vmul.f32 %v1388, 1.442695
    %v1625 = vpow.pop %v1624
    %v1626 = vmul.f32 %v1389, 1.442695
    %v1627 = vpow.pop %v1626
    %v1628 = vmul.f32 %v1390, 1.442695
    %v1629 = vpow.pop %v1628
    %v1630 = vmul.f32 %v1391, 1.442695
    %v1631 = vpow.pop %v1630
    %v1632 = vmul.f32 %v1392, 1.442695
    %v1633 = vpow.pop %v1632
    %v1634 = vmul.f32 %v1393, 1.442695
    %v1635 = vpow.pop %v1634
    %v1636 = vmul.f32 %v1394, 1.442695
    %v1637 = vpow.pop %v1636
    %v1638 = vmul.f32 %v1395, 1.442695
    %v1639 = vpow.pop %v1638
    %v1640 = vmul.f32 %v1396, 1.442695
    %v1641 = vpow.pop %v1640
    %v1642 = vmul.f32 %v1397, 1.442695
    %v1643 = vpow.pop %v1642
    %v1644 = vmul.f32 %v1398, 1.442695
    %v1645 = vpow.pop %v1644
    %v1646 = vmul.f32 %v1399, 1.442695
    %v1647 = vpow.pop %v1646
    %v1648 = vmul.f32 %v1400, 1.442695
    %v1649 = vpow.pop %v1648
    %v1650 = vmul.f32 %v1401, 1.442695
    %v1651 = vpow.pop %v1650
    %v1652 = vmul.f32 %v1402, 1.442695
    %v1653 = vpow.pop %v1652
    %v1654 = vmul.f32 %v1403, 1.442695
    %v1655 = vpow.pop %v1654
    %v1656 = vmul.f32 %v1404, 1.442695
    %v1657 = vpow.pop %v1656
    %v1658 = vmul.f32 %v1405, 1.442695
    %v1659 = vpow.pop %v1658
    %v1660 = vmul.f32 %v1406, 1.442695
    %v1661 = vpow.pop %v1660
    %v1662 = vmul.f32 %v1407, 1.442695
    %v1663 = vpow.pop %v1662
    %v1664 = vadd.f32 %v1409, 1.0
    %v1665 = vadd.f32 %v1411, 1.0
    %v1666 = vadd.f32 %v1413, 1.0
    %v1667 = vadd.f32 %v1415, 1.0
    %v1668 = vadd.f32 %v1417, 1.0
    %v1669 = vadd.f32 %v1419, 1.0
    %v1670 = vadd.f32 %v1421, 1.0
    %v1671 = vadd.f32 %v1423, 1.0
    %v1672 = vadd.f32 %v1425, 1.0
    %v1673 = vadd.f32 %v1427, 1.0
    %v1674 = vadd.f32 %v1429, 1.0
    %v1675 = vadd.f32 %v1431, 1.0
    %v1676 = vadd.f32 %v1433, 1.0
    %v1677 = vadd.f32 %v1435, 1.0
    %v1678 = vadd.f32 %v1437, 1.0
    %v1679 = vadd.f32 %v1439, 1.0
    %v1680 = vadd.f32 %v1441, 1.0
    %v1681 = vadd.f32 %v1443, 1.0
    %v1682 = vadd.f32 %v1445, 1.0
    %v1683 = vadd.f32 %v1447, 1.0
    %v1684 = vadd.f32 %v1449, 1.0
    %v1685 = vadd.f32 %v1451, 1.0
    %v1686 = vadd.f32 %v1453, 1.0
    %v1687 = vadd.f32 %v1455, 1.0
    %v1688 = vadd.f32 %v1457, 1.0
    %v1689 = vadd.f32 %v1459, 1.0
    %v1690 = vadd.f32 %v1461, 1.0
    %v1691 = vadd.f32 %v1463, 1.0
    %v1692 = vadd.f32 %v1465, 1.0
    %v1693 = vadd.f32 %v1467, 1.0
    %v1694 = vadd.f32 %v1469, 1.0
    %v1695 = vadd.f32 %v1471, 1.0
    %v1696 = vadd.f32 %v1473, 1.0
    %v1697 = vadd.f32 %v1475, 1.0
    %v1698 = vadd.f32 %v1477, 1.0
    %v1699 = vadd.f32 %v1479, 1.0
    %v1700 = vadd.f32 %v1481, 1.0
    %v1701 = vadd.f32 %v1483, 1.0
    %v1702 = vadd.f32 %v1485, 1.0
    %v1703 = vadd.f32 %v1487, 1.0
    %v1704 = vadd.f32 %v1489, 1.0
    %v1705 = vadd.f32 %v1491, 1.0
    %v1706 = vadd.f32 %v1493, 1.0
    %v1707 = vadd.f32 %v1495, 1.0
    %v1708 = vadd.f32 %v1497, 1.0
    %v1709 = vadd.f32 %v1499, 1.0
    %v1710 = vadd.f32 %v1501, 1.0
    %v1711 = vadd.f32 %v1503, 1.0
    %v1712 = vadd.f32 %v1505, 1.0
    %v1713 = vadd.f32 %v1507, 1.0
    %v1714 = vadd.f32 %v1509, 1.0
    %v1715 = vadd.f32 %v1511, 1.0
    %v1716 = vadd.f32 %v1513, 1.0
    %v1717 = vadd.f32 %v1515, 1.0
    %v1718 = vadd.f32 %v1517, 1.0
    %v1719 = vadd.f32 %v1519, 1.0
    %v1720 = vadd.f32 %v1521, 1.0
    %v1721 = vadd.f32 %v1523, 1.0
    %v1722 = vadd.f32 %v1525, 1.0
    %v1723 = vadd.f32 %v1527, 1.0
    %v1724 = vadd.f32 %v1529, 1.0
    %v1725 = vadd.f32 %v1531, 1.0
    %v1726 = vadd.f32 %v1533, 1.0
    %v1727 = vadd.f32 %v1535, 1.0
    %v1728 = vadd.f32 %v1537, 1.0
    %v1729 = vadd.f32 %v1539, 1.0
    %v1730 = vadd.f32 %v1541, 1.0
    %v1731 = vadd.f32 %v1543, 1.0
    %v1732 = vadd.f32 %v1545, 1.0
    %v1733 = vadd.f32 %v1547, 1.0
    %v1734 = vadd.f32 %v1549, 1.0
    %v1735 = vadd.f32 %v1551, 1.0
    %v1736 = vadd.f32 %v1553, 1.0
    %v1737 = vadd.f32 %v1555, 1.0
    %v1738 = vadd.f32 %v1557, 1.0
    %v1739 = vadd.f32 %v1559, 1.0
    %v1740 = vadd.f32 %v1561, 1.0
    %v1741 = vadd.f32 %v1563, 1.0
    %v1742 = vadd.f32 %v1565, 1.0
    %v1743 = vadd.f32 %v1567, 1.0
    %v1744 = vadd.f32 %v1569, 1.0
    %v1745 = vadd.f32 %v1571, 1.0
    %v1746 = vadd.f32 %v1573, 1.0
    %v1747 = vadd.f32 %v1575, 1.0
    %v1748 = vadd.f32 %v1577, 1.0
    %v1749 = vadd.f32 %v1579, 1.0
    %v1750 = vadd.f32 %v1581, 1.0
    %v1751 = vadd.f32 %v1583, 1.0
    %v1752 = vadd.f32 %v1585, 1.0
    %v1753 = vadd.f32 %v1587, 1.0
    %v1754 = vadd.f32 %v1589, 1.0
    %v1755 = vadd.f32 %v1591, 1.0
    %v1756 = vadd.f32 %v1593, 1.0
    %v1757 = vadd.f32 %v1595, 1.0
    %v1758 = vadd.f32 %v1597, 1.0
    %v1759 = vadd.f32 %v1599, 1.0
    %v1760 = vadd.f32 %v1601, 1.0
    %v1761 = vadd.f32 %v1603, 1.0
    %v1762 = vadd.f32 %v1605, 1.0
    %v1763 = vadd.f32 %v1607, 1.0
    %v1764 = vadd.f32 %v1609, 1.0
    %v1765 = vadd.f32 %v1611, 1.0
    %v1766 = vadd.f32 %v1613, 1.0
    %v1767 = vadd.f32 %v1615, 1.0
    %v1768 = vadd.f32 %v1617, 1.0
    %v1769 = vadd.f32 %v1619, 1.0
    %v1770 = vadd.f32 %v1621, 1.0
    %v1771 = vadd.f32 %v1623, 1.0
    %v1772 = vadd.f32 %v1625, 1.0
    %v1773 = vadd.f32 %v1627, 1.0
    %v1774 = vadd.f32 %v1629, 1.0
    %v1775 = vadd.f32 %v1631, 1.0
    %v1776 = vadd.f32 %v1633, 1.0
    %v1777 = vadd.f32 %v1635, 1.0
    %v1778 = vadd.f32 %v1637, 1.0
    %v1779 = vadd.f32 %v1639, 1.0
    %v1780 = vadd.f32 %v1641, 1.0
    %v1781 = vadd.f32 %v1643, 1.0
    %v1782 = vadd.f32 %v1645, 1.0
    %v1783 = vadd.f32 %v1647, 1.0
    %v1784 = vadd.f32 %v1649, 1.0
    %v1785 = vadd.f32 %v1651, 1.0
    %v1786 = vadd.f32 %v1653, 1.0
    %v1787 = vadd.f32 %v1655, 1.0
    %v1788 = vadd.f32 %v1657, 1.0
    %v1789 = vadd.f32 %v1659, 1.0
    %v1790 = vadd.f32 %v1661, 1.0
    %v1791 = vadd.f32 %v1663, 1.0
    %v1792 = vrcp.pop %v1664
    %v1793 = vmul.f32 1.0, %v1792
    %v1794 = vrcp.pop %v1665
    %v1795 = vmul.f32 1.0, %v1794
    %v1796 = vrcp.pop %v1666
    %v1797 = vmul.f32 1.0, %v1796
    %v1798 = vrcp.pop %v1667
    %v1799 = vmul.f32 1.0, %v1798
    %v1800 = vrcp.pop %v1668
    %v1801 = vmul.f32 1.0, %v1800
    %v1802 = vrcp.pop %v1669
    %v1803 = vmul.f32 1.0, %v1802
    %v1804 = vrcp.pop %v1670
    %v1805 = vmul.f32 1.0, %v1804
    %v1806 = vrcp.pop %v1671
    %v1807 = vmul.f32 1.0, %v1806
    %v1808 = vrcp.pop %v1672
    %v1809 = vmul.f32 1.0, %v1808
    %v1810 = vrcp.pop %v1673
    %v1811 = vmul.f32 1.0, %v1810
    %v1812 = vrcp.pop %v1674
    %v1813 = vmul.f32 1.0, %v1812
    %v1814 = vrcp.pop %v1675
    %v1815 = vmul.f32 1.0, %v1814
    %v1816 = vrcp.pop %v1676
    %v1817 = vmul.f32 1.0, %v1816
    %v1818 = vrcp.pop %v1677
    %v1819 = vmul.f32 1.0, %v1818
    %v1820 = vrcp.pop %v1678
    %v1821 = vmul.f32 1.0, %v1820
    %v1822 = vrcp.pop %v1679
    %v1823 = vmul.f32 1.0, %v1822
    %v1824 = vrcp.pop %v1680
    %v1825 = vmul.f32 1.0, %v1824
    %v1826 = vrcp.pop %v1681
    %v1827 = vmul.f32 1.0, %v1826
    %v1828 = vrcp.pop %v1682
    %v1829 = vmul.f32 1.0, %v1828
    %v1830 = vrcp.pop %v1683
    %v1831 = vmul.f32 1.0, %v1830
    %v1832 = vrcp.pop %v1684
    %v1833 = vmul.f32 1.0, %v1832
    %v1834 = vrcp.pop %v1685
    %v1835 = vmul.f32 1.0, %v1834
    %v1836 = vrcp.pop %v1686
    %v1837 = vmul.f32 1.0, %v1836
    %v1838 = vrcp.pop %v1687
    %v1839 = vmul.f32 1.0, %v1838
    %v1840 = vrcp.pop %v1688
    %v1841 = vmul.f32 1.0, %v1840
    %v1842 = vrcp.pop %v1689
    %v1843 = vmul.f32 1.0, %v1842
    %v1844 = vrcp.pop %v1690
    %v1845 = vmul.f32 1.0, %v1844
    %v1846 = vrcp.pop %v1691
    %v1847 = vmul.f32 1.0, %v1846
    %v1848 = vrcp.pop %v1692
    %v1849 = vmul.f32 1.0, %v1848
    %v1850 = vrcp.pop %v1693
    %v1851 = vmul.f32 1.0, %v1850
    %v1852 = vrcp.pop %v1694
    %v1853 = vmul.f32 1.0, %v1852
    %v1854 = vrcp.pop %v1695
    %v1855 = vmul.f32 1.0, %v1854
    %v1856 = vrcp.pop %v1696
    %v1857 = vmul.f32 1.0, %v1856
    %v1858 = vrcp.pop %v1697
    %v1859 = vmul.f32 1.0, %v1858
    %v1860 = vrcp.pop %v1698
    %v1861 = vmul.f32 1.0, %v1860
    %v1862 = vrcp.pop %v1699
    %v1863 = vmul.f32 1.0, %v1862
    %v1864 = vrcp.pop %v1700
    %v1865 = vmul.f32 1.0, %v1864
    %v1866 = vrcp.pop %v1701
    %v1867 = vmul.f32 1.0, %v1866
    %v1868 = vrcp.pop %v1702
    %v1869 = vmul.f32 1.0, %v1868
    %v1870 = vrcp.pop %v1703
    %v1871 = vmul.f32 1.0, %v1870
    %v1872 = vrcp.pop %v1704
    %v1873 = vmul.f32 1.0, %v1872
    %v1874 = vrcp.pop %v1705
    %v1875 = vmul.f32 1.0, %v1874
    %v1876 = vrcp.pop %v1706
    %v1877 = vmul.f32 1.0, %v1876
    %v1878 = vrcp.pop %v1707
    %v1879 = vmul.f32 1.0, %v1878
    %v1880 = vrcp.pop %v1708
    %v1881 = vmul.f32 1.0, %v1880
    %v1882 = vrcp.pop %v1709
    %v1883 = vmul.f32 1.0, %v1882
    %v1884 = vrcp.pop %v1710
    %v1885 = vmul.f32 1.0, %v1884
    %v1886 = vrcp.pop %v1711
    %v1887 = vmul.f32 1.0, %v1886
    %v1888 = vrcp.pop %v1712
    %v1889 = vmul.f32 1.0, %v1888
    %v1890 = vrcp.pop %v1713
    %v1891 = vmul.f32 1.0, %v1890
    %v1892 = vrcp.pop %v1714
    %v1893 = vmul.f32 1.0, %v1892
    %v1894 = vrcp.pop %v1715
    %v1895 = vmul.f32 1.0, %v1894
    %v1896 = vrcp.pop %v1716
    %v1897 = vmul.f32 1.0, %v1896
    %v1898 = vrcp.pop %v1717
    %v1899 = vmul.f32 1.0, %v1898
    %v1900 = vrcp.pop %v1718
    %v1901 = vmul.f32 1.0, %v1900
    %v1902 = vrcp.pop %v1719
    %v1903 = vmul.f32 1.0, %v1902
    %v1904 = vrcp.pop %v1720
    %v1905 = vmul.f32 1.0, %v1904
    %v1906 = vrcp.pop %v1721
    %v1907 = vmul.f32 1.0, %v1906
    %v1908 = vrcp.pop %v1722
    %v1909 = vmul.f32 1.0, %v1908
    %v1910 = vrcp.pop %v1723
    %v1911 = vmul.f32 1.0, %v1910
    %v1912 = vrcp.pop %v1724
    %v1913 = vmul.f32 1.0, %v1912
    %v1914 = vrcp.pop %v1725
    %v1915 = vmul.f32 1.0, %v1914
    %v1916 = vrcp.pop %v1726
    %v1917 = vmul.f32 1.0, %v1916
    %v1918 = vrcp.pop %v1727
    %v1919 = vmul.f32 1.0, %v1918
    %v1920 = vrcp.pop %v1728
    %v1921 = vmul.f32 1.0, %v1920
    %v1922 = vrcp.pop %v1729
    %v1923 = vmul.f32 1.0, %v1922
    %v1924 = vrcp.pop %v1730
    %v1925 = vmul.f32 1.0, %v1924
    %v1926 = vrcp.pop %v1731
    %v1927 = vmul.f32 1.0, %v1926
    %v1928 = vrcp.pop %v1732
    %v1929 = vmul.f32 1.0, %v1928
    %v1930 = vrcp.pop %v1733
    %v1931 = vmul.f32 1.0, %v1930
    %v1932 = vrcp.pop %v1734
    %v1933 = vmul.f32 1.0, %v1932
    %v1934 = vrcp.pop %v1735
    %v1935 = vmul.f32 1.0, %v1934
    %v1936 = vrcp.pop %v1736
    %v1937 = vmul.f32 1.0, %v1936
    %v1938 = vrcp.pop %v1737
    %v1939 = vmul.f32 1.0, %v1938
    %v1940 = vrcp.pop %v1738
    %v1941 = vmul.f32 1.0, %v1940
    %v1942 = vrcp.pop %v1739
    %v1943 = vmul.f32 1.0, %v1942
    %v1944 = vrcp.pop %v1740
    %v1945 = vmul.f32 1.0, %v1944
    %v1946 = vrcp.pop %v1741
    %v1947 = vmul.f32 1.0, %v1946
    %v1948 = vrcp.pop %v1742
    %v1949 = vmul.f32 1.0, %v1948
    %v1950 = vrcp.pop %v1743
    %v1951 = vmul.f32 1.0, %v1950
    %v1952 = vrcp.pop %v1744
    %v1953 = vmul.f32 1.0, %v1952
    %v1954 = vrcp.pop %v1745
    %v1955 = vmul.f32 1.0, %v1954
    %v1956 = vrcp.pop %v1746
    %v1957 = vmul.f32 1.0, %v1956
    %v1958 = vrcp.pop %v1747
    %v1959 = vmul.f32 1.0, %v1958
    %v1960 = vrcp.pop %v1748
    %v1961 = vmul.f32 1.0, %v1960
    %v1962 = vrcp.pop %v1749
    %v1963 = vmul.f32 1.0, %v1962
    %v1964 = vrcp.pop %v1750
    %v1965 = vmul.f32 1.0, %v1964
    %v1966 = vrcp.pop %v1751
    %v1967 = vmul.f32 1.0, %v1966
    %v1968 = vrcp.pop %v1752
    %v1969 = vmul.f32 1.0, %v1968
    %v1970 = vrcp.pop %v1753
    %v1971 = vmul.f32 1.0, %v1970
    %v1972 = vrcp.pop %v1754
    %v1973 = vmul.f32 1.0, %v1972
    %v1974 = vrcp.pop %v1755
    %v1975 = vmul.f32 1.0, %v1974
    %v1976 = vrcp.pop %v1756
    %v1977 = vmul.f32 1.0, %v1976
    %v1978 = vrcp.pop %v1757
    %v1979 = vmul.f32 1.0, %v1978
    %v1980 = vrcp.pop %v1758
    %v1981 = vmul.f32 1.0, %v1980
    %v1982 = vrcp.pop %v1759
    %v1983 = vmul.f32 1.0, %v1982
    %v1984 = vrcp.pop %v1760
    %v1985 = vmul.f32 1.0, %v1984
    %v1986 = vrcp.pop %v1761
    %v1987 = vmul.f32 1.0, %v1986
    %v1988 = vrcp.pop %v1762
    %v1989 = vmul.f32 1.0, %v1988
    %v1990 = vrcp.pop %v1763
    %v1991 = vmul.f32 1.0, %v1990
    %v1992 = vrcp.pop %v1764
    %v1993 = vmul.f32 1.0, %v1992
    %v1994 = vrcp.pop %v1765
    %v1995 = vmul.f32 1.0, %v1994
    %v1996 = vrcp.pop %v1766
    %v1997 = vmul.f32 1.0, %v1996
    %v1998 = vrcp.pop %v1767
    %v1999 = vmul.f32 1.0, %v1998
    %v2000 = vrcp.pop %v1768
    %v2001 = vmul.f32 1.0, %v2000
    %v2002 = vrcp.pop %v1769
    %v2003 = vmul.f32 1.0, %v2002
    %v2004 = vrcp.pop %v1770
    %v2005 = vmul.f32 1.0, %v2004
    %v2006 = vrcp.pop %v1771
    %v2007 = vmul.f32 1.0, %v2006
    %v2008 = vrcp.pop %v1772
    %v2009 = vmul.f32 1.0, %v2008
    %v2010 = vrcp.pop %v1773
    %v2011 = vmul.f32 1.0, %v2010
    %v2012 = vrcp.pop %v1774
    %v2013 = vmul.f32 1.0, %v2012
    %v2014 = vrcp.pop %v1775
    %v2015 = vmul.f32 1.0, %v2014
    %v2016 = vrcp.pop %v1776
    %v2017 = vmul.f32 1.0, %v2016
    %v2018 = vrcp.pop %v1777
    %v2019 = vmul.f32 1.0, %v2018
    %v2020 = vrcp.pop %v1778
    %v2021 = vmul.f32 1.0, %v2020
    %v2022 = vrcp.pop %v1779
    %v2023 = vmul.f32 1.0, %v2022
    %v2024 = vrcp.pop %v1780
    %v2025 = vmul.f32 1.0, %v2024
    %v2026 = vrcp.pop %v1781
    %v2027 = vmul.f32 1.0, %v2026
    %v2028 = vrcp.pop %v1782
    %v2029 = vmul.f32 1.0, %v2028
    %v2030 = vrcp.pop %v1783
    %v2031 = vmul.f32 1.0, %v2030
    %v2032 = vrcp.pop %v1784
    %v2033 = vmul.f32 1.0, %v2032
    %v2034 = vrcp.pop %v1785
    %v2035 = vmul.f32 1.0, %v2034
    %v2036 = vrcp.pop %v1786
    %v2037 = vmul.f32 1.0, %v2036
    %v2038 = vrcp.pop %v1787
    %v2039 = vmul.f32 1.0, %v2038
    %v2040 = vrcp.pop %v1788
    %v2041 = vmul.f32 1.0, %v2040
    %v2042 = vrcp.pop %v1789
    %v2043 = vmul.f32 1.0, %v2042
    %v2044 = vrcp.pop %v1790
    %v2045 = vmul.f32 1.0, %v2044
    %v2046 = vrcp.pop %v1791
    %v2047 = vmul.f32 1.0, %v2046
    %v2048 = vmul.f32 %v319, %v1793
    %v2049 = vmul.f32 %v321, %v1795
    %v2050 = vmul.f32 %v576, %v1797
    %v2051 = vmul.f32 %v578, %v1799
    %v2052 = vmul.f32 %v325, %v1801
    %v2053 = vmul.f32 %v327, %v1803
    %v2054 = vmul.f32 %v582, %v1805
    %v2055 = vmul.f32 %v584, %v1807
    %v2056 = vmul.f32 %v331, %v1809
    %v2057 = vmul.f32 %v333, %v1811
    %v2058 = vmul.f32 %v588, %v1813
    %v2059 = vmul.f32 %v590, %v1815
    %v2060 = vmul.f32 %v337, %v1817
    %v2061 = vmul.f32 %v339, %v1819
    %v2062 = vmul.f32 %v594, %v1821
    %v2063 = vmul.f32 %v596, %v1823
    %v2064 = vmul.f32 %v343, %v1825
    %v2065 = vmul.f32 %v345, %v1827
    %v2066 = vmul.f32 %v600, %v1829
    %v2067 = vmul.f32 %v602, %v1831
    %v2068 = vmul.f32 %v349, %v1833
    %v2069 = vmul.f32 %v351, %v1835
    %v2070 = vmul.f32 %v606, %v1837
    %v2071 = vmul.f32 %v608, %v1839
    %v2072 = vmul.f32 %v355, %v1841
    %v2073 = vmul.f32 %v357, %v1843
    %v2074 = vmul.f32 %v612, %v1845
    %v2075 = vmul.f32 %v614, %v1847
    %v2076 = vmul.f32 %v361, %v1849
    %v2077 = vmul.f32 %v363, %v1851
    %v2078 = vmul.f32 %v618, %v1853
    %v2079 = vmul.f32 %v620, %v1855
    %v2080 = vmul.f32 %v367, %v1857
    %v2081 = vmul.f32 %v369, %v1859
    %v2082 = vmul.f32 %v624, %v1861
    %v2083 = vmul.f32 %v626, %v1863
    %v2084 = vmul.f32 %v373, %v1865
    %v2085 = vmul.f32 %v375, %v1867
    %v2086 = vmul.f32 %v630, %v1869
    %v2087 = vmul.f32 %v632, %v1871
    %v2088 = vmul.f32 %v379, %v1873
    %v2089 = vmul.f32 %v381, %v1875
    %v2090 = vmul.f32 %v636, %v1877
    %v2091 = vmul.f32 %v638, %v1879
    %v2092 = vmul.f32 %v385, %v1881
    %v2093 = vmul.f32 %v387, %v1883
    %v2094 = vmul.f32 %v642, %v1885
    %v2095 = vmul.f32 %v644, %v1887
    %v2096 = vmul.f32 %v391, %v1889
    %v2097 = vmul.f32 %v393, %v1891
    %v2098 = vmul.f32 %v648, %v1893
    %v2099 = vmul.f32 %v650, %v1895
    %v2100 = vmul.f32 %v397, %v1897
    %v2101 = vmul.f32 %v399, %v1899
    %v2102 = vmul.f32 %v654, %v1901
    %v2103 = vmul.f32 %v656, %v1903
    %v2104 = vmul.f32 %v403, %v1905
    %v2105 = vmul.f32 %v405, %v1907
    %v2106 = vmul.f32 %v660, %v1909
    %v2107 = vmul.f32 %v662, %v1911
    %v2108 = vmul.f32 %v409, %v1913
    %v2109 = vmul.f32 %v411, %v1915
    %v2110 = vmul.f32 %v666, %v1917
    %v2111 = vmul.f32 %v668, %v1919
    %v2112 = vmul.f32 %v415, %v1921
    %v2113 = vmul.f32 %v417, %v1923
    %v2114 = vmul.f32 %v672, %v1925
    %v2115 = vmul.f32 %v674, %v1927
    %v2116 = vmul.f32 %v421, %v1929
    %v2117 = vmul.f32 %v423, %v1931
    %v2118 = vmul.f32 %v678, %v1933
    %v2119 = vmul.f32 %v680, %v1935
    %v2120 = vmul.f32 %v427, %v1937
    %v2121 = vmul.f32 %v429, %v1939
    %v2122 = vmul.f32 %v684, %v1941
    %v2123 = vmul.f32 %v686, %v1943
    %v2124 = vmul.f32 %v433, %v1945
    %v2125 = vmul.f32 %v435, %v1947
    %v2126 = vmul.f32 %v690, %v1949
    %v2127 = vmul.f32 %v692, %v1951
    %v2128 = vmul.f32 %v439, %v1953
    %v2129 = vmul.f32 %v441, %v1955
    %v2130 = vmul.f32 %v696, %v1957
    %v2131 = vmul.f32 %v698, %v1959
    %v2132 = vmul.f32 %v445, %v1961
    %v2133 = vmul.f32 %v447, %v1963
    %v2134 = vmul.f32 %v702, %v1965
    %v2135 = vmul.f32 %v704, %v1967
    %v2136 = vmul.f32 %v451, %v1969
    %v2137 = vmul.f32 %v453, %v1971
    %v2138 = vmul.f32 %v708, %v1973
    %v2139 = vmul.f32 %v710, %v1975
    %v2140 = vmul.f32 %v457, %v1977
    %v2141 = vmul.f32 %v459, %v1979
    %v2142 = vmul.f32 %v714, %v1981
    %v2143 = vmul.f32 %v716, %v1983
    %v2144 = vmul.f32 %v463, %v1985
    %v2145 = vmul.f32 %v465, %v1987
    %v2146 = vmul.f32 %v720, %v1989
    %v2147 = vmul.f32 %v722, %v1991
    %v2148 = vmul.f32 %v469, %v1993
    %v2149 = vmul.f32 %v471, %v1995
    %v2150 = vmul.f32 %v726, %v1997
    %v2151 = vmul.f32 %v728, %v1999
    %v2152 = vmul.f32 %v475, %v2001
    %v2153 = vmul.f32 %v477, %v2003
    %v2154 = vmul.f32 %v732, %v2005
    %v2155 = vmul.f32 %v734, %v2007
    %v2156 = vmul.f32 %v481, %v2009
    %v2157 = vmul.f32 %v483, %v2011
    %v2158 = vmul.f32 %v738, %v2013
    %v2159 = vmul.f32 %v740, %v2015
    %v2160 = vmul.f32 %v487, %v2017
    %v2161 = vmul.f32 %v489, %v2019
    %v2162 = vmul.f32 %v744, %v2021
    %v2163 = vmul.f32 %v746, %v2023
    %v2164 = vmul.f32 %v493, %v2025
    %v2165 = vmul.f32 %v495, %v2027
    %v2166 = vmul.f32 %v750, %v2029
    %v2167 = vmul.f32 %v752, %v2031
    %v2168 = vmul.f32 %v499, %v2033
    %v2169 = vmul.f32 %v501, %v2035
    %v2170 = vmul.f32 %v756, %v2037
    %v2171 = vmul.f32 %v758, %v2039
    %v2172 = vmul.f32 %v505, %v2041
    %v2173 = vmul.f32 %v507, %v2043
    %v2174 = vmul.f32 %v762, %v2045
    %v2175 = vmul.f32 %v764, %v2047
    %v2176 = vmul.f32 %v2048, %v833
    %v2177 = vmul.f32 %v2049, %v835
    %v2178 = vmul.f32 %v2050, %v1090
    %v2179 = vmul.f32 %v2051, %v1092
    %v2180 = vmul.f32 %v2052, %v839
    %v2181 = vmul.f32 %v2053, %v841
    %v2182 = vmul.f32 %v2054, %v1096
    %v2183 = vmul.f32 %v2055, %v1098
    %v2184 = vmul.f32 %v2056, %v845
    %v2185 = vmul.f32 %v2057, %v847
    %v2186 = vmul.f32 %v2058, %v1102
    %v2187 = vmul.f32 %v2059, %v1104
    %v2188 = vmul.f32 %v2060, %v851
    %v2189 = vmul.f32 %v2061, %v853
    %v2190 = vmul.f32 %v2062, %v1108
    %v2191 = vmul.f32 %v2063, %v1110
    %v2192 = vmul.f32 %v2064, %v857
    %v2193 = vmul.f32 %v2065, %v859
    %v2194 = vmul.f32 %v2066, %v1114
    %v2195 = vmul.f32 %v2067, %v1116
    %v2196 = vmul.f32 %v2068, %v863
    %v2197 = vmul.f32 %v2069, %v865
    %v2198 = vmul.f32 %v2070, %v1120
    %v2199 = vmul.f32 %v2071, %v1122
    %v2200 = vmul.f32 %v2072, %v869
    %v2201 = vmul.f32 %v2073, %v871
    %v2202 = vmul.f32 %v2074, %v1126
    %v2203 = vmul.f32 %v2075, %v1128
    %v2204 = vmul.f32 %v2076, %v875
    %v2205 = vmul.f32 %v2077, %v877
    %v2206 = vmul.f32 %v2078, %v1132
    %v2207 = vmul.f32 %v2079, %v1134
    %v2208 = vmul.f32 %v2080, %v881
    %v2209 = vmul.f32 %v2081, %v883
    %v2210 = vmul.f32 %v2082, %v1138
    %v2211 = vmul.f32 %v2083, %v1140
    %v2212 = vmul.f32 %v2084, %v887
    %v2213 = vmul.f32 %v2085, %v889
    %v2214 = vmul.f32 %v2086, %v1144
    %v2215 = vmul.f32 %v2087, %v1146
    %v2216 = vmul.f32 %v2088, %v893
    %v2217 = vmul.f32 %v2089, %v895
    %v2218 = vmul.f32 %v2090, %v1150
    %v2219 = vmul.f32 %v2091, %v1152
    %v2220 = vmul.f32 %v2092, %v899
    %v2221 = vmul.f32 %v2093, %v901
    %v2222 = vmul.f32 %v2094, %v1156
    %v2223 = vmul.f32 %v2095, %v1158
    %v2224 = vmul.f32 %v2096, %v905
    %v2225 = vmul.f32 %v2097, %v907
    %v2226 = vmul.f32 %v2098, %v1162
    %v2227 = vmul.f32 %v2099, %v1164
    %v2228 = vmul.f32 %v2100, %v911
    %v2229 = vmul.f32 %v2101, %v913
    %v2230 = vmul.f32 %v2102, %v1168
    %v2231 = vmul.f32 %v2103, %v1170
    %v2232 = vmul.f32 %v2104, %v917
    %v2233 = vmul.f32 %v2105, %v919
    %v2234 = vmul.f32 %v2106, %v1174
    %v2235 = vmul.f32 %v2107, %v1176
    %v2236 = vmul.f32 %v2108, %v923
    %v2237 = vmul.f32 %v2109, %v925
    %v2238 = vmul.f32 %v2110, %v1180
    %v2239 = vmul.f32 %v2111, %v1182
    %v2240 = vmul.f32 %v2112, %v929
    %v2241 = vmul.f32 %v2113, %v931
    %v2242 = vmul.f32 %v2114, %v1186
    %v2243 = vmul.f32 %v2115, %v1188
    %v2244 = vmul.f32 %v2116, %v935
    %v2245 = vmul.f32 %v2117, %v937
    %v2246 = vmul.f32 %v2118, %v1192
    %v2247 = vmul.f32 %v2119, %v1194
    %v2248 = vmul.f32 %v2120, %v941
    %v2249 = vmul.f32 %v2121, %v943
    %v2250 = vmul.f32 %v2122, %v1198
    %v2251 = vmul.f32 %v2123, %v1200
    %v2252 = vmul.f32 %v2124, %v947
    %v2253 = vmul.f32 %v2125, %v949
    %v2254 = vmul.f32 %v2126, %v1204
    %v2255 = vmul.f32 %v2127, %v1206
    %v2256 = vmul.f32 %v2128, %v953
    %v2257 = vmul.f32 %v2129, %v955
    %v2258 = vmul.f32 %v2130, %v1210
    %v2259 = vmul.f32 %v2131, %v1212
    %v2260 = vmul.f32 %v2132, %v959
    %v2261 = vmul.f32 %v2133, %v961
    %v2262 = vmul.f32 %v2134, %v1216
    %v2263 = vmul.f32 %v2135, %v1218
    %v2264 = vmul.f32 %v2136, %v965
    %v2265 = vmul.f32 %v2137, %v967
    %v2266 = vmul.f32 %v2138, %v1222
    %v2267 = vmul.f32 %v2139, %v1224
    %v2268 = vmul.f32 %v2140, %v971
    %v2269 = vmul.f32 %v2141, %v973
    %v2270 = vmul.f32 %v2142, %v1228
    %v2271 = vmul.f32 %v2143, %v1230
    %v2272 = vmul.f32 %v2144, %v977
    %v2273 = vmul.f32 %v2145, %v979
    %v2274 = vmul.f32 %v2146, %v1234
    %v2275 = vmul.f32 %v2147, %v1236
    %v2276 = vmul.f32 %v2148, %v983
    %v2277 = vmul.f32 %v2149, %v985
    %v2278 = vmul.f32 %v2150, %v1240
    %v2279 = vmul.f32 %v2151, %v1242
    %v2280 = vmul.f32 %v2152, %v989
    %v2281 = vmul.f32 %v2153, %v991
    %v2282 = vmul.f32 %v2154, %v1246
    %v2283 = vmul.f32 %v2155, %v1248
    %v2284 = vmul.f32 %v2156, %v995
    %v2285 = vmul.f32 %v2157, %v997
    %v2286 = vmul.f32 %v2158, %v1252
    %v2287 = vmul.f32 %v2159, %v1254
    %v2288 = vmul.f32 %v2160, %v1001
    %v2289 = vmul.f32 %v2161, %v1003
    %v2290 = vmul.f32 %v2162, %v1258
    %v2291 = vmul.f32 %v2163, %v1260
    %v2292 = vmul.f32 %v2164, %v1007
    %v2293 = vmul.f32 %v2165, %v1009
    %v2294 = vmul.f32 %v2166, %v1264
    %v2295 = vmul.f32 %v2167, %v1266
    %v2296 = vmul.f32 %v2168, %v1013
    %v2297 = vmul.f32 %v2169, %v1015
    %v2298 = vmul.f32 %v2170, %v1270
    %v2299 = vmul.f32 %v2171, %v1272
    %v2300 = vmul.f32 %v2172, %v1019
    %v2301 = vmul.f32 %v2173, %v1021
    %v2302 = vmul.f32 %v2174, %v1276
    %v2303 = vmul.f32 %v2175, %v1278
    %v2304 = vld [vmem:[#allocation2] sm:$0xff]
    %v2305 = vld [vmem:[#allocation2 + $0x8] sm:$0xff]
    %v2306 = vld [vmem:[#allocation2 + $0x10] sm:$0xff]
    %v2307 = vld [vmem:[#allocation2 + $0x18] sm:$0xff]
    %v2308 = vld [vmem:[#allocation2 + $0x20] sm:$0xff]
    %v2309 = vld [vmem:[#allocation2 + $0x28] sm:$0xff]
    %v2310 = vld [vmem:[#allocation2 + $0x30] sm:$0xff]
    %v2311 = vld [vmem:[#allocation2 + $0x38] sm:$0xff]
    %v2312 = vld [vmem:[#allocation2 + $0x40] sm:$0xff]
    %v2313 = vld [vmem:[#allocation2 + $0x48] sm:$0xff]
    %v2314 = vld [vmem:[#allocation2 + $0x50] sm:$0xff]
    %v2315 = vld [vmem:[#allocation2 + $0x58] sm:$0xff]
    %v2316 = vld [vmem:[#allocation2 + $0x60] sm:$0xff]
    %v2317 = vld [vmem:[#allocation2 + $0x68] sm:$0xff]
    %v2318 = vld [vmem:[#allocation2 + $0x70] sm:$0xff]
    %v2319 = vld [vmem:[#allocation2 + $0x78] sm:$0xff]
    %v2320 = vld [vmem:[#allocation2 + $0x80] sm:$0xff]
    %v2321 = vld [vmem:[#allocation2 + $0x88] sm:$0xff]
    %v2322 = vld [vmem:[#allocation2 + $0x90] sm:$0xff]
    %v2323 = vld [vmem:[#allocation2 + $0x98] sm:$0xff]
    %v2324 = vld [vmem:[#allocation2 + $0xa0] sm:$0xff]
    %v2325 = vld [vmem:[#allocation2 + $0xa8] sm:$0xff]
    %v2326 = vld [vmem:[#allocation2 + $0xb0] sm:$0xff]
    %v2327 = vld [vmem:[#allocation2 + $0xb8] sm:$0xff]
    %v2328 = vld [vmem:[#allocation2 + $0xc0] sm:$0xff]
    %v2329 = vld [vmem:[#allocation2 + $0xc8] sm:$0xff]
    %v2330 = vld [vmem:[#allocation2 + $0xd0] sm:$0xff]
    %v2331 = vld [vmem:[#allocation2 + $0xd8] sm:$0xff]
    %v2332 = vld [vmem:[#allocation2 + $0xe0] sm:$0xff]
    %v2333 = vld [vmem:[#allocation2 + $0xe8] sm:$0xff]
    %v2334 = vld [vmem:[#allocation2 + $0xf0] sm:$0xff]
    %v2335 = vld [vmem:[#allocation2 + $0xf8] sm:$0xff]
    %v2336 = vld [vmem:[#allocation8] sm:$0xff]
    %v2337 = vld [vmem:[#allocation8 + $0x8] sm:$0xff]
    %v2338 = vld [vmem:[#allocation8 + $0x10] sm:$0xff]
    %v2339 = vld [vmem:[#allocation8 + $0x18] sm:$0xff]
    %v2340 = vld [vmem:[#allocation8 + $0x20] sm:$0xff]
    %v2341 = vld [vmem:[#allocation8 + $0x28] sm:$0xff]
    %v2342 = vld [vmem:[#allocation8 + $0x30] sm:$0xff]
    %v2343 = vld [vmem:[#allocation8 + $0x38] sm:$0xff]
    %v2344 = vld [vmem:[#allocation8 + $0x40] sm:$0xff]
    %v2345 = vld [vmem:[#allocation8 + $0x48] sm:$0xff]
    %v2346 = vld [vmem:[#allocation8 + $0x50] sm:$0xff]
    %v2347 = vld [vmem:[#allocation8 + $0x58] sm:$0xff]
    %v2348 = vld [vmem:[#allocation8 + $0x60] sm:$0xff]
    %v2349 = vld [vmem:[#allocation8 + $0x68] sm:$0xff]
    %v2350 = vld [vmem:[#allocation8 + $0x70] sm:$0xff]
    %v2351 = vld [vmem:[#allocation8 + $0x78] sm:$0xff]
    %v2352 = vld [vmem:[#allocation8 + $0x80] sm:$0xff]
    %v2353 = vld [vmem:[#allocation8 + $0x88] sm:$0xff]
    %v2354 = vld [vmem:[#allocation8 + $0x90] sm:$0xff]
    %v2355 = vld [vmem:[#allocation8 + $0x98] sm:$0xff]
    %v2356 = vld [vmem:[#allocation8 + $0xa0] sm:$0xff]
    %v2357 = vld [vmem:[#allocation8 + $0xa8] sm:$0xff]
    %v2358 = vld [vmem:[#allocation8 + $0xb0] sm:$0xff]
    %v2359 = vld [vmem:[#allocation8 + $0xb8] sm:$0xff]
    %v2360 = vld [vmem:[#allocation8 + $0xc0] sm:$0xff]
    %v2361 = vld [vmem:[#allocation8 + $0xc8] sm:$0xff]
    %v2362 = vld [vmem:[#allocation8 + $0xd0] sm:$0xff]
    %v2363 = vld [vmem:[#allocation8 + $0xd8] sm:$0xff]
    %v2364 = vld [vmem:[#allocation8 + $0xe0] sm:$0xff]
    %v2365 = vld [vmem:[#allocation8 + $0xe8] sm:$0xff]
    %v2366 = vld [vmem:[#allocation8 + $0xf0] sm:$0xff]
    %v2367 = vld [vmem:[#allocation8 + $0xf8] sm:$0xff]
    %v2368 = vld [vmem:[#allocation8 + $0x100] sm:$0xff]
    %v2369 = vld [vmem:[#allocation8 + $0x108] sm:$0xff]
    %v2370 = vld [vmem:[#allocation8 + $0x110] sm:$0xff]
    %v2371 = vld [vmem:[#allocation8 + $0x118] sm:$0xff]
    %v2372 = vld [vmem:[#allocation8 + $0x120] sm:$0xff]
    %v2373 = vld [vmem:[#allocation8 + $0x128] sm:$0xff]
    %v2374 = vld [vmem:[#allocation8 + $0x130] sm:$0xff]
    %v2375 = vld [vmem:[#allocation8 + $0x138] sm:$0xff]
    %v2376 = vld [vmem:[#allocation8 + $0x140] sm:$0xff]
    %v2377 = vld [vmem:[#allocation8 + $0x148] sm:$0xff]
    %v2378 = vld [vmem:[#allocation8 + $0x150] sm:$0xff]
    %v2379 = vld [vmem:[#allocation8 + $0x158] sm:$0xff]
    %v2380 = vld [vmem:[#allocation8 + $0x160] sm:$0xff]
    %v2381 = vld [vmem:[#allocation8 + $0x168] sm:$0xff]
    %v2382 = vld [vmem:[#allocation8 + $0x170] sm:$0xff]
    %v2383 = vld [vmem:[#allocation8 + $0x178] sm:$0xff]
    %v2384 = vld [vmem:[#allocation8 + $0x180] sm:$0xff]
    %v2385 = vld [vmem:[#allocation8 + $0x188] sm:$0xff]
    %v2386 = vld [vmem:[#allocation8 + $0x190] sm:$0xff]
    %v2387 = vld [vmem:[#allocation8 + $0x198] sm:$0xff]
    %v2388 = vld [vmem:[#allocation8 + $0x1a0] sm:$0xff]
    %v2389 = vld [vmem:[#allocation8 + $0x1a8] sm:$0xff]
    %v2390 = vld [vmem:[#allocation8 + $0x1b0] sm:$0xff]
    %v2391 = vld [vmem:[#allocation8 + $0x1b8] sm:$0xff]
    %v2392 = vld [vmem:[#allocation8 + $0x1c0] sm:$0xff]
    %v2393 = vld [vmem:[#allocation8 + $0x1c8] sm:$0xff]
    %v2394 = vld [vmem:[#allocation8 + $0x1d0] sm:$0xff]
    %v2395 = vld [vmem:[#allocation8 + $0x1d8] sm:$0xff]
    %v2396 = vld [vmem:[#allocation8 + $0x1e0] sm:$0xff]
    %v2397 = vld [vmem:[#allocation8 + $0x1e8] sm:$0xff]
    %v2398 = vld [vmem:[#allocation8 + $0x1f0] sm:$0xff]
    %v2399 = vld [vmem:[#allocation8 + $0x1f8] sm:$0xff]
    %2400 = vmatprep.subr.mxu0 0.0
    %2401 = vmatpush1.msra.mxu0 %v2336
    %2402 = vmatprep.subr.mxu0 0.0
    %2403 = vmatpush1.msra.mxu0 %v2337
    %2404 = vmatprep.subr.mxu0 0.0
    %2405 = vmatpush1.msra.mxu0 %v2338
    %2406 = vmatprep.subr.mxu0 0.0
    %2407 = vmatpush1.msra.mxu0 %v2339
    %2408 = vmatprep.subr.mxu0 0.0
    %2409 = vmatpush1.msra.mxu0 %v2340
    %2410 = vmatprep.subr.mxu0 0.0
    %2411 = vmatpush1.msra.mxu0 %v2341
    %2412 = vmatprep.subr.mxu0 0.0
    %2413 = vmatpush1.msra.mxu0 %v2342
    %2414 = vmatprep.subr.mxu0 0.0
    %2415 = vmatpush1.msra.mxu0 %v2343
    %2416 = vmatprep.subr.mxu0 0.0
    %2417 = vmatpush1.msra.mxu0 %v2344
    %2418 = vmatprep.subr.mxu0 0.0
    %2419 = vmatpush1.msra.mxu0 %v2345
    %2420 = vmatprep.subr.mxu0 0.0
    %2421 = vmatpush1.msra.mxu0 %v2346
    %2422 = vmatprep.subr.mxu0 0.0
    %2423 = vmatpush1.msra.mxu0 %v2347
    %2424 = vmatprep.subr.mxu0 0.0
    %2425 = vmatpush1.msra.mxu0 %v2348
    %2426 = vmatprep.subr.mxu0 0.0
    %2427 = vmatpush1.msra.mxu0 %v2349
    %2428 = vmatprep.subr.mxu0 0.0
    %2429 = vmatpush1.msra.mxu0 %v2350
    %2430 = vmatprep.subr.mxu0 0.0
    %2431 = vmatpush1.msra.mxu0 %v2351
    %2432 = vmatprep.subr.mxu0 0.0
    %2433 = vmatpush1.msra.mxu0 %v2352
    %2434 = vmatprep.subr.mxu0 0.0
    %2435 = vmatpush1.msra.mxu0 %v2353
    %2436 = vmatprep.subr.mxu0 0.0
    %2437 = vmatpush1.msra.mxu0 %v2354
    %2438 = vmatprep.subr.mxu0 0.0
    %2439 = vmatpush1.msra.mxu0 %v2355
    %2440 = vmatprep.subr.mxu0 0.0
    %2441 = vmatpush1.msra.mxu0 %v2356
    %2442 = vmatprep.subr.mxu0 0.0
    %2443 = vmatpush1.msra.mxu0 %v2357
    %2444 = vmatprep.subr.mxu0 0.0
    %2445 = vmatpush1.msra.mxu0 %v2358
    %2446 = vmatprep.subr.mxu0 0.0
    %2447 = vmatpush1.msra.mxu0 %v2359
    %2448 = vmatprep.subr.mxu0 0.0
    %2449 = vmatpush1.msra.mxu0 %v2360
    %2450 = vmatprep.subr.mxu0 0.0
    %2451 = vmatpush1.msra.mxu0 %v2361
    %2452 = vmatprep.subr.mxu0 0.0
    %2453 = vmatpush1.msra.mxu0 %v2362
    %2454 = vmatprep.subr.mxu0 0.0
    %2455 = vmatpush1.msra.mxu0 %v2363
    %2456 = vmatprep.subr.mxu0 0.0
    %2457 = vmatpush1.msra.mxu0 %v2364
    %2458 = vmatprep.subr.mxu0 0.0
    %2459 = vmatpush1.msra.mxu0 %v2365
    %2460 = vmatprep.subr.mxu0 0.0
    %2461 = vmatpush1.msra.mxu0 %v2366
    %2462 = vmatprep.subr.mxu0 0.0
    %2463 = vmatpush1.msra.mxu0 %v2367
    %2464 = vmatprep.mubr.f32.mxu0 %v2177
    %2465 = vmatmul.mubr.f32.gmra.mrb[0].mxu0 %v2176
    %v2466 = vpop.f32.mrb[0].mxu0
    %v2467 = vadd.f32 0.0, %v2466
    %v2468 = vpop.f32.mrb[0].mxu0
    %2469 = vmatprep.mubr.f32.mxu0 %v2181
    %2470 = vmatmul.mubr.f32.gmra.mrb[0].mxu0 %v2180
    %v2471 = vpop.f32.mrb[0].mxu0
    %v2472 = vadd.f32 0.0, %v2471
    %v2473 = vpop.f32.mrb[0].mxu0
    %2474 = vmatprep.mubr.f32.mxu0 %v2185
    %2475 = vmatmul.mubr.f32.gmra.mrb[0].mxu0 %v2184
    %v2476 = vpop.f32.mrb[0].mxu0
    %v2477 = vadd.f32 0.0, %v2476
    %v2478 = vpop.f32.mrb[0].mxu0
    %2479 = vmatprep.mubr.f32.mxu0 %v2189
    %2480 = vmatmul.mubr.f32.gmra.mrb[0].mxu0 %v2188
    %v2481 = vpop.f32.mrb[0].mxu0
    %v2482 = vadd.f32 0.0, %v2481
    %v2483 = vpop.f32.mrb[0].mxu0
    %2484 = vmatprep.mubr.f32.mxu0 %v2193
    %2485 = vmatmul.mubr.f32.gmra.mrb[0].mxu0 %v2192
    %v2486 = vpop.f32.mrb[0].mxu0
    %v2487 = vadd.f32 0.0, %v2486
    %v2488 = vpop.f32.mrb[0].mxu0
    %2489 = vmatprep.mubr.f32.mxu0 %v2197
    %2490 = vmatmul.mubr.f32.gmra.mrb[0].mxu0 %v2196
    %v2491 = vpop.f32.mrb[0].mxu0
    %v2492 = vadd.f32 0.0, %v2491
    %v2493 = vpop.f32.mrb[0].mxu0
    %2494 = vmatprep.mubr.f32.mxu0 %v2201
    %2495 = vmatmul.mubr.f32.gmra.mrb[0].mxu0 %v2200
    %v2496 = vpop.f32.mrb[0].mxu0
    %v2497 = vadd.f32 0.0, %v2496
    %v2498 = vpop.f32.mrb[0].mxu0
    %2499 = vmatprep.mubr.f32.mxu0 %v2205
    %2500 = vmatmul.mubr.f32.gmra.mrb[0].mxu0 %v2204
    %v2501 = vpop.f32.mrb[0].mxu0
    %v2502 = vadd.f32 0.0, %v2501
    %v2503 = vpop.f32.mrb[0].mxu0
    %2504 = vmatprep.mubr.f32.mxu0 %v2209
    %2505 = vmatmul.mubr.f32.gmra.mrb[0].mxu0 %v2208
    %v2506 = vpop.f32.mrb[0].mxu0
    %v2507 = vadd.f32 0.0, %v2506
    %v2508 = vpop.f32.mrb[0].mxu0
    %2509 = vmatprep.mubr.f32.mxu0 %v2213
    %2510 = vmatmul.mubr.f32.gmra.mrb[0].mxu0 %v2212
    %v2511 = vpop.f32.mrb[0].mxu0
    %v2512 = vadd.f32 0.0, %v2511
    %v2513 = vpop.f32.mrb[0].mxu0
    %2514 = vmatprep.mubr.f32.mxu0 %v2217
    %2515 = vmatmul.mubr.f32.gmra.mrb[0].mxu0 %v2216
    %v2516 = vpop.f32.mrb[0].mxu0
    %v2517 = vadd.f32 0.0, %v2516
    %v2518 = vpop.f32.mrb[0].mxu0
    %2519 = vmatprep.mubr.f32.mxu0 %v2221
    %2520 = vmatmul.mubr.f32.gmra.mrb[0].mxu0 %v2220
    %v2521 = vpop.f32.mrb[0].mxu0
    %v2522 = vadd.f32 0.0, %v2521
    %v2523 = vpop.f32.mrb[0].mxu0
    %2524 = vmatprep.mubr.f32.mxu0 %v2225
    %2525 = vmatmul.mubr.f32.gmra.mrb[0].mxu0 %v2224
    %v2526 = vpop.f32.mrb[0].mxu0
    %v2527 = vadd.f32 0.0, %v2526
    %v2528 = vpop.f32.mrb[0].mxu0
    %2529 = vmatprep.mubr.f32.mxu0 %v2229
    %2530 = vmatmul.mubr.f32.gmra.mrb[0].mxu0 %v2228
    %v2531 = vpop.f32.mrb[0].mxu0
    %v2532 = vadd.f32 0.0, %v2531
    %v2533 = vpop.f32.mrb[0].mxu0
    %2534 = vmatprep.mubr.f32.mxu0 %v2233
    %2535 = vmatmul.mubr.f32.gmra.mrb[0].mxu0 %v2232
    %v2536 = vpop.f32.mrb[0].mxu0
    %v2537 = vadd.f32 0.0, %v2536
    %v2538 = vpop.f32.mrb[0].mxu0
    %2539 = vmatprep.mubr.f32.mxu0 %v2237
    %2540 = vmatmul.mubr.f32.gmra.mrb[0].mxu0 %v2236
    %v2541 = vpop.f32.mrb[0].mxu0
    %v2542 = vadd.f32 0.0, %v2541
    %v2543 = vpop.f32.mrb[0].mxu0
    %2544 = vmatprep.mubr.f32.mxu0 %v2241
    %2545 = vmatmul.mubr.f32.gmra.mrb[0].mxu0 %v2240
    %v2546 = vpop.f32.mrb[0].mxu0
    %v2547 = vadd.f32 0.0, %v2546
    %v2548 = vpop.f32.mrb[0].mxu0
    %2549 = vmatprep.mubr.f32.mxu0 %v2245
    %2550 = vmatmul.mubr.f32.gmra.mrb[0].mxu0 %v2244
    %v2551 = vpop.f32.mrb[0].mxu0
    %v2552 = vadd.f32 0.0, %v2551
    %v2553 = vpop.f32.mrb[0].mxu0
    %2554 = vmatprep.mubr.f32.mxu0 %v2249
    %2555 = vmatmul.mubr.f32.gmra.mrb[0].mxu0 %v2248
    %v2556 = vpop.f32.mrb[0].mxu0
    %v2557 = vadd.f32 0.0, %v2556
    %v2558 = vpop.f32.mrb[0].mxu0
    %2559 = vmatprep.mubr.f32.mxu0 %v2253
    %2560 = vmatmul.mubr.f32.gmra.mrb[0].mxu0 %v2252
    %v2561 = vpop.f32.mrb[0].mxu0
    %v2562 = vadd.f32 0.0, %v2561
    %v2563 = vpop.f32.mrb[0].mxu0
    %2564 = vmatprep.mubr.f32.mxu0 %v2257
    %2565 = vmatmul.mubr.f32.gmra.mrb[0].mxu0 %v2256
    %v2566 = vpop.f32.mrb[0].mxu0
    %v2567 = vadd.f32 0.0, %v2566
    %v2568 = vpop.f32.mrb[0].mxu0
    %2569 = vmatprep.mubr.f32.mxu0 %v2261
    %2570 = vmatmul.mubr.f32.gmra.mrb[0].mxu0 %v2260
    %v2571 = vpop.f32.mrb[0].mxu0
    %v2572 = vadd.f32 0.0, %v2571
    %v2573 = vpop.f32.mrb[0].mxu0
    %2574 = vmatprep.mubr.f32.mxu0 %v2265
    %2575 = vmatmul.mubr.f32.gmra.mrb[0].mxu0 %v2264
    %v2576 = vpop.f32.mrb[0].mxu0
    %v2577 = vadd.f32 0.0, %v2576
    %v2578 = vpop.f32.mrb[0].mxu0
    %2579 = vmatprep.mubr.f32.mxu0 %v2269
    %2580 = vmatmul.mubr.f32.gmra.mrb[0].mxu0 %v2268
    %v2581 = vpop.f32.mrb[0].mxu0
    %v2582 = vadd.f32 0.0, %v2581
    %v2583 = vpop.f32.mrb[0].mxu0
    %2584 = vmatprep.mubr.f32.mxu0 %v2273
    %2585 = vmatmul.mubr.f32.gmra.mrb[0].mxu0 %v2272
    %v2586 = vpop.f32.mrb[0].mxu0
    %v2587 = vadd.f32 0.0, %v2586
    %v2588 = vpop.f32.mrb[0].mxu0
    %2589 = vmatprep.mubr.f32.mxu0 %v2277
    %2590 = vmatmul.mubr.f32.gmra.mrb[0].mxu0 %v2276
    %v2591 = vpop.f32.mrb[0].mxu0
    %v2592 = vadd.f32 0.0, %v2591
    %v2593 = vpop.f32.mrb[0].mxu0
    %2594 = vmatprep.mubr.f32.mxu0 %v2281
    %2595 = vmatmul.mubr.f32.gmra.mrb[0].mxu0 %v2280
    %v2596 = vpop.f32.mrb[0].mxu0
    %v2597 = vadd.f32 0.0, %v2596
    %v2598 = vpop.f32.mrb[0].mxu0
    %2599 = vmatprep.mubr.f32.mxu0 %v2285
    %2600 = vmatmul.mubr.f32.gmra.mrb[0].mxu0 %v2284
    %v2601 = vpop.f32.mrb[0].mxu0
    %v2602 = vadd.f32 0.0, %v2601
    %v2603 = vpop.f32.mrb[0].mxu0
    %2604 = vmatprep.mubr.f32.mxu0 %v2289
    %2605 = vmatmul.mubr.f32.gmra.mrb[0].mxu0 %v2288
    %v2606 = vpop.f32.mrb[0].mxu0
    %v2607 = vadd.f32 0.0, %v2606
    %v2608 = vpop.f32.mrb[0].mxu0
    %2609 = vmatprep.mubr.f32.mxu0 %v2293
    %2610 = vmatmul.mubr.f32.gmra.mrb[0].mxu0 %v2292
    %v2611 = vpop.f32.mrb[0].mxu0
    %v2612 = vadd.f32 0.0, %v2611
    %v2613 = vpop.f32.mrb[0].mxu0
    %2614 = vmatprep.mubr.f32.mxu0 %v2297
    %2615 = vmatmul.mubr.f32.gmra.mrb[0].mxu0 %v2296
    %v2616 = vpop.f32.mrb[0].mxu0
    %v2617 = vadd.f32 0.0, %v2616
    %v2618 = vpop.f32.mrb[0].mxu0
    %2619 = vmatprep.mubr.f32.mxu0 %v2301
    %2620 = vmatmul.mubr.f32.gmra.mrb[0].mxu0 %v2300
    %v2621 = vpop.f32.mrb[0].mxu0
    %v2622 = vadd.f32 0.0, %v2621
    %v2623 = vpop.f32.mrb[0].mxu0
    %2624 = vdwg.mxu0
    %2625 = vmatprep.subr.mxu0 0.0
    %2626 = vmatpush1.msra.mxu0 %v2368
    %2627 = vmatprep.subr.mxu0 0.0
    %2628 = vmatpush1.msra.mxu0 %v2369
    %2629 = vmatprep.subr.mxu0 0.0
    %2630 = vmatpush1.msra.mxu0 %v2370
    %2631 = vmatprep.subr.mxu0 0.0
    %2632 = vmatpush1.msra.mxu0 %v2371
    %2633 = vmatprep.subr.mxu0 0.0
    %2634 = vmatpush1.msra.mxu0 %v2372
    %2635 = vmatprep.subr.mxu0 0.0
    %2636 = vmatpush1.msra.mxu0 %v2373
    %2637 = vmatprep.subr.mxu0 0.0
    %2638 = vmatpush1.msra.mxu0 %v2374
    %2639 = vmatprep.subr.mxu0 0.0
    %2640 = vmatpush1.msra.mxu0 %v2375
    %2641 = vmatprep.subr.mxu0 0.0
    %2642 = vmatpush1.msra.mxu0 %v2376
    %2643 = vmatprep.subr.mxu0 0.0
    %2644 = vmatpush1.msra.mxu0 %v2377
    %2645 = vmatprep.subr.mxu0 0.0
    %2646 = vmatpush1.msra.mxu0 %v2378
    %2647 = vmatprep.subr.mxu0 0.0
    %2648 = vmatpush1.msra.mxu0 %v2379
    %2649 = vmatprep.subr.mxu0 0.0
    %2650 = vmatpush1.msra.mxu0 %v2380
    %2651 = vmatprep.subr.mxu0 0.0
    %2652 = vmatpush1.msra.mxu0 %v2381
    %2653 = vmatprep.subr.mxu0 0.0
    %2654 = vmatpush1.msra.mxu0 %v2382
    %2655 = vmatprep.subr.mxu0 0.0
    %2656 = vmatpush1.msra.mxu0 %v2383
    %2657 = vmatprep.subr.mxu0 0.0
    %2658 = vmatpush1.msra.mxu0 %v2384
    %2659 = vmatprep.subr.mxu0 0.0
    %2660 = vmatpush1.msra.mxu0 %v2385
    %2661 = vmatprep.subr.mxu0 0.0
    %2662 = vmatpush1.msra.mxu0 %v2386
    %2663 = vmatprep.subr.mxu0 0.0
    %2664 = vmatpush1.msra.mxu0 %v2387
    %2665 = vmatprep.subr.mxu0 0.0
    %2666 = vmatpush1.msra.mxu0 %v2388
    %2667 = vmatprep.subr.mxu0 0.0
    %2668 = vmatpush1.msra.mxu0 %v2389
    %2669 = vmatprep.subr.mxu0 0.0
    %2670 = vmatpush1.msra.mxu0 %v2390
    %2671 = vmatprep.subr.mxu0 0.0
    %2672 = vmatpush1.msra.mxu0 %v2391
    %2673 = vmatprep.subr.mxu0 0.0
    %2674 = vmatpush1.msra.mxu0 %v2392
    %2675 = vmatprep.subr.mxu0 0.0
    %2676 = vmatpush1.msra.mxu0 %v2393
    %2677 = vmatprep.subr.mxu0 0.0
    %2678 = vmatpush1.msra.mxu0 %v2394
    %2679 = vmatprep.subr.mxu0 0.0
    %2680 = vmatpush1.msra.mxu0 %v2395
    %2681 = vmatprep.subr.mxu0 0.0
    %2682 = vmatpush1.msra.mxu0 %v2396
    %2683 = vmatprep.subr.mxu0 0.0
    %2684 = vmatpush1.msra.mxu0 %v2397
    %2685 = vmatprep.subr.mxu0 0.0
    %2686 = vmatpush1.msra.mxu0 %v2398
    %2687 = vmatprep.subr.mxu0 0.0
    %2688 = vmatpush1.msra.mxu0 %v2399
    %2689 = vmatprep.mubr.f32.mxu0 %v2179
    %2690 = vmatmul.mubr.f32.gmra.mrb[0].mxu0 %v2178
    %v2691 = vpop.f32.mrb[0].mxu0
    %v2692 = vadd.f32 %v2467, %v2691
    %v2693 = vpop.f32.mrb[0].mxu0
    %2694 = vmatprep.mubr.f32.mxu0 %v2183
    %2695 = vmatmul.mubr.f32.gmra.mrb[0].mxu0 %v2182
    %v2696 = vpop.f32.mrb[0].mxu0
    %v2697 = vadd.f32 %v2472, %v2696
    %v2698 = vpop.f32.mrb[0].mxu0
    %2699 = vmatprep.mubr.f32.mxu0 %v2187
    %2700 = vmatmul.mubr.f32.gmra.mrb[0].mxu0 %v2186
    %v2701 = vpop.f32.mrb[0].mxu0
    %v2702 = vadd.f32 %v2477, %v2701
    %v2703 = vpop.f32.mrb[0].mxu0
    %2704 = vmatprep.mubr.f32.mxu0 %v2191
    %2705 = vmatmul.mubr.f32.gmra.mrb[0].mxu0 %v2190
    %v2706 = vpop.f32.mrb[0].mxu0
    %v2707 = vadd.f32 %v2482, %v2706
    %v2708 = vpop.f32.mrb[0].mxu0
    %2709 = vmatprep.mubr.f32.mxu0 %v2195
    %2710 = vmatmul.mubr.f32.gmra.mrb[0].mxu0 %v2194
    %v2711 = vpop.f32.mrb[0].mxu0
    %v2712 = vadd.f32 %v2487, %v2711
    %v2713 = vpop.f32.mrb[0].mxu0
    %2714 = vmatprep.mubr.f32.mxu0 %v2199
    %2715 = vmatmul.mubr.f32.gmra.mrb[0].mxu0 %v2198
    %v2716 = vpop.f32.mrb[0].mxu0
    %v2717 = vadd.f32 %v2492, %v2716
    %v2718 = vpop.f32.mrb[0].mxu0
    %2719 = vmatprep.mubr.f32.mxu0 %v2203
    %2720 = vmatmul.mubr.f32.gmra.mrb[0].mxu0 %v2202
    %v2721 = vpop.f32.mrb[0].mxu0
    %v2722 = vadd.f32 %v2497, %v2721
    %v2723 = vpop.f32.mrb[0].mxu0
    %2724 = vmatprep.mubr.f32.mxu0 %v2207
    %2725 = vmatmul.mubr.f32.gmra.mrb[0].mxu0 %v2206
    %v2726 = vpop.f32.mrb[0].mxu0
    %v2727 = vadd.f32 %v2502, %v2726
    %v2728 = vpop.f32.mrb[0].mxu0
    %2729 = vmatprep.mubr.f32.mxu0 %v2211
    %2730 = vmatmul.mubr.f32.gmra.mrb[0].mxu0 %v2210
    %v2731 = vpop.f32.mrb[0].mxu0
    %v2732 = vadd.f32 %v2507, %v2731
    %v2733 = vpop.f32.mrb[0].mxu0
    %2734 = vmatprep.mubr.f32.mxu0 %v2215
    %2735 = vmatmul.mubr.f32.gmra.mrb[0].mxu0 %v2214
    %v2736 = vpop.f32.mrb[0].mxu0
    %v2737 = vadd.f32 %v2512, %v2736
    %v2738 = vpop.f32.mrb[0].mxu0
    %2739 = vmatprep.mubr.f32.mxu0 %v2219
    %2740 = vmatmul.mubr.f32.gmra.mrb[0].mxu0 %v2218
    %v2741 = vpop.f32.mrb[0].mxu0
    %v2742 = vadd.f32 %v2517, %v2741
    %v2743 = vpop.f32.mrb[0].mxu0
    %2744 = vmatprep.mubr.f32.mxu0 %v2223
    %2745 = vmatmul.mubr.f32.gmra.mrb[0].mxu0 %v2222
    %v2746 = vpop.f32.mrb[0].mxu0
    %v2747 = vadd.f32 %v2522, %v2746
    %v2748 = vpop.f32.mrb[0].mxu0
    %2749 = vmatprep.mubr.f32.mxu0 %v2227
    %2750 = vmatmul.mubr.f32.gmra.mrb[0].mxu0 %v2226
    %v2751 = vpop.f32.mrb[0].mxu0
    %v2752 = vadd.f32 %v2527, %v2751
    %v2753 = vpop.f32.mrb[0].mxu0
    %2754 = vmatprep.mubr.f32.mxu0 %v2231
    %2755 = vmatmul.mubr.f32.gmra.mrb[0].mxu0 %v2230
    %v2756 = vpop.f32.mrb[0].mxu0
    %v2757 = vadd.f32 %v2532, %v2756
    %v2758 = vpop.f32.mrb[0].mxu0
    %2759 = vmatprep.mubr.f32.mxu0 %v2235
    %2760 = vmatmul.mubr.f32.gmra.mrb[0].mxu0 %v2234
    %v2761 = vpop.f32.mrb[0].mxu0
    %v2762 = vadd.f32 %v2537, %v2761
    %v2763 = vpop.f32.mrb[0].mxu0
    %2764 = vmatprep.mubr.f32.mxu0 %v2239
    %2765 = vmatmul.mubr.f32.gmra.mrb[0].mxu0 %v2238
    %v2766 = vpop.f32.mrb[0].mxu0
    %v2767 = vadd.f32 %v2542, %v2766
    %v2768 = vpop.f32.mrb[0].mxu0
    %2769 = vmatprep.mubr.f32.mxu0 %v2243
    %2770 = vmatmul.mubr.f32.gmra.mrb[0].mxu0 %v2242
    %v2771 = vpop.f32.mrb[0].mxu0
    %v2772 = vadd.f32 %v2547, %v2771
    %v2773 = vpop.f32.mrb[0].mxu0
    %2774 = vmatprep.mubr.f32.mxu0 %v2247
    %2775 = vmatmul.mubr.f32.gmra.mrb[0].mxu0 %v2246
    %v2776 = vpop.f32.mrb[0].mxu0
    %v2777 = vadd.f32 %v2552, %v2776
    %v2778 = vpop.f32.mrb[0].mxu0
    %2779 = vmatprep.mubr.f32.mxu0 %v2251
    %2780 = vmatmul.mubr.f32.gmra.mrb[0].mxu0 %v2250
    %v2781 = vpop.f32.mrb[0].mxu0
    %v2782 = vadd.f32 %v2557, %v2781
    %v2783 = vpop.f32.mrb[0].mxu0
    %2784 = vmatprep.mubr.f32.mxu0 %v2255
    %2785 = vmatmul.mubr.f32.gmra.mrb[0].mxu0 %v2254
    %v2786 = vpop.f32.mrb[0].mxu0
    %v2787 = vadd.f32 %v2562, %v2786
    %v2788 = vpop.f32.mrb[0].mxu0
    %2789 = vmatprep.mubr.f32.mxu0 %v2259
    %2790 = vmatmul.mubr.f32.gmra.mrb[0].mxu0 %v2258
    %v2791 = vpop.f32.mrb[0].mxu0
    %v2792 = vadd.f32 %v2567, %v2791
    %v2793 = vpop.f32.mrb[0].mxu0
    %2794 = vmatprep.mubr.f32.mxu0 %v2263
    %2795 = vmatmul.mubr.f32.gmra.mrb[0].mxu0 %v2262
    %v2796 = vpop.f32.mrb[0].mxu0
    %v2797 = vadd.f32 %v2572, %v2796
    %v2798 = vpop.f32.mrb[0].mxu0
    %2799 = vmatprep.mubr.f32.mxu0 %v2267
    %2800 = vmatmul.mubr.f32.gmra.mrb[0].mxu0 %v2266
    %v2801 = vpop.f32.mrb[0].mxu0
    %v2802 = vadd.f32 %v2577, %v2801
    %v2803 = vpop.f32.mrb[0].mxu0
    %2804 = vmatprep.mubr.f32.mxu0 %v2271
    %2805 = vmatmul.mubr.f32.gmra.mrb[0].mxu0 %v2270
    %v2806 = vpop.f32.mrb[0].mxu0
    %v2807 = vadd.f32 %v2582, %v2806
    %v2808 = vpop.f32.mrb[0].mxu0
    %2809 = vmatprep.mubr.f32.mxu0 %v2275
    %2810 = vmatmul.mubr.f32.gmra.mrb[0].mxu0 %v2274
    %v2811 = vpop.f32.mrb[0].mxu0
    %v2812 = vadd.f32 %v2587, %v2811
    %v2813 = vpop.f32.mrb[0].mxu0
    %2814 = vmatprep.mubr.f32.mxu0 %v2279
    %2815 = vmatmul.mubr.f32.gmra.mrb[0].mxu0 %v2278
    %v2816 = vpop.f32.mrb[0].mxu0
    %v2817 = vadd.f32 %v2592, %v2816
    %v2818 = vpop.f32.mrb[0].mxu0
    %2819 = vmatprep.mubr.f32.mxu0 %v2283
    %2820 = vmatmul.mubr.f32.gmra.mrb[0].mxu0 %v2282
    %v2821 = vpop.f32.mrb[0].mxu0
    %v2822 = vadd.f32 %v2597, %v2821
    %v2823 = vpop.f32.mrb[0].mxu0
    %2824 = vmatprep.mubr.f32.mxu0 %v2287
    %2825 = vmatmul.mubr.f32.gmra.mrb[0].mxu0 %v2286
    %v2826 = vpop.f32.mrb[0].mxu0
    %v2827 = vadd.f32 %v2602, %v2826
    %v2828 = vpop.f32.mrb[0].mxu0
    %2829 = vmatprep.mubr.f32.mxu0 %v2291
    %2830 = vmatmul.mubr.f32.gmra.mrb[0].mxu0 %v2290
    %v2831 = vpop.f32.mrb[0].mxu0
    %v2832 = vadd.f32 %v2607, %v2831
    %v2833 = vpop.f32.mrb[0].mxu0
    %2834 = vmatprep.mubr.f32.mxu0 %v2295
    %2835 = vmatmul.mubr.f32.gmra.mrb[0].mxu0 %v2294
    %v2836 = vpop.f32.mrb[0].mxu0
    %v2837 = vadd.f32 %v2612, %v2836
    %v2838 = vpop.f32.mrb[0].mxu0
    %2839 = vmatprep.mubr.f32.mxu0 %v2299
    %2840 = vmatmul.mubr.f32.gmra.mrb[0].mxu0 %v2298
    %v2841 = vpop.f32.mrb[0].mxu0
    %v2842 = vadd.f32 %v2617, %v2841
    %v2843 = vpop.f32.mrb[0].mxu0
    %2844 = vmatprep.mubr.f32.mxu0 %v2303
    %2845 = vmatmul.mubr.f32.gmra.mrb[0].mxu0 %v2302
    %v2846 = vpop.f32.mrb[0].mxu0
    %v2847 = vadd.f32 %v2622, %v2846
    %v2848 = vpop.f32.mrb[0].mxu0
    %2849 = vdwg.mxu0
    %v2850 = vadd.f32 %v2304, %v2692
    %v2851 = vadd.f32 %v2305, %v2697
    %v2852 = vadd.f32 %v2306, %v2702
    %v2853 = vadd.f32 %v2307, %v2707
    %v2854 = vadd.f32 %v2308, %v2712
    %v2855 = vadd.f32 %v2309, %v2717
    %v2856 = vadd.f32 %v2310, %v2722
    %v2857 = vadd.f32 %v2311, %v2727
    %v2858 = vadd.f32 %v2312, %v2732
    %v2859 = vadd.f32 %v2313, %v2737
    %v2860 = vadd.f32 %v2314, %v2742
    %v2861 = vadd.f32 %v2315, %v2747
    %v2862 = vadd.f32 %v2316, %v2752
    %v2863 = vadd.f32 %v2317, %v2757
    %v2864 = vadd.f32 %v2318, %v2762
    %v2865 = vadd.f32 %v2319, %v2767
    %v2866 = vadd.f32 %v2320, %v2772
    %v2867 = vadd.f32 %v2321, %v2777
    %v2868 = vadd.f32 %v2322, %v2782
    %v2869 = vadd.f32 %v2323, %v2787
    %v2870 = vadd.f32 %v2324, %v2792
    %v2871 = vadd.f32 %v2325, %v2797
    %v2872 = vadd.f32 %v2326, %v2802
    %v2873 = vadd.f32 %v2327, %v2807
    %v2874 = vadd.f32 %v2328, %v2812
    %v2875 = vadd.f32 %v2329, %v2817
    %v2876 = vadd.f32 %v2330, %v2822
    %v2877 = vadd.f32 %v2331, %v2827
    %v2878 = vadd.f32 %v2332, %v2832
    %v2879 = vadd.f32 %v2333, %v2837
    %v2880 = vadd.f32 %v2334, %v2842
    %v2881 = vadd.f32 %v2335, %v2847
    %2882 = vst [vmem:[#allocation2] sm:$0xff] %v2850
    %2883 = vst [vmem:[#allocation2 + $0x8] sm:$0xff] %v2851
    %2884 = vst [vmem:[#allocation2 + $0x10] sm:$0xff] %v2852
    %2885 = vst [vmem:[#allocation2 + $0x18] sm:$0xff] %v2853
    %2886 = vst [vmem:[#allocation2 + $0x20] sm:$0xff] %v2854
    %2887 = vst [vmem:[#allocation2 + $0x28] sm:$0xff] %v2855
    %2888 = vst [vmem:[#allocation2 + $0x30] sm:$0xff] %v2856
    %2889 = vst [vmem:[#allocation2 + $0x38] sm:$0xff] %v2857
    %2890 = vst [vmem:[#allocation2 + $0x40] sm:$0xff] %v2858
    %2891 = vst [vmem:[#allocation2 + $0x48] sm:$0xff] %v2859
    %2892 = vst [vmem:[#allocation2 + $0x50] sm:$0xff] %v2860
    %2893 = vst [vmem:[#allocation2 + $0x58] sm:$0xff] %v2861
    %2894 = vst [vmem:[#allocation2 + $0x60] sm:$0xff] %v2862
    %2895 = vst [vmem:[#allocation2 + $0x68] sm:$0xff] %v2863
    %2896 = vst [vmem:[#allocation2 + $0x70] sm:$0xff] %v2864
    %2897 = vst [vmem:[#allocation2 + $0x78] sm:$0xff] %v2865
    %2898 = vst [vmem:[#allocation2 + $0x80] sm:$0xff] %v2866
    %2899 = vst [vmem:[#allocation2 + $0x88] sm:$0xff] %v2867
    %2900 = vst [vmem:[#allocation2 + $0x90] sm:$0xff] %v2868
    %2901 = vst [vmem:[#allocation2 + $0x98] sm:$0xff] %v2869
    %2902 = vst [vmem:[#allocation2 + $0xa0] sm:$0xff] %v2870
    %2903 = vst [vmem:[#allocation2 + $0xa8] sm:$0xff] %v2871
    %2904 = vst [vmem:[#allocation2 + $0xb0] sm:$0xff] %v2872
    %2905 = vst [vmem:[#allocation2 + $0xb8] sm:$0xff] %v2873
    %2906 = vst [vmem:[#allocation2 + $0xc0] sm:$0xff] %v2874
    %2907 = vst [vmem:[#allocation2 + $0xc8] sm:$0xff] %v2875
    %2908 = vst [vmem:[#allocation2 + $0xd0] sm:$0xff] %v2876
    %2909 = vst [vmem:[#allocation2 + $0xd8] sm:$0xff] %v2877
    %2910 = vst [vmem:[#allocation2 + $0xe0] sm:$0xff] %v2878
    %2911 = vst [vmem:[#allocation2 + $0xe8] sm:$0xff] %v2879
    %2912 = vst [vmem:[#allocation2 + $0xf0] sm:$0xff] %v2880
    %2913 = vst [vmem:[#allocation2 + $0xf8] sm:$0xff] %v2881
    // Predicated region
    $region30: #{tpu_custom_call.1} parent=1 // pred_check
      %p2914 = pneg %p56
    $region31: #{tpu_custom_call.1} parent=1 // pred_check_branch
      %2916 = sbr.rel (%p2914) target = $region33
    $region32: #{tpu_custom_call.1} parent=1 // pred_region
      %v2917 = vld [vmem:[#allocation2] sm:$0xff]
      %v2918 = vld [vmem:[#allocation2 + $0x8] sm:$0xff]
      %v2919 = vld [vmem:[#allocation2 + $0x10] sm:$0xff]
      %v2920 = vld [vmem:[#allocation2 + $0x18] sm:$0xff]
      %v2921 = vld [vmem:[#allocation2 + $0x20] sm:$0xff]
      %v2922 = vld [vmem:[#allocation2 + $0x28] sm:$0xff]
      %v2923 = vld [vmem:[#allocation2 + $0x30] sm:$0xff]
      %v2924 = vld [vmem:[#allocation2 + $0x38] sm:$0xff]
      %v2925 = vld [vmem:[#allocation2 + $0x40] sm:$0xff]
      %v2926 = vld [vmem:[#allocation2 + $0x48] sm:$0xff]
      %v2927 = vld [vmem:[#allocation2 + $0x50] sm:$0xff]
      %v2928 = vld [vmem:[#allocation2 + $0x58] sm:$0xff]
      %v2929 = vld [vmem:[#allocation2 + $0x60] sm:$0xff]
      %v2930 = vld [vmem:[#allocation2 + $0x68] sm:$0xff]
      %v2931 = vld [vmem:[#allocation2 + $0x70] sm:$0xff]
      %v2932 = vld [vmem:[#allocation2 + $0x78] sm:$0xff]
      %v2933 = vld [vmem:[#allocation2 + $0x80] sm:$0xff]
      %v2934 = vld [vmem:[#allocation2 + $0x88] sm:$0xff]
      %v2935 = vld [vmem:[#allocation2 + $0x90] sm:$0xff]
      %v2936 = vld [vmem:[#allocation2 + $0x98] sm:$0xff]
      %v2937 = vld [vmem:[#allocation2 + $0xa0] sm:$0xff]
      %v2938 = vld [vmem:[#allocation2 + $0xa8] sm:$0xff]
      %v2939 = vld [vmem:[#allocation2 + $0xb0] sm:$0xff]
      %v2940 = vld [vmem:[#allocation2 + $0xb8] sm:$0xff]
      %v2941 = vld [vmem:[#allocation2 + $0xc0] sm:$0xff]
      %v2942 = vld [vmem:[#allocation2 + $0xc8] sm:$0xff]
      %v2943 = vld [vmem:[#allocation2 + $0xd0] sm:$0xff]
      %v2944 = vld [vmem:[#allocation2 + $0xd8] sm:$0xff]
      %v2945 = vld [vmem:[#allocation2 + $0xe0] sm:$0xff]
      %v2946 = vld [vmem:[#allocation2 + $0xe8] sm:$0xff]
      %v2947 = vld [vmem:[#allocation2 + $0xf0] sm:$0xff]
      %v2948 = vld [vmem:[#allocation2 + $0xf8] sm:$0xff]
      %2949 = vst [vmem:[#allocation9] sm:$0xff] %v2917
      %2950 = vst [vmem:[#allocation9 + $0x8] sm:$0xff] %v2918
      %2951 = vst [vmem:[#allocation9 + $0x10] sm:$0xff] %v2919
      %2952 = vst [vmem:[#allocation9 + $0x18] sm:$0xff] %v2920
      %2953 = vst [vmem:[#allocation9 + $0x20] sm:$0xff] %v2921
      %2954 = vst [vmem:[#allocation9 + $0x28] sm:$0xff] %v2922
      %2955 = vst [vmem:[#allocation9 + $0x30] sm:$0xff] %v2923
      %2956 = vst [vmem:[#allocation9 + $0x38] sm:$0xff] %v2924
      %2957 = vst [vmem:[#allocation9 + $0x40] sm:$0xff] %v2925
      %2958 = vst [vmem:[#allocation9 + $0x48] sm:$0xff] %v2926
      %2959 = vst [vmem:[#allocation9 + $0x50] sm:$0xff] %v2927
      %2960 = vst [vmem:[#allocation9 + $0x58] sm:$0xff] %v2928
      %2961 = vst [vmem:[#allocation9 + $0x60] sm:$0xff] %v2929
      %2962 = vst [vmem:[#allocation9 + $0x68] sm:$0xff] %v2930
      %2963 = vst [vmem:[#allocation9 + $0x70] sm:$0xff] %v2931
      %2964 = vst [vmem:[#allocation9 + $0x78] sm:$0xff] %v2932
      %2965 = vst [vmem:[#allocation9 + $0x80] sm:$0xff] %v2933
      %2966 = vst [vmem:[#allocation9 + $0x88] sm:$0xff] %v2934
      %2967 = vst [vmem:[#allocation9 + $0x90] sm:$0xff] %v2935
      %2968 = vst [vmem:[#allocation9 + $0x98] sm:$0xff] %v2936
      %2969 = vst [vmem:[#allocation9 + $0xa0] sm:$0xff] %v2937
      %2970 = vst [vmem:[#allocation9 + $0xa8] sm:$0xff] %v2938
      %2971 = vst [vmem:[#allocation9 + $0xb0] sm:$0xff] %v2939
      %2972 = vst [vmem:[#allocation9 + $0xb8] sm:$0xff] %v2940
      %2973 = vst [vmem:[#allocation9 + $0xc0] sm:$0xff] %v2941
      %2974 = vst [vmem:[#allocation9 + $0xc8] sm:$0xff] %v2942
      %2975 = vst [vmem:[#allocation9 + $0xd0] sm:$0xff] %v2943
      %2976 = vst [vmem:[#allocation9 + $0xd8] sm:$0xff] %v2944
      %2977 = vst [vmem:[#allocation9 + $0xe0] sm:$0xff] %v2945
      %2978 = vst [vmem:[#allocation9 + $0xe8] sm:$0xff] %v2946
      %2979 = vst [vmem:[#allocation9 + $0xf0] sm:$0xff] %v2947
      %2980 = vst [vmem:[#allocation9 + $0xf8] sm:$0xff] %v2948
    $region33: #{tpu_custom_call.1} parent=1 // pred_fallthru
      _
    // Predicated region
    $region34: #{tpu_custom_call.1} parent=1 // pred_check
      _
    $region35: #{tpu_custom_call.1} parent=1 // pred_check_branch
      %2982 = sbr.rel (0) target = $region37
    $region36: #{tpu_custom_call.1} parent=1 // pred_region
      %s2984 = ssub.s32 4096, 4096
      %2985 = vsyncadd [#allocation5], %s2984
      %s2986 = sshll.u32 [#allocation9], 4
      %s2987 = int_to_ptr.vmem [resolvable:$true] %s2986
      %2992 = dma.vmem_to_hbm [thread:$0]  %s2987, 4096, %s3, [#allocation5], 128, 128, 8
    $region37: #{tpu_custom_call.1} parent=1 // pred_fallthru
      _
    // Predicated region
    $region38: #{tpu_custom_call.1} parent=1 // pred_check
      _
    $region39: #{tpu_custom_call.1} parent=1 // pred_check_branch
      %2994 = sbr.rel (0) target = $region41
    $region40: #{tpu_custom_call.1} parent=1 // pred_region
      %2995 = dma.done [#allocation5], 4096
    $region41: #{tpu_custom_call.1} parent=1 // pred_fallthru
      _
    %2996 = vsyncpa [#allocation4], 1
    %2997 = vsyncpa [#allocation7], 1
    %2998 = vsyncpa [#allocation5], 1

</llo_original>
